<compile_context>
chip_gen: v7x
topology: tpu7x:2x2x1
jax: 0.10.0
libtpu: 0.0.40
codegen_flags: <defaults>
</compile_context>

<pallas_src>
import jax
import jax.numpy as jnp
from jax.experimental import pallas as pl
from jax.experimental.pallas import tpu as pltpu

_BIG = 1e30  # sentinel distance for padded points


def _chamfer_kernel(p_ref, t_ref, d1_ref, d2_ref, d1_part):
    # p_ref:   (1, tn, 8)    augmented pred points (resident across the m axis)
    # t_ref:   (1, 8, tm)    augmented target points, lane-dense
    # d1_ref:  (1, 1, tn)    per-pred-point min over ALL m (written at last mi)
    # d2_ref:  (1, 1, 1, tm) per-tile column mins (partial over this n block)
    # d1_part: (tn, 128)     VMEM scratch: running lane-folded min across m tiles
    mi = pl.program_id(2)
    num_mi = pl.num_programs(2)

    p = p_ref[0]                                   # (tn, 8)
    tm = t_ref.shape[2]
    cm = 256 if tm % 256 == 0 else 128             # static lane-chunk width

    # Stream the (tn, tm) distance tile through the min-folds in cm-lane
    # chunks: never materialize more than (tn, cm) at once.
    partial = None
    for c in range(tm // cm):
        lo = c * cm
        t_c = t_ref[0, :, lo:lo + cm]                              # (8, cm)
        d_c = jnp.dot(p, t_c, preferred_element_type=jnp.float32,
                      precision=jax.lax.Precision.DEFAULT)         # (tn, cm)
        # d2 partial: min over the tn rows of this chunk, stored lane-dense
        # straight to the output block (offsets are 128-aligned -> unmasked vst).
        d2_ref[0, 0, 0, lo:lo + cm] = jnp.min(d_c, axis=0)
        # d1: fold the cm lanes down to 128 on the VPU, keep a running min.
        fold = d_c[:, 0:128]
        for j in range(1, cm // 128):
            fold = jnp.minimum(fold, d_c[:, j * 128:(j + 1) * 128])
        partial = fold if partial is None else jnp.minimum(partial, fold)

    @pl.when(mi == 0)
    def _():
        d1_part[...] = partial

    @pl.when(mi > 0)
    def _():
        d1_part[...] = jnp.minimum(d1_part[...], partial)

    @pl.when(mi == num_mi - 1)
    def _():
        # cross-lane reduce + clamp once per (b, n) block; clamp after the
        # reduction because fp rounding can give tiny negatives.
        d1_ref[0, 0, :] = jnp.maximum(jnp.min(d1_part[...], axis=1), 0.0)


def _round_up(x, m):
    return ((x + m - 1) // m) * m


def chamfer_loss(pred, target, *, tn=512, tm=2048):
    """pred: (B, N, 3) float, target: (B, M, 3) float -> scalar Chamfer loss."""
    B, N, Dp = pred.shape
    Bt, M, Dt = target.shape
    assert B == Bt and Dp == 3 and Dt == 3

    # --- tile selection ------------------------------------------------------
    # tn: 128-aligned, tm: 256-aligned (full v7x MXU column groups); clamp to
    # the (rounded) problem size so tiny inputs stay single-tile.
    tn = int(min(tn, _round_up(N, 128)))
    tm = int(min(tm, _round_up(M, 256)))
    # v7x megacore load balance: b and n grid axes are "parallel"; make sure
    # they expose at least 2 blocks so neither TensorCore idles (no-op on
    # single-TC v5e/v6e).
    if B * (_round_up(N, tn) // tn) < 2 and N > 128:
        tn = _round_up((N + 1) // 2, 128)
    assert tn % 128 == 0 and tm % 128 == 0

    N_pad = _round_up(N, tn)
    M_pad = _round_up(M, tm)
    num_n = N_pad // tn
    num_m = M_pad // tm

    pred_f = pred.astype(jnp.float32)
    tgt_f = target.astype(jnp.float32)

    # augmented operands: p_aug @ t_aug^T == ||p||^2 + ||t||^2 - 2 p.t
    p_norm = jnp.sum(pred_f * pred_f, axis=-1, keepdims=True)    # (B, N, 1)
    t_norm = jnp.sum(tgt_f * tgt_f, axis=-1, keepdims=True)      # (B, M, 1)
    p_aug = jnp.concatenate(
        [-2.0 * pred_f, p_norm, jnp.ones((B, N, 1), jnp.float32),
         jnp.zeros((B, N, 3), jnp.float32)], axis=-1)            # (B, N, 8)
    t_aug = jnp.concatenate(
        [tgt_f, jnp.ones((B, M, 1), jnp.float32), t_norm,
         jnp.zeros((B, M, 3), jnp.float32)], axis=-1)            # (B, M, 8)

    # pad to tile multiples with sentinel points: a padded point scores +_BIG
    # against every real point, so it never wins a min (no in-kernel masking).
    if N_pad > N:
        pad = jnp.zeros((B, N_pad - N, 8), jnp.float32).at[:, :, 3].set(_BIG)
        p_aug = jnp.concatenate([p_aug, pad], axis=1)
    if M_pad > M:
        pad = jnp.zeros((B, M_pad - M, 8), jnp.float32).at[:, :, 4].set(_BIG)
        t_aug = jnp.concatenate([t_aug, pad], axis=1)

    t_aug_t = jnp.swapaxes(t_aug, 1, 2)                          # (B, 8, M_pad)

    flops = 2 * B * N_pad * M_pad * 8
    bytes_accessed = 4 * (B * N_pad * 8 + B * num_n * M_pad * 8
                          + B * N_pad + B * num_n * M_pad)

    d1, d2_part = pl.pallas_call(
        _chamfer_kernel,
        out_shape=(jax.ShapeDtypeStruct((B, 1, N_pad), jnp.float32),
                   jax.ShapeDtypeStruct((B, num_n, 1, M_pad), jnp.float32)),
        grid_spec=pltpu.PrefetchScalarGridSpec(
            num_scalar_prefetch=0,
            grid=(B, num_n, num_m),
            in_specs=[
                pl.BlockSpec((1, tn, 8), lambda b, ni, mi: (b, ni, 0)),
                pl.BlockSpec((1, 8, tm), lambda b, ni, mi: (b, 0, mi)),
            ],
            out_specs=[
                pl.BlockSpec((1, 1, tn), lambda b, ni, mi: (b, 0, ni)),
                pl.BlockSpec((1, 1, 1, tm), lambda b, ni, mi: (b, ni, 0, mi)),
            ],
            scratch_shapes=[pltpu.VMEM((tn, 128), jnp.float32)],
        ),
        compiler_params=pltpu.CompilerParams(
            dimension_semantics=("parallel", "parallel", "arbitrary")),
        cost_estimate=pl.CostEstimate(
            flops=flops, transcendentals=0, bytes_accessed=bytes_accessed),
    )(p_aug, t_aug_t)

    # trivial glue: drop sentinel entries, finish the d2 min over n tiles,
    # clamp, and take the scalar means.
    dist1 = d1[:, 0, :N]                                              # (B, N)
    dist2 = jnp.maximum(jnp.min(d2_part[:, :, 0, :], axis=1)[:, :M], 0.0)
    return (jnp.mean(dist1) + jnp.mean(dist2)) / 2.0


def _reference_chamfer_loss(pred, target):
    # pure-JAX diff-based reference for verification
    diff = pred[:, :, None, :] - target[:, None, :, :]                # (B, N, M, 3)
    d = jnp.sum(diff * diff, axis=-1)                                 # (B, N, M)
    dist1 = jnp.min(d, axis=2)                                        # (B, N)
    dist2 = jnp.min(d, axis=1)                                        # (B, M)
    return (jnp.mean(dist1) + jnp.mean(dist2)) / 2.0


if __name__ == "__main__":
    key = jax.random.PRNGKey(0)
    k1, k2 = jax.random.split(key)
    # non-multiple point counts exercise the sentinel-padding path
    B, N, M = 2, 200, 312
    pred = jax.random.normal(k1, (B, N, 3), dtype=jnp.float32)
    target = jax.random.normal(k2, (B, M, 3), dtype=jnp.float32)

    ref = jax.block_until_ready(_reference_chamfer_loss(pred, target))

    # default (large, clamped) tiles: exercises the in-kernel lane-chunked fold
    loss_big = jax.block_until_ready(chamfer_loss(pred, target))
    # small tiles: exercises multi-tile accumulation over both n and m grid axes
    loss_small = jax.block_until_ready(chamfer_loss(pred, target, tn=128, tm=256))

    assert jnp.allclose(loss_big, ref, rtol=1e-3, atol=1e-5), (loss_big, ref)
    assert jnp.allclose(loss_small, ref, rtol=1e-3, atol=1e-5), (loss_small, ref)
    print("KERNEL_OK")
</pallas_src>

<mosaic_0001>
module attributes {stable_mosaic.version = 11 : i64} {
  func.func @_chamfer_kernel(%arg0: i32, %arg1: i32, %arg2: i32, %arg3: memref<1x256x8xf32, #tpu.memory_space<vmem>>, %arg4: memref<1x8x512xf32, #tpu.memory_space<vmem>>, %arg5: memref<1x1x256xf32, #tpu.memory_space<vmem>>, %arg6: memref<1x1x1x512xf32, #tpu.memory_space<vmem>>, %arg7: memref<256x128xf32, #tpu.memory_space<vmem>>) attributes {dimension_semantics = [#tpu.dimension_semantics<parallel>, #tpu.dimension_semantics<parallel>, #tpu.dimension_semantics<arbitrary>], iteration_bounds = array<i64: 2, 1, 1>, scalar_prefetch = 0 : i64, scratch_operands = 1 : i64, tpu.core_type = #tpu.core_type<tc>, window_params = [{transform_indices = @transform_0, window_bounds = array<i64: 1, 256, 8>}, {transform_indices = @transform_1, window_bounds = array<i64: 1, 8, 512>}, {transform_indices = @transform_2, window_bounds = array<i64: 1, 1, 256>}, {transform_indices = @transform_3, window_bounds = array<i64: 1, 1, 1, 512>}]} {
    %c0 = arith.constant 0 : index
    %c0_0 = arith.constant 0 : index
    %c0_1 = arith.constant 0 : index
    %0 = vector.load %arg3[%c0, %c0_0, %c0_1] : memref<1x256x8xf32, #tpu.memory_space<vmem>>, vector<1x256x8xf32>
    %1 = vector.shape_cast %0 : vector<1x256x8xf32> to vector<256x8xf32>
    %c0_2 = arith.constant 0 : index
    %c0_3 = arith.constant 0 : index
    %c0_4 = arith.constant 0 : index
    %2 = vector.load %arg4[%c0_2, %c0_3, %c0_4] : memref<1x8x512xf32, #tpu.memory_space<vmem>>, vector<1x8x256xf32>
    %3 = vector.shape_cast %2 : vector<1x8x256xf32> to vector<8x256xf32>
    %cst = arith.constant dense<0.000000e+00> : vector<256x256xf32>
    %4 = tpu.matmul %1, %3, %cst {dimension_numbers = #tpu.dot_dimension_numbers<[1], [0], [0], [1], [0, 0, 1, 1], [], []>} : vector<256x8xf32>, vector<8x256xf32>, vector<256x256xf32> -> vector<256x256xf32>
    %cst_5 = arith.constant dense<0x7F800000> : vector<256xf32>
    %5 = vector.multi_reduction <minimumf>, %4, %cst_5 [0] : vector<256x256xf32> to vector<256xf32>
    %c0_6 = arith.constant 0 : index
    %c0_7 = arith.constant 0 : index
    %c0_8 = arith.constant 0 : index
    %c0_9 = arith.constant 0 : index
    %6 = vector.load %arg6[%c0_6, %c0_7, %c0_8, %c0_9] : memref<1x1x1x512xf32, #tpu.memory_space<vmem>>, vector<1x1x1x256xf32>
    %7 = vector.shape_cast %6 : vector<1x1x1x256xf32> to vector<256xf32>
    %8 = vector.shape_cast %5 : vector<256xf32> to vector<1x1x1x256xf32>
    tpu.vector_store %arg6[%c0_6, %c0_7, %c0_8, %c0_9], %8 {strides = array<i32>} : memref<1x1x1x512xf32, #tpu.memory_space<vmem>>, vector<1x1x1x256xf32>,
    %9 = vector.extract_strided_slice %4 {offsets = [0, 0], sizes = [256, 128], strides = [1, 1]} : vector<256x256xf32> to vector<256x128xf32>
    %10 = vector.extract_strided_slice %4 {offsets = [0, 128], sizes = [256, 128], strides = [1, 1]} : vector<256x256xf32> to vector<256x128xf32>
    %11 = arith.minimumf %9, %10 : vector<256x128xf32>
    %c0_10 = arith.constant 0 : index
    %c0_11 = arith.constant 0 : index
    %c256 = arith.constant 256 : index
    %12 = vector.load %arg4[%c0_10, %c0_11, %c256] : memref<1x8x512xf32, #tpu.memory_space<vmem>>, vector<1x8x256xf32>
    %13 = vector.shape_cast %12 : vector<1x8x256xf32> to vector<8x256xf32>
    %cst_12 = arith.constant dense<0.000000e+00> : vector<256x256xf32>
    %14 = tpu.matmul %1, %13, %cst_12 {dimension_numbers = #tpu.dot_dimension_numbers<[1], [0], [0], [1], [0, 0, 1, 1], [], []>} : vector<256x8xf32>, vector<8x256xf32>, vector<256x256xf32> -> vector<256x256xf32>
    %cst_13 = arith.constant dense<0x7F800000> : vector<256xf32>
    %15 = vector.multi_reduction <minimumf>, %14, %cst_13 [0] : vector<256x256xf32> to vector<256xf32>
    %c0_14 = arith.constant 0 : index
    %c0_15 = arith.constant 0 : index
    %c0_16 = arith.constant 0 : index
    %c256_17 = arith.constant 256 : index
    %16 = vector.load %arg6[%c0_14, %c0_15, %c0_16, %c256_17] : memref<1x1x1x512xf32, #tpu.memory_space<vmem>>, vector<1x1x1x256xf32>
    %17 = vector.shape_cast %16 : vector<1x1x1x256xf32> to vector<256xf32>
    %18 = vector.shape_cast %15 : vector<256xf32> to vector<1x1x1x256xf32>
    tpu.vector_store %arg6[%c0_14, %c0_15, %c0_16, %c256_17], %18 {strides = array<i32>} : memref<1x1x1x512xf32, #tpu.memory_space<vmem>>, vector<1x1x1x256xf32>,
    %19 = vector.extract_strided_slice %14 {offsets = [0, 0], sizes = [256, 128], strides = [1, 1]} : vector<256x256xf32> to vector<256x128xf32>
    %20 = vector.extract_strided_slice %14 {offsets = [0, 128], sizes = [256, 128], strides = [1, 1]} : vector<256x256xf32> to vector<256x128xf32>
    %21 = arith.minimumf %19, %20 : vector<256x128xf32>
    %22 = arith.minimumf %11, %21 : vector<256x128xf32>
    %c0_i32 = arith.constant 0 : i32
    %23 = arith.cmpi eq, %arg2, %c0_i32 : i32
    %24 = arith.extui %23 : i1 to i32
    %c0_i32_18 = arith.constant 0 : i32
    %25 = arith.cmpi ne, %24, %c0_i32_18 : i32
    scf.if %25 {
      %c0_23 = arith.constant 0 : index
      %c0_24 = arith.constant 0 : index
      %32 = vector.load %arg7[%c0_23, %c0_24] : memref<256x128xf32, #tpu.memory_space<vmem>>, vector<256x128xf32>
      tpu.vector_store %arg7[%c0_23, %c0_24], %22 {strides = array<i32>} : memref<256x128xf32, #tpu.memory_space<vmem>>, vector<256x128xf32>,
    } else {
    }
    %c0_i32_19 = arith.constant 0 : i32
    %26 = arith.cmpi sgt, %arg2, %c0_i32_19 : i32
    %27 = arith.extui %26 : i1 to i32
    %c0_i32_20 = arith.constant 0 : i32
    %28 = arith.cmpi ne, %27, %c0_i32_20 : i32
    scf.if %28 {
      %c0_23 = arith.constant 0 : index
      %c0_24 = arith.constant 0 : index
      %32 = vector.load %arg7[%c0_23, %c0_24] : memref<256x128xf32, #tpu.memory_space<vmem>>, vector<256x128xf32>
      %33 = arith.minimumf %32, %22 : vector<256x128xf32>
      %c0_25 = arith.constant 0 : index
      %c0_26 = arith.constant 0 : index
      %34 = vector.load %arg7[%c0_25, %c0_26] : memref<256x128xf32, #tpu.memory_space<vmem>>, vector<256x128xf32>
      tpu.vector_store %arg7[%c0_25, %c0_26], %33 {strides = array<i32>} : memref<256x128xf32, #tpu.memory_space<vmem>>, vector<256x128xf32>,
    } else {
    }
    %c0_i32_21 = arith.constant 0 : i32
    %29 = arith.cmpi eq, %arg2, %c0_i32_21 : i32
    %30 = arith.extui %29 : i1 to i32
    %c0_i32_22 = arith.constant 0 : i32
    %31 = arith.cmpi ne, %30, %c0_i32_22 : i32
    scf.if %31 {
      %c0_23 = arith.constant 0 : index
      %c0_24 = arith.constant 0 : index
      %32 = vector.load %arg7[%c0_23, %c0_24] : memref<256x128xf32, #tpu.memory_space<vmem>>, vector<256x128xf32>
      %cst_25 = arith.constant dense<0x7F800000> : vector<256xf32>
      %33 = vector.multi_reduction <minimumf>, %32, %cst_25 [1] : vector<256x128xf32> to vector<256xf32>
      %cst_26 = arith.constant 0.000000e+00 : f32
      %34 = vector.broadcast %cst_26 : f32 to vector<256xf32>
      %35 = arith.maximumf %33, %34 : vector<256xf32>
      %c0_27 = arith.constant 0 : index
      %c0_28 = arith.constant 0 : index
      %c0_29 = arith.constant 0 : index
      %36 = vector.load %arg5[%c0_27, %c0_28, %c0_29] : memref<1x1x256xf32, #tpu.memory_space<vmem>>, vector<1x1x256xf32>
      %37 = vector.shape_cast %36 : vector<1x1x256xf32> to vector<256xf32>
      %38 = vector.shape_cast %35 : vector<256xf32> to vector<1x1x256xf32>
      tpu.vector_store %arg5[%c0_27, %c0_28, %c0_29], %38 {strides = array<i32>} : memref<1x1x256xf32, #tpu.memory_space<vmem>>, vector<1x1x256xf32>,
    } else {
    }
    return
  }
  func.func @transform_0(%arg0: i32, %arg1: i32, %arg2: i32) -> (i32, i32, i32) {
    %c0_i32 = arith.constant 0 : i32
    %c0_i32_0 = arith.constant 0 : i32
    return %arg0, %arg1, %c0_i32 : i32, i32, i32
  }
  func.func @transform_1(%arg0: i32, %arg1: i32, %arg2: i32) -> (i32, i32, i32) {
    %c0_i32 = arith.constant 0 : i32
    %c0_i32_0 = arith.constant 0 : i32
    return %arg0, %c0_i32, %arg2 : i32, i32, i32
  }
  func.func @transform_2(%arg0: i32, %arg1: i32, %arg2: i32) -> (i32, i32, i32) {
    %c0_i32 = arith.constant 0 : i32
    %c0_i32_0 = arith.constant 0 : i32
    return %arg0, %c0_i32, %arg1 : i32, i32, i32
  }
  func.func @transform_3(%arg0: i32, %arg1: i32, %arg2: i32) -> (i32, i32, i32, i32) {
    %c0_i32 = arith.constant 0 : i32
    %c0_i32_0 = arith.constant 0 : i32
    return %arg0, %arg1, %c0_i32, %arg2 : i32, i32, i32, i32
  }
}

</mosaic_0001>

<llo_original>
// kernel: tpu_custom_call.1
$region0: #{tpu_custom_call.1}
  #allocation0 [shape = 'u32[]', space=smem, size = 0x4, offset = 0x4, fixed_abs, tag = 'smem constant byte address 0x4 - core index']
  #allocation1 [shape = 'u32[144,128]{1,0:T(1,128)}', space=vmem, size = 0x12000, scoped, tag = 'internal scratch']
  #allocation2 [shape = 'f32[256,128]{1,0:T(8,128)}', space=vmem, size = 0x20000, scoped, tag = 'scratch operand']
  %s0 = inlined_call_operand.vmem [shape: f32[2,256,8], index: 0, kind: input, shape index: {}]
  %s1 = inlined_call_operand.vmem [shape: f32[2,8,512], index: 1, kind: input, shape index: {}]
  %s2 = inlined_call_operand.hbm [shape: f32[2,1,256], index: 2, kind: output, shape index: {0}]
  %s3 = inlined_call_operand.hbm [shape: f32[2,1,1,512], index: 3, kind: output, shape index: {1}]
  %4 = xla_tuple %s2, %s3
  %s5 = sld [smem:[#allocation0]]
  $region61: #{tpu_custom_call.1} parent=0
    _
  %s7 = ssub.s32 1, %s5
  %s8 = scalar_select 0, %s7, %s5
  $region1: #{tpu_custom_call.1} parent=0
    #allocation3 [shape = 'u8[2048]{0}', space=vmem, size = 0x800, scoped, tag = 'output window, operand 0']
    #allocation4 [shape = 's32[2]{0}', space=sflag, size = 0x8, scoped, tag = 'scoped memory for tpu_custom_call.1']
    #allocation5 [shape = 'u8[4096]{0}', space=vmem, size = 0x1000, scoped, tag = 'output window, operand 1']
    #allocation6 [shape = 's32[2]{0}', space=sflag, size = 0x8, scoped, tag = 'scoped memory for tpu_custom_call.1']
    %9 = vsyncpa [#allocation4], 0
    %s10 = scalar_lea.sflag [#allocation4], 1
    %11 = vsyncpa %s10, 0
    %12 = vsyncpa [#allocation6], 0
    %s13 = scalar_lea.sflag [#allocation6], 1
    %14 = vsyncpa %s13, 0
    loop: start=0, step=1, limit=4
    $region2: #{tpu_custom_call.1} parent=1 // loop_pre_header
      _
    $region3: #{tpu_custom_call.1} parent=1 // loop_header
      %s16 = sphi 0, %s20
      %p17 = scmp.ge.s32.totalorder %s16, 4
      %s23 = sphi 0, %s42
      %s24 = sphi 0, %s38
      %s25 = sphi 0, %s34
      %s26 = sphi 0, %s23
      %s27 = sphi 0, %s24
      %s28 = sphi 0, %s25
      %s29 = sphi 0, %s26
      %s30 = sphi 0, %s27
      %s31 = sphi 0, %s28
      %s47 = sphi 0, %s49
      %s50 = sphi 0, %s47
      %s51 = sphi 0, %s50
      %s67 = sphi 0, %s51
      %s75 = sphi 0, %s77
      %s78 = sphi 0, %s75
      %s79 = sphi 0, %s78
      %s95 = sphi 0, %s79
      %s103 = sphi 0, %s105
      %s106 = sphi 0, %s103
      %s107 = sphi 0, %s106
      %s123 = sphi 0, %s107
      %s133 = sphi 0, %s135
      %s136 = sphi 0, %s133
      %s137 = sphi 0, %s136
      %s153 = sphi 0, %s137
    $region4: #{tpu_custom_call.1} parent=1 // loop_header_branch
      %19 = sbr.rel (%p17) target = $region8
    $region5: #{tpu_custom_call.1} parent=1 // loop_body
      %s21 = ssub.s32 %s16, 1
      %s22 = ssub.s32 %s16, 2
      %s32 = sadd.s32 1, %s25
      %p33 = scmp.ge.s32.totalorder %s32, 1
      %s34 = scalar_select %p33, 0, %s32
      %s35 = sadd.s32 1, %s24
      %s36 = scalar_select %p33, %s35, %s24
      %p37 = scmp.ge.s32.totalorder %s36, 1
      %s38 = scalar_select %p37, 0, %s36
      %s39 = sadd.s32 1, %s23
      %s40 = scalar_select %p37, %s39, %s23
      %p41 = scmp.ge.s32.totalorder %s40, 2
      %s42 = scalar_select %p41, 0, %s40
      %s43 = ssub.s32 %s23, %s42
      %s44 = ssub.s32 %s24, %s38
      %s45 = sor.u32 %s43, %s44
      %p46 = scmp.eq.s32.totalorder %s45, 0
      %s48 = sadd.s32 %s47, 1
      %s49 = scalar_select %p46, %s47, %s48
      %p52 = pneg %p46
      %p53 = scmp.eq.s32.totalorder %s16, 1
      %p54 = por %p52, %p53
      %p55 = scmp.ne.s32.totalorder %s47, %s50
      %p56 = scmp.eq.s32.totalorder %s16, 0
      %p57 = por %p55, %p56
      %p58 = scmp.ne.s32.totalorder %s47, %s50
      %p59 = scmp.eq.s32.totalorder %s21, 1
      %p60 = por %p58, %p59
      %p61 = scmp.ne.s32.totalorder %s50, %s51
      %p62 = scmp.eq.s32.totalorder %s21, 0
      %p63 = por %p61, %p62
      %p64 = scmp.ne.s32.totalorder %s50, %s51
      %p65 = scmp.eq.s32.totalorder %s22, 1
      %p66 = por %p64, %p65
      %p68 = scmp.ne.s32.totalorder %s51, %s67
      %p69 = scmp.eq.s32.totalorder %s22, 0
      %p70 = por %p68, %p69
      %s71 = ssub.s32 %s23, %s42
      %s72 = ssub.s32 %s25, %s34
      %s73 = sor.u32 %s71, %s72
      %p74 = scmp.eq.s32.totalorder %s73, 0
      %s76 = sadd.s32 %s75, 1
      %s77 = scalar_select %p74, %s75, %s76
      %p80 = pneg %p74
      %p81 = scmp.eq.s32.totalorder %s16, 1
      %p82 = por %p80, %p81
      %p83 = scmp.ne.s32.totalorder %s75, %s78
      %p84 = scmp.eq.s32.totalorder %s16, 0
      %p85 = por %p83, %p84
      %p86 = scmp.ne.s32.totalorder %s75, %s78
      %p87 = scmp.eq.s32.totalorder %s21, 1
      %p88 = por %p86, %p87
      %p89 = scmp.ne.s32.totalorder %s78, %s79
      %p90 = scmp.eq.s32.totalorder %s21, 0
      %p91 = por %p89, %p90
      %p92 = scmp.ne.s32.totalorder %s78, %s79
      %p93 = scmp.eq.s32.totalorder %s22, 1
      %p94 = por %p92, %p93
      %p96 = scmp.ne.s32.totalorder %s79, %s95
      %p97 = scmp.eq.s32.totalorder %s22, 0
      %p98 = por %p96, %p97
      %s99 = ssub.s32 %s23, %s42
      %s100 = ssub.s32 %s24, %s38
      %s101 = sor.u32 %s99, %s100
      %p102 = scmp.eq.s32.totalorder %s101, 0
      %s104 = sadd.s32 %s103, 1
      %s105 = scalar_select %p102, %s103, %s104
      %p108 = pneg %p102
      %p109 = scmp.eq.s32.totalorder %s16, 1
      %p110 = por %p108, %p109
      %p111 = scmp.ne.s32.totalorder %s103, %s106
      %p112 = scmp.eq.s32.totalorder %s16, 0
      %p113 = por %p111, %p112
      %p114 = scmp.ne.s32.totalorder %s103, %s106
      %p115 = scmp.eq.s32.totalorder %s21, 1
      %p116 = por %p114, %p115
      %p117 = scmp.ne.s32.totalorder %s106, %s107
      %p118 = scmp.eq.s32.totalorder %s21, 0
      %p119 = por %p117, %p118
      %p120 = scmp.ne.s32.totalorder %s106, %s107
      %p121 = scmp.eq.s32.totalorder %s22, 1
      %p122 = por %p120, %p121
      %p124 = scmp.ne.s32.totalorder %s107, %s123
      %p125 = scmp.eq.s32.totalorder %s22, 0
      %p126 = por %p124, %p125
      %s127 = ssub.s32 %s23, %s42
      %s128 = ssub.s32 %s24, %s38
      %s129 = sor.u32 %s127, %s128
      %s130 = ssub.s32 %s25, %s34
      %s131 = sor.u32 %s129, %s130
      %p132 = scmp.eq.s32.totalorder %s131, 0
      %s134 = sadd.s32 %s133, 1
      %s135 = scalar_select %p132, %s133, %s134
      %p138 = pneg %p132
      %p139 = scmp.eq.s32.totalorder %s16, 1
      %p140 = por %p138, %p139
      %p141 = scmp.ne.s32.totalorder %s133, %s136
      %p142 = scmp.eq.s32.totalorder %s16, 0
      %p143 = por %p141, %p142
      %p144 = scmp.ne.s32.totalorder %s133, %s136
      %p145 = scmp.eq.s32.totalorder %s21, 1
      %p146 = por %p144, %p145
      %p147 = scmp.ne.s32.totalorder %s136, %s137
      %p148 = scmp.eq.s32.totalorder %s21, 0
      %p149 = por %p147, %p148
      %p150 = scmp.ne.s32.totalorder %s136, %s137
      %p151 = scmp.eq.s32.totalorder %s22, 1
      %p152 = por %p150, %p151
      %p154 = scmp.ne.s32.totalorder %s137, %s153
      %p155 = scmp.eq.s32.totalorder %s22, 0
      %p156 = por %p154, %p155
      %p157 = scmp.le.s32.totalorder 1, %s16
      %p158 = scmp.lt.s32.totalorder %s16, 3
      %p159 = pnand %p157, %p158
      %p160 = pneg %p159
      // Predicated region
      $region9: #{tpu_custom_call.1} parent=5 // pred_check
        _
      $region10: #{tpu_custom_call.1} parent=5 // pred_check_branch
        %162 = sbr.rel (%p159) target = $region12
      $region11: #{tpu_custom_call.1} parent=5 // pred_region
        %s163 = ssub.s32 %s16, 1
      $region12: #{tpu_custom_call.1} parent=5 // pred_fallthru
        _
      %p164 = scmp.lt.s32.totalorder %s16, 2
      // Predicated region
      $region13: #{tpu_custom_call.1} parent=5 // pred_check
        %p165 = pneg %p164
      $region14: #{tpu_custom_call.1} parent=5 // pred_check_branch
        %167 = sbr.rel (%p165) target = $region16
      $region15: #{tpu_custom_call.1} parent=5 // pred_region
        // Predicated region
        $region17: #{tpu_custom_call.1} parent=15 // pred_check
          %p168 = pneg %p57
        $region18: #{tpu_custom_call.1} parent=15 // pred_check_branch
          %170 = sbr.rel (%p168) target = $region20
        $region19: #{tpu_custom_call.1} parent=15 // pred_region
          %s171 = smul.u32 32, %s24
          %p172 = scmp.lt.s32.totalorder %s23, 1
          %s173 = scalar_select %p172, %s23, 1
          %p174 = scmp.lt.s32.totalorder %s171, 31
          %s175 = scalar_select %p174, %s171, 31
          %s176 = smul.addr %s173, 32
          %s177 = sadd.s32 %s175, %s176
          %s178 = smul.addr %s177, 8
          %s179 = scalar_lea.vmem %s0, %s178
          %s180 = smul.u32 32, %s24
        $region20: #{tpu_custom_call.1} parent=15 // pred_fallthru
          _
        // Predicated region
        $region21: #{tpu_custom_call.1} parent=15 // pred_check
          %p181 = pneg %p85
        $region22: #{tpu_custom_call.1} parent=15 // pred_check_branch
          %183 = sbr.rel (%p181) target = $region24
        $region23: #{tpu_custom_call.1} parent=15 // pred_region
          %s184 = smul.u32 4, %s25
          %p185 = scmp.lt.s32.totalorder %s23, 1
          %s186 = scalar_select %p185, %s23, 1
          %p187 = scmp.lt.s32.totalorder %s184, 3
          %s188 = scalar_select %p187, %s184, 3
          %s189 = smul.addr %s186, 4
          %s190 = sadd.s32 %s188, %s189
          %s191 = smul.addr %s190, 8
          %s192 = scalar_lea.vmem %s1, %s191
          %s193 = smul.u32 4, %s25
        $region24: #{tpu_custom_call.1} parent=15 // pred_fallthru
          _
      $region16: #{tpu_custom_call.1} parent=5 // pred_fallthru
        _
      %p194 = scmp.le.s32.totalorder 1, %s16
      %p195 = scmp.lt.s32.totalorder %s16, 3
      %p196 = pnand %p194, %p195
      %p197 = pneg %p196
      // Predicated region
      $region25: #{tpu_custom_call.1} parent=5 // pred_check
        _
      $region26: #{tpu_custom_call.1} parent=5 // pred_check_branch
        %199 = sbr.rel (%p196) target = $region28
      $region27: #{tpu_custom_call.1} parent=5 // pred_region
        %s200 = ssub.s32 %s16, 1
        %s201 = smul.u32 32, %s27
        %p202 = scmp.lt.s32.totalorder %s26, 1
        %s203 = scalar_select %p202, %s26, 1
        %p204 = scmp.lt.s32.totalorder %s201, 31
        %s205 = scalar_select %p204, %s201, 31
        %s206 = smul.addr %s203, 32
        %s207 = sadd.s32 %s205, %s206
        %s208 = smul.addr %s207, 8
        %s209 = scalar_lea.vmem %s0, %s208
        %p210 = pneg %p63
        %p211 = pneg %p60
        %s212 = smul.u32 4, %s28
        %p213 = scmp.lt.s32.totalorder %s26, 1
        %s214 = scalar_select %p213, %s26, 1
        %p215 = scmp.lt.s32.totalorder %s212, 3
        %s216 = scalar_select %p215, %s212, 3
        %s217 = smul.addr %s214, 4
        %s218 = sadd.s32 %s216, %s217
        %s219 = smul.addr %s218, 8
        %s220 = scalar_lea.vmem %s1, %s219
        %p221 = pneg %p91
        %p222 = pneg %p88
        %p223 = pneg %p119
        %p224 = pneg %p116
        %s225 = sand.u32 %s106, 1
        %s226 = scalar_lea.sflag [#allocation4], %s225
        %s227 = sand.u32 %s106, 1
        %s228 = smul.addr %s227, 2
        %s229 = scalar_lea.vmem [#allocation3], %s228
        %p230 = pneg %p149
        %p231 = pneg %p146
        %s232 = sand.u32 %s136, 1
        %s233 = scalar_lea.sflag [#allocation6], %s232
        %s234 = sand.u32 %s136, 1
        %s235 = smul.addr %s234, 4
        %s236 = scalar_lea.vmem [#allocation5], %s235
        %s237 = smul.u32 32, %s27
        %p238 = scmp.lt.s32.totalorder %s26, 1
        %s239 = scalar_select %p238, %s26, 1
        %p240 = scmp.lt.s32.totalorder %s237, 31
        %s241 = scalar_select %p240, %s237, 31
        %s242 = smul.addr %s239, 32
        %s243 = sadd.s32 %s241, %s242
        %s244 = smul.addr %s243, 8
        %s245 = scalar_lea.vmem %s0, %s244
        %s246 = smul.u32 32, %s27
        %s247 = smul.u32 4, %s28
        %p248 = scmp.lt.s32.totalorder %s26, 1
        %s249 = scalar_select %p248, %s26, 1
        %p250 = scmp.lt.s32.totalorder %s247, 3
        %s251 = scalar_select %p250, %s247, 3
        %s252 = smul.addr %s249, 4
        %s253 = sadd.s32 %s251, %s252
        %s254 = smul.addr %s253, 8
        %s255 = scalar_lea.vmem %s1, %s254
        %s256 = smul.u32 4, %s28
        %s257 = smul.u32 2, %s27
        %s258 = smul.u32 4, %s28
        %v259 = vld [vmem:[%s245] sm:$0xff]
        %v260 = vld [vmem:[%s245 + $0x8] sm:$0xff]
        %v261 = vld [vmem:[%s245 + $0x10] sm:$0xff]
        %v262 = vld [vmem:[%s245 + $0x18] sm:$0xff]
        %v263 = vld [vmem:[%s245 + $0x20] sm:$0xff]
        %v264 = vld [vmem:[%s245 + $0x28] sm:$0xff]
        %v265 = vld [vmem:[%s245 + $0x30] sm:$0xff]
        %v266 = vld [vmem:[%s245 + $0x38] sm:$0xff]
        %v267 = vld [vmem:[%s245 + $0x40] sm:$0xff]
        %v268 = vld [vmem:[%s245 + $0x48] sm:$0xff]
        %v269 = vld [vmem:[%s245 + $0x50] sm:$0xff]
        %v270 = vld [vmem:[%s245 + $0x58] sm:$0xff]
        %v271 = vld [vmem:[%s245 + $0x60] sm:$0xff]
        %v272 = vld [vmem:[%s245 + $0x68] sm:$0xff]
        %v273 = vld [vmem:[%s245 + $0x70] sm:$0xff]
        %v274 = vld [vmem:[%s245 + $0x78] sm:$0xff]
        %v275 = vld [vmem:[%s245 + $0x80] sm:$0xff]
        %v276 = vld [vmem:[%s245 + $0x88] sm:$0xff]
        %v277 = vld [vmem:[%s245 + $0x90] sm:$0xff]
        %v278 = vld [vmem:[%s245 + $0x98] sm:$0xff]
        %v279 = vld [vmem:[%s245 + $0xa0] sm:$0xff]
        %v280 = vld [vmem:[%s245 + $0xa8] sm:$0xff]
        %v281 = vld [vmem:[%s245 + $0xb0] sm:$0xff]
        %v282 = vld [vmem:[%s245 + $0xb8] sm:$0xff]
        %v283 = vld [vmem:[%s245 + $0xc0] sm:$0xff]
        %v284 = vld [vmem:[%s245 + $0xc8] sm:$0xff]
        %v285 = vld [vmem:[%s245 + $0xd0] sm:$0xff]
        %v286 = vld [vmem:[%s245 + $0xd8] sm:$0xff]
        %v287 = vld [vmem:[%s245 + $0xe0] sm:$0xff]
        %v288 = vld [vmem:[%s245 + $0xe8] sm:$0xff]
        %v289 = vld [vmem:[%s245 + $0xf0] sm:$0xff]
        %v290 = vld [vmem:[%s245 + $0xf8] sm:$0xff]
        %v291 = vld [vmem:[%s255] sm:$0xff]
        %v292 = vld [vmem:[%s255 + $0x8] sm:$0xff]
        %vm293 = vcmask 64512
        %v295 = vsel %vm293, %v259, 0
        %v298 = vsel %vm293, %v260, 0
        %v301 = vsel %vm293, %v261, 0
        %v304 = vsel %vm293, %v262, 0
        %v307 = vsel %vm293, %v263, 0
        %v310 = vsel %vm293, %v264, 0
        %v313 = vsel %vm293, %v265, 0
        %v316 = vsel %vm293, %v266, 0
        %v319 = vsel %vm293, %v267, 0
        %v322 = vsel %vm293, %v268, 0
        %v325 = vsel %vm293, %v269, 0
        %v328 = vsel %vm293, %v270, 0
        %v331 = vsel %vm293, %v271, 0
        %v334 = vsel %vm293, %v272, 0
        %v337 = vsel %vm293, %v273, 0
        %v340 = vsel %vm293, %v274, 0
        %v343 = vsel %vm293, %v275, 0
        %v346 = vsel %vm293, %v276, 0
        %v349 = vsel %vm293, %v277, 0
        %v352 = vsel %vm293, %v278, 0
        %v355 = vsel %vm293, %v279, 0
        %v358 = vsel %vm293, %v280, 0
        %v361 = vsel %vm293, %v281, 0
        %v364 = vsel %vm293, %v282, 0
        %v367 = vsel %vm293, %v283, 0
        %v370 = vsel %vm293, %v284, 0
        %v373 = vsel %vm293, %v285, 0
        %v376 = vsel %vm293, %v286, 0
        %v379 = vsel %vm293, %v287, 0
        %v382 = vsel %vm293, %v288, 0
        %v385 = vsel %vm293, %v289, 0
        %v388 = vsel %vm293, %v290, 0
        %390 = vmatprep.subr.mxu0 %v292
        %391 = vmatpush1.msra.mxu0 %v291
        %392 = vmatprep.subr.mxu0 0.0
        %393 = vmatpush1.msra.mxu0 0.0
        %394 = vmatprep.subr.mxu0 0.0
        %395 = vmatpush1.msra.mxu0 0.0
        %396 = vmatprep.subr.mxu0 0.0
        %397 = vmatpush1.msra.mxu0 0.0
        %398 = vmatprep.subr.mxu0 0.0
        %399 = vmatpush1.msra.mxu0 0.0
        %400 = vmatprep.subr.mxu0 0.0
        %401 = vmatpush1.msra.mxu0 0.0
        %402 = vmatprep.subr.mxu0 0.0
        %403 = vmatpush1.msra.mxu0 0.0
        %404 = vmatprep.subr.mxu0 0.0
        %405 = vmatpush1.msra.mxu0 0.0
        %406 = vmatprep.subr.mxu0 0.0
        %407 = vmatpush1.msra.mxu0 0.0
        %408 = vmatprep.subr.mxu0 0.0
        %409 = vmatpush1.msra.mxu0 0.0
        %410 = vmatprep.subr.mxu0 0.0
        %411 = vmatpush1.msra.mxu0 0.0
        %412 = vmatprep.subr.mxu0 0.0
        %413 = vmatpush1.msra.mxu0 0.0
        %414 = vmatprep.subr.mxu0 0.0
        %415 = vmatpush1.msra.mxu0 0.0
        %416 = vmatprep.subr.mxu0 0.0
        %417 = vmatpush1.msra.mxu0 0.0
        %418 = vmatprep.subr.mxu0 0.0
        %419 = vmatpush1.msra.mxu0 0.0
        %420 = vmatprep.subr.mxu0 0.0
        %421 = vmatpush1.msra.mxu0 0.0
        %422 = vmatprep.subr.mxu0 0.0
        %423 = vmatpush1.msra.mxu0 0.0
        %424 = vmatprep.subr.mxu0 0.0
        %425 = vmatpush1.msra.mxu0 0.0
        %426 = vmatprep.subr.mxu0 0.0
        %427 = vmatpush1.msra.mxu0 0.0
        %428 = vmatprep.subr.mxu0 0.0
        %429 = vmatpush1.msra.mxu0 0.0
        %430 = vmatprep.subr.mxu0 0.0
        %431 = vmatpush1.msra.mxu0 0.0
        %432 = vmatprep.subr.mxu0 0.0
        %433 = vmatpush1.msra.mxu0 0.0
        %434 = vmatprep.subr.mxu0 0.0
        %435 = vmatpush1.msra.mxu0 0.0
        %436 = vmatprep.subr.mxu0 0.0
        %437 = vmatpush1.msra.mxu0 0.0
        %438 = vmatprep.subr.mxu0 0.0
        %439 = vmatpush1.msra.mxu0 0.0
        %440 = vmatprep.subr.mxu0 0.0
        %441 = vmatpush1.msra.mxu0 0.0
        %442 = vmatprep.subr.mxu0 0.0
        %443 = vmatpush1.msra.mxu0 0.0
        %444 = vmatprep.subr.mxu0 0.0
        %445 = vmatpush1.msra.mxu0 0.0
        %446 = vmatprep.subr.mxu0 0.0
        %447 = vmatpush1.msra.mxu0 0.0
        %448 = vmatprep.subr.mxu0 0.0
        %449 = vmatpush1.msra.mxu0 0.0
        %450 = vmatprep.subr.mxu0 0.0
        %451 = vmatpush1.msra.mxu0 0.0
        %452 = vmatprep.subr.mxu0 0.0
        %453 = vmatpush1.msra.mxu0 0.0
        %454 = vmatprep.mubr.f32.mxu0 0.0
        %455 = vmatmul.mubr.f32.gmra.mrb[0].mxu0 %v295
        %v456 = vpop.f32.mrb[0].mxu0
        %v457 = vadd.f32 0.0, %v456
        %v458 = vpop.f32.mrb[0].mxu0
        %v459 = vadd.f32 0.0, %v458
        %460 = vmatprep.mubr.f32.mxu0 0.0
        %461 = vmatmul.mubr.f32.gmra.mrb[0].mxu0 %v298
        %v462 = vpop.f32.mrb[0].mxu0
        %v463 = vadd.f32 0.0, %v462
        %v464 = vpop.f32.mrb[0].mxu0
        %v465 = vadd.f32 0.0, %v464
        %466 = vmatprep.mubr.f32.mxu0 0.0
        %467 = vmatmul.mubr.f32.gmra.mrb[0].mxu0 %v301
        %v468 = vpop.f32.mrb[0].mxu0
        %v469 = vadd.f32 0.0, %v468
        %v470 = vpop.f32.mrb[0].mxu0
        %v471 = vadd.f32 0.0, %v470
        %472 = vmatprep.mubr.f32.mxu0 0.0
        %473 = vmatmul.mubr.f32.gmra.mrb[0].mxu0 %v304
        %v474 = vpop.f32.mrb[0].mxu0
        %v475 = vadd.f32 0.0, %v474
        %v476 = vpop.f32.mrb[0].mxu0
        %v477 = vadd.f32 0.0, %v476
        %478 = vmatprep.mubr.f32.mxu0 0.0
        %479 = vmatmul.mubr.f32.gmra.mrb[0].mxu0 %v307
        %v480 = vpop.f32.mrb[0].mxu0
        %v481 = vadd.f32 0.0, %v480
        %v482 = vpop.f32.mrb[0].mxu0
        %v483 = vadd.f32 0.0, %v482
        %484 = vmatprep.mubr.f32.mxu0 0.0
        %485 = vmatmul.mubr.f32.gmra.mrb[0].mxu0 %v310
        %v486 = vpop.f32.mrb[0].mxu0
        %v487 = vadd.f32 0.0, %v486
        %v488 = vpop.f32.mrb[0].mxu0
        %v489 = vadd.f32 0.0, %v488
        %490 = vmatprep.mubr.f32.mxu0 0.0
        %491 = vmatmul.mubr.f32.gmra.mrb[0].mxu0 %v313
        %v492 = vpop.f32.mrb[0].mxu0
        %v493 = vadd.f32 0.0, %v492
        %v494 = vpop.f32.mrb[0].mxu0
        %v495 = vadd.f32 0.0, %v494
        %496 = vmatprep.mubr.f32.mxu0 0.0
        %497 = vmatmul.mubr.f32.gmra.mrb[0].mxu0 %v316
        %v498 = vpop.f32.mrb[0].mxu0
        %v499 = vadd.f32 0.0, %v498
        %v500 = vpop.f32.mrb[0].mxu0
        %v501 = vadd.f32 0.0, %v500
        %502 = vmatprep.mubr.f32.mxu0 0.0
        %503 = vmatmul.mubr.f32.gmra.mrb[0].mxu0 %v319
        %v504 = vpop.f32.mrb[0].mxu0
        %v505 = vadd.f32 0.0, %v504
        %v506 = vpop.f32.mrb[0].mxu0
        %v507 = vadd.f32 0.0, %v506
        %508 = vmatprep.mubr.f32.mxu0 0.0
        %509 = vmatmul.mubr.f32.gmra.mrb[0].mxu0 %v322
        %v510 = vpop.f32.mrb[0].mxu0
        %v511 = vadd.f32 0.0, %v510
        %v512 = vpop.f32.mrb[0].mxu0
        %v513 = vadd.f32 0.0, %v512
        %514 = vmatprep.mubr.f32.mxu0 0.0
        %515 = vmatmul.mubr.f32.gmra.mrb[0].mxu0 %v325
        %v516 = vpop.f32.mrb[0].mxu0
        %v517 = vadd.f32 0.0, %v516
        %v518 = vpop.f32.mrb[0].mxu0
        %v519 = vadd.f32 0.0, %v518
        %520 = vmatprep.mubr.f32.mxu0 0.0
        %521 = vmatmul.mubr.f32.gmra.mrb[0].mxu0 %v328
        %v522 = vpop.f32.mrb[0].mxu0
        %v523 = vadd.f32 0.0, %v522
        %v524 = vpop.f32.mrb[0].mxu0
        %v525 = vadd.f32 0.0, %v524
        %526 = vmatprep.mubr.f32.mxu0 0.0
        %527 = vmatmul.mubr.f32.gmra.mrb[0].mxu0 %v331
        %v528 = vpop.f32.mrb[0].mxu0
        %v529 = vadd.f32 0.0, %v528
        %v530 = vpop.f32.mrb[0].mxu0
        %v531 = vadd.f32 0.0, %v530
        %532 = vmatprep.mubr.f32.mxu0 0.0
        %533 = vmatmul.mubr.f32.gmra.mrb[0].mxu0 %v334
        %v534 = vpop.f32.mrb[0].mxu0
        %v535 = vadd.f32 0.0, %v534
        %v536 = vpop.f32.mrb[0].mxu0
        %v537 = vadd.f32 0.0, %v536
        %538 = vmatprep.mubr.f32.mxu0 0.0
        %539 = vmatmul.mubr.f32.gmra.mrb[0].mxu0 %v337
        %v540 = vpop.f32.mrb[0].mxu0
        %v541 = vadd.f32 0.0, %v540
        %v542 = vpop.f32.mrb[0].mxu0
        %v543 = vadd.f32 0.0, %v542
        %544 = vmatprep.mubr.f32.mxu0 0.0
        %545 = vmatmul.mubr.f32.gmra.mrb[0].mxu0 %v340
        %v546 = vpop.f32.mrb[0].mxu0
        %v547 = vadd.f32 0.0, %v546
        %v548 = vpop.f32.mrb[0].mxu0
        %v549 = vadd.f32 0.0, %v548
        %550 = vmatprep.mubr.f32.mxu0 0.0
        %551 = vmatmul.mubr.f32.gmra.mrb[0].mxu0 %v343
        %v552 = vpop.f32.mrb[0].mxu0
        %v553 = vadd.f32 0.0, %v552
        %v554 = vpop.f32.mrb[0].mxu0
        %v555 = vadd.f32 0.0, %v554
        %556 = vmatprep.mubr.f32.mxu0 0.0
        %557 = vmatmul.mubr.f32.gmra.mrb[0].mxu0 %v346
        %v558 = vpop.f32.mrb[0].mxu0
        %v559 = vadd.f32 0.0, %v558
        %v560 = vpop.f32.mrb[0].mxu0
        %v561 = vadd.f32 0.0, %v560
        %562 = vmatprep.mubr.f32.mxu0 0.0
        %563 = vmatmul.mubr.f32.gmra.mrb[0].mxu0 %v349
        %v564 = vpop.f32.mrb[0].mxu0
        %v565 = vadd.f32 0.0, %v564
        %v566 = vpop.f32.mrb[0].mxu0
        %v567 = vadd.f32 0.0, %v566
        %568 = vmatprep.mubr.f32.mxu0 0.0
        %569 = vmatmul.mubr.f32.gmra.mrb[0].mxu0 %v352
        %v570 = vpop.f32.mrb[0].mxu0
        %v571 = vadd.f32 0.0, %v570
        %v572 = vpop.f32.mrb[0].mxu0
        %v573 = vadd.f32 0.0, %v572
        %574 = vmatprep.mubr.f32.mxu0 0.0
        %575 = vmatmul.mubr.f32.gmra.mrb[0].mxu0 %v355
        %v576 = vpop.f32.mrb[0].mxu0
        %v577 = vadd.f32 0.0, %v576
        %v578 = vpop.f32.mrb[0].mxu0
        %v579 = vadd.f32 0.0, %v578
        %580 = vmatprep.mubr.f32.mxu0 0.0
        %581 = vmatmul.mubr.f32.gmra.mrb[0].mxu0 %v358
        %v582 = vpop.f32.mrb[0].mxu0
        %v583 = vadd.f32 0.0, %v582
        %v584 = vpop.f32.mrb[0].mxu0
        %v585 = vadd.f32 0.0, %v584
        %586 = vmatprep.mubr.f32.mxu0 0.0
        %587 = vmatmul.mubr.f32.gmra.mrb[0].mxu0 %v361
        %v588 = vpop.f32.mrb[0].mxu0
        %v589 = vadd.f32 0.0, %v588
        %v590 = vpop.f32.mrb[0].mxu0
        %v591 = vadd.f32 0.0, %v590
        %592 = vmatprep.mubr.f32.mxu0 0.0
        %593 = vmatmul.mubr.f32.gmra.mrb[0].mxu0 %v364
        %v594 = vpop.f32.mrb[0].mxu0
        %v595 = vadd.f32 0.0, %v594
        %v596 = vpop.f32.mrb[0].mxu0
        %v597 = vadd.f32 0.0, %v596
        %598 = vmatprep.mubr.f32.mxu0 0.0
        %599 = vmatmul.mubr.f32.gmra.mrb[0].mxu0 %v367
        %v600 = vpop.f32.mrb[0].mxu0
        %v601 = vadd.f32 0.0, %v600
        %v602 = vpop.f32.mrb[0].mxu0
        %v603 = vadd.f32 0.0, %v602
        %604 = vmatprep.mubr.f32.mxu0 0.0
        %605 = vmatmul.mubr.f32.gmra.mrb[0].mxu0 %v370
        %v606 = vpop.f32.mrb[0].mxu0
        %v607 = vadd.f32 0.0, %v606
        %v608 = vpop.f32.mrb[0].mxu0
        %v609 = vadd.f32 0.0, %v608
        %610 = vmatprep.mubr.f32.mxu0 0.0
        %611 = vmatmul.mubr.f32.gmra.mrb[0].mxu0 %v373
        %v612 = vpop.f32.mrb[0].mxu0
        %v613 = vadd.f32 0.0, %v612
        %v614 = vpop.f32.mrb[0].mxu0
        %v615 = vadd.f32 0.0, %v614
        %616 = vmatprep.mubr.f32.mxu0 0.0
        %617 = vmatmul.mubr.f32.gmra.mrb[0].mxu0 %v376
        %v618 = vpop.f32.mrb[0].mxu0
        %v619 = vadd.f32 0.0, %v618
        %v620 = vpop.f32.mrb[0].mxu0
        %v621 = vadd.f32 0.0, %v620
        %622 = vmatprep.mubr.f32.mxu0 0.0
        %623 = vmatmul.mubr.f32.gmra.mrb[0].mxu0 %v379
        %v624 = vpop.f32.mrb[0].mxu0
        %v625 = vadd.f32 0.0, %v624
        %v626 = vpop.f32.mrb[0].mxu0
        %v627 = vadd.f32 0.0, %v626
        %628 = vmatprep.mubr.f32.mxu0 0.0
        %629 = vmatmul.mubr.f32.gmra.mrb[0].mxu0 %v382
        %v630 = vpop.f32.mrb[0].mxu0
        %v631 = vadd.f32 0.0, %v630
        %v632 = vpop.f32.mrb[0].mxu0
        %v633 = vadd.f32 0.0, %v632
        %634 = vmatprep.mubr.f32.mxu0 0.0
        %635 = vmatmul.mubr.f32.gmra.mrb[0].mxu0 %v385
        %v636 = vpop.f32.mrb[0].mxu0
        %v637 = vadd.f32 0.0, %v636
        %v638 = vpop.f32.mrb[0].mxu0
        %v639 = vadd.f32 0.0, %v638
        %640 = vmatprep.mubr.f32.mxu0 0.0
        %641 = vmatmul.mubr.f32.gmra.mrb[0].mxu0 %v388
        %v642 = vpop.f32.mrb[0].mxu0
        %v643 = vadd.f32 0.0, %v642
        %v644 = vpop.f32.mrb[0].mxu0
        %v645 = vadd.f32 0.0, %v644
        %646 = vdwg.mxu0
        %v647 = vmin.f32 %v457, %v469
        %v648 = vmin.f32 %v463, %v475
        %v649 = vmin.f32 %v647, %v481
        %v650 = vmin.f32 %v648, %v487
        %v651 = vmin.f32 %v649, %v493
        %v652 = vmin.f32 %v650, %v499
        %v653 = vmin.f32 %v651, %v505
        %v654 = vmin.f32 %v652, %v511
        %v655 = vmin.f32 %v653, %v517
        %v656 = vmin.f32 %v654, %v523
        %v657 = vmin.f32 %v655, %v529
        %v658 = vmin.f32 %v656, %v535
        %v659 = vmin.f32 %v657, %v541
        %v660 = vmin.f32 %v658, %v547
        %v661 = vmin.f32 %v659, %v553
        %v662 = vmin.f32 %v660, %v559
        %v663 = vmin.f32 %v661, %v565
        %v664 = vmin.f32 %v662, %v571
        %v665 = vmin.f32 %v663, %v577
        %v666 = vmin.f32 %v664, %v583
        %v667 = vmin.f32 %v665, %v589
        %v668 = vmin.f32 %v666, %v595
        %v669 = vmin.f32 %v667, %v601
        %v670 = vmin.f32 %v668, %v607
        %v671 = vmin.f32 %v669, %v613
        %v672 = vmin.f32 %v670, %v619
        %v673 = vmin.f32 %v671, %v625
        %v674 = vmin.f32 %v672, %v631
        %v675 = vmin.f32 %v673, %v637
        %v676 = vmin.f32 %v674, %v643
        %v677 = vmin.f32 %v675, %v676
        %v678 = vrot.slane %v677, 4
        %v679 = vmin.f32 %v677, %v678
        %v680 = vrot.slane %v679, 2
        %v681 = vmin.f32 %v679, %v680
        %v682 = vrot.slane %v681, 1
        %v683 = vmin.f32 %v681, %v682
        %v684 = vmin.f32 %v459, %v471
        %v685 = vmin.f32 %v465, %v477
        %v686 = vmin.f32 %v684, %v483
        %v687 = vmin.f32 %v685, %v489
        %v688 = vmin.f32 %v686, %v495
        %v689 = vmin.f32 %v687, %v501
        %v690 = vmin.f32 %v688, %v507
        %v691 = vmin.f32 %v689, %v513
        %v692 = vmin.f32 %v690, %v519
        %v693 = vmin.f32 %v691, %v525
        %v694 = vmin.f32 %v692, %v531
        %v695 = vmin.f32 %v693, %v537
        %v696 = vmin.f32 %v694, %v543
        %v697 = vmin.f32 %v695, %v549
        %v698 = vmin.f32 %v696, %v555
        %v699 = vmin.f32 %v697, %v561
        %v700 = vmin.f32 %v698, %v567
        %v701 = vmin.f32 %v699, %v573
        %v702 = vmin.f32 %v700, %v579
        %v703 = vmin.f32 %v701, %v585
        %v704 = vmin.f32 %v702, %v591
        %v705 = vmin.f32 %v703, %v597
        %v706 = vmin.f32 %v704, %v603
        %v707 = vmin.f32 %v705, %v609
        %v708 = vmin.f32 %v706, %v615
        %v709 = vmin.f32 %v707, %v621
        %v710 = vmin.f32 %v708, %v627
        %v711 = vmin.f32 %v709, %v633
        %v712 = vmin.f32 %v710, %v639
        %v713 = vmin.f32 %v711, %v645
        %v714 = vmin.f32 %v712, %v713
        %v715 = vrot.slane %v714, 4
        %v716 = vmin.f32 %v714, %v715
        %v717 = vrot.slane %v716, 2
        %v718 = vmin.f32 %v716, %v717
        %v719 = vrot.slane %v718, 1
        %v720 = vmin.f32 %v718, %v719
        %v723 = vcombine.low %v683, %v720
        %v725 = vunpack.c.l.s4 1966171168
        %v726 = vunpack.c.0.s8 %v725
        %v727 = vlaneseq
        %v728 = vshrl.u32 %v727, 7
        %v729 = vsub.s32 %v726, %v728
        %v730 = vrot.slane %v723, %v729
        %v732 = vunpack.c.l.s4 1966171168
        %v733 = vunpack.c.0.s8 %v732
        %v734 = vlaneseq
        %v735 = vshrl.u32 %v734, 7
        %v736 = vsub.s32 %v733, %v735
        %v737 = vrot.slane %v730, %v736
        %v739 = vlaneseq
        %vm740 = vcmp.ge.s32.totalorder %v739, 0
        %vm741 = vcmp.lt.s32.totalorder %v739, 256
        %vm742 = vmand %vm740, %vm741
        %743 = vst.msk [vmem:[%s236] sm:$0x3] %vm742, %v737
        %v744 = vmin.f32 %v457, %v459
        %v745 = vmin.f32 %v463, %v465
        %v746 = vmin.f32 %v469, %v471
        %v747 = vmin.f32 %v475, %v477
        %v748 = vmin.f32 %v481, %v483
        %v749 = vmin.f32 %v487, %v489
        %v750 = vmin.f32 %v493, %v495
        %v751 = vmin.f32 %v499, %v501
        %v752 = vmin.f32 %v505, %v507
        %v753 = vmin.f32 %v511, %v513
        %v754 = vmin.f32 %v517, %v519
        %v755 = vmin.f32 %v523, %v525
        %v756 = vmin.f32 %v529, %v531
        %v757 = vmin.f32 %v535, %v537
        %v758 = vmin.f32 %v541, %v543
        %v759 = vmin.f32 %v547, %v549
        %v760 = vmin.f32 %v553, %v555
        %v761 = vmin.f32 %v559, %v561
        %v762 = vmin.f32 %v565, %v567
        %v763 = vmin.f32 %v571, %v573
        %v764 = vmin.f32 %v577, %v579
        %v765 = vmin.f32 %v583, %v585
        %v766 = vmin.f32 %v589, %v591
        %v767 = vmin.f32 %v595, %v597
        %v768 = vmin.f32 %v601, %v603
        %v769 = vmin.f32 %v607, %v609
        %v770 = vmin.f32 %v613, %v615
        %v771 = vmin.f32 %v619, %v621
        %v772 = vmin.f32 %v625, %v627
        %v773 = vmin.f32 %v631, %v633
        %v774 = vmin.f32 %v637, %v639
        %v775 = vmin.f32 %v643, %v645
        %v776 = vld [vmem:[%s255 + $0x10] sm:$0xff]
        %v777 = vld [vmem:[%s255 + $0x18] sm:$0xff]
        %778 = vmatprep.subr.mxu0 %v777
        %779 = vmatpush1.msra.mxu0 %v776
        %780 = vmatprep.subr.mxu0 0.0
        %781 = vmatpush1.msra.mxu0 0.0
        %782 = vmatprep.subr.mxu0 0.0
        %783 = vmatpush1.msra.mxu0 0.0
        %784 = vmatprep.subr.mxu0 0.0
        %785 = vmatpush1.msra.mxu0 0.0
        %786 = vmatprep.subr.mxu0 0.0
        %787 = vmatpush1.msra.mxu0 0.0
        %788 = vmatprep.subr.mxu0 0.0
        %789 = vmatpush1.msra.mxu0 0.0
        %790 = vmatprep.subr.mxu0 0.0
        %791 = vmatpush1.msra.mxu0 0.0
        %792 = vmatprep.subr.mxu0 0.0
        %793 = vmatpush1.msra.mxu0 0.0
        %794 = vmatprep.subr.mxu0 0.0
        %795 = vmatpush1.msra.mxu0 0.0
        %796 = vmatprep.subr.mxu0 0.0
        %797 = vmatpush1.msra.mxu0 0.0
        %798 = vmatprep.subr.mxu0 0.0
        %799 = vmatpush1.msra.mxu0 0.0
        %800 = vmatprep.subr.mxu0 0.0
        %801 = vmatpush1.msra.mxu0 0.0
        %802 = vmatprep.subr.mxu0 0.0
        %803 = vmatpush1.msra.mxu0 0.0
        %804 = vmatprep.subr.mxu0 0.0
        %805 = vmatpush1.msra.mxu0 0.0
        %806 = vmatprep.subr.mxu0 0.0
        %807 = vmatpush1.msra.mxu0 0.0
        %808 = vmatprep.subr.mxu0 0.0
        %809 = vmatpush1.msra.mxu0 0.0
        %810 = vmatprep.subr.mxu0 0.0
        %811 = vmatpush1.msra.mxu0 0.0
        %812 = vmatprep.subr.mxu0 0.0
        %813 = vmatpush1.msra.mxu0 0.0
        %814 = vmatprep.subr.mxu0 0.0
        %815 = vmatpush1.msra.mxu0 0.0
        %816 = vmatprep.subr.mxu0 0.0
        %817 = vmatpush1.msra.mxu0 0.0
        %818 = vmatprep.subr.mxu0 0.0
        %819 = vmatpush1.msra.mxu0 0.0
        %820 = vmatprep.subr.mxu0 0.0
        %821 = vmatpush1.msra.mxu0 0.0
        %822 = vmatprep.subr.mxu0 0.0
        %823 = vmatpush1.msra.mxu0 0.0
        %824 = vmatprep.subr.mxu0 0.0
        %825 = vmatpush1.msra.mxu0 0.0
        %826 = vmatprep.subr.mxu0 0.0
        %827 = vmatpush1.msra.mxu0 0.0
        %828 = vmatprep.subr.mxu0 0.0
        %829 = vmatpush1.msra.mxu0 0.0
        %830 = vmatprep.subr.mxu0 0.0
        %831 = vmatpush1.msra.mxu0 0.0
        %832 = vmatprep.subr.mxu0 0.0
        %833 = vmatpush1.msra.mxu0 0.0
        %834 = vmatprep.subr.mxu0 0.0
        %835 = vmatpush1.msra.mxu0 0.0
        %836 = vmatprep.subr.mxu0 0.0
        %837 = vmatpush1.msra.mxu0 0.0
        %838 = vmatprep.subr.mxu0 0.0
        %839 = vmatpush1.msra.mxu0 0.0
        %840 = vmatprep.subr.mxu0 0.0
        %841 = vmatpush1.msra.mxu0 0.0
        %842 = vmatprep.mubr.f32.mxu0 0.0
        %843 = vmatmul.mubr.f32.gmra.mrb[0].mxu0 %v295
        %v844 = vpop.f32.mrb[0].mxu0
        %v845 = vadd.f32 0.0, %v844
        %v846 = vpop.f32.mrb[0].mxu0
        %v847 = vadd.f32 0.0, %v846
        %848 = vmatprep.mubr.f32.mxu0 0.0
        %849 = vmatmul.mubr.f32.gmra.mrb[0].mxu0 %v298
        %v850 = vpop.f32.mrb[0].mxu0
        %v851 = vadd.f32 0.0, %v850
        %v852 = vpop.f32.mrb[0].mxu0
        %v853 = vadd.f32 0.0, %v852
        %854 = vmatprep.mubr.f32.mxu0 0.0
        %855 = vmatmul.mubr.f32.gmra.mrb[0].mxu0 %v301
        %v856 = vpop.f32.mrb[0].mxu0
        %v857 = vadd.f32 0.0, %v856
        %v858 = vpop.f32.mrb[0].mxu0
        %v859 = vadd.f32 0.0, %v858
        %860 = vmatprep.mubr.f32.mxu0 0.0
        %861 = vmatmul.mubr.f32.gmra.mrb[0].mxu0 %v304
        %v862 = vpop.f32.mrb[0].mxu0
        %v863 = vadd.f32 0.0, %v862
        %v864 = vpop.f32.mrb[0].mxu0
        %v865 = vadd.f32 0.0, %v864
        %866 = vmatprep.mubr.f32.mxu0 0.0
        %867 = vmatmul.mubr.f32.gmra.mrb[0].mxu0 %v307
        %v868 = vpop.f32.mrb[0].mxu0
        %v869 = vadd.f32 0.0, %v868
        %v870 = vpop.f32.mrb[0].mxu0
        %v871 = vadd.f32 0.0, %v870
        %872 = vmatprep.mubr.f32.mxu0 0.0
        %873 = vmatmul.mubr.f32.gmra.mrb[0].mxu0 %v310
        %v874 = vpop.f32.mrb[0].mxu0
        %v875 = vadd.f32 0.0, %v874
        %v876 = vpop.f32.mrb[0].mxu0
        %v877 = vadd.f32 0.0, %v876
        %878 = vmatprep.mubr.f32.mxu0 0.0
        %879 = vmatmul.mubr.f32.gmra.mrb[0].mxu0 %v313
        %v880 = vpop.f32.mrb[0].mxu0
        %v881 = vadd.f32 0.0, %v880
        %v882 = vpop.f32.mrb[0].mxu0
        %v883 = vadd.f32 0.0, %v882
        %884 = vmatprep.mubr.f32.mxu0 0.0
        %885 = vmatmul.mubr.f32.gmra.mrb[0].mxu0 %v316
        %v886 = vpop.f32.mrb[0].mxu0
        %v887 = vadd.f32 0.0, %v886
        %v888 = vpop.f32.mrb[0].mxu0
        %v889 = vadd.f32 0.0, %v888
        %890 = vmatprep.mubr.f32.mxu0 0.0
        %891 = vmatmul.mubr.f32.gmra.mrb[0].mxu0 %v319
        %v892 = vpop.f32.mrb[0].mxu0
        %v893 = vadd.f32 0.0, %v892
        %v894 = vpop.f32.mrb[0].mxu0
        %v895 = vadd.f32 0.0, %v894
        %896 = vmatprep.mubr.f32.mxu0 0.0
        %897 = vmatmul.mubr.f32.gmra.mrb[0].mxu0 %v322
        %v898 = vpop.f32.mrb[0].mxu0
        %v899 = vadd.f32 0.0, %v898
        %v900 = vpop.f32.mrb[0].mxu0
        %v901 = vadd.f32 0.0, %v900
        %902 = vmatprep.mubr.f32.mxu0 0.0
        %903 = vmatmul.mubr.f32.gmra.mrb[0].mxu0 %v325
        %v904 = vpop.f32.mrb[0].mxu0
        %v905 = vadd.f32 0.0, %v904
        %v906 = vpop.f32.mrb[0].mxu0
        %v907 = vadd.f32 0.0, %v906
        %908 = vmatprep.mubr.f32.mxu0 0.0
        %909 = vmatmul.mubr.f32.gmra.mrb[0].mxu0 %v328
        %v910 = vpop.f32.mrb[0].mxu0
        %v911 = vadd.f32 0.0, %v910
        %v912 = vpop.f32.mrb[0].mxu0
        %v913 = vadd.f32 0.0, %v912
        %914 = vmatprep.mubr.f32.mxu0 0.0
        %915 = vmatmul.mubr.f32.gmra.mrb[0].mxu0 %v331
        %v916 = vpop.f32.mrb[0].mxu0
        %v917 = vadd.f32 0.0, %v916
        %v918 = vpop.f32.mrb[0].mxu0
        %v919 = vadd.f32 0.0, %v918
        %920 = vmatprep.mubr.f32.mxu0 0.0
        %921 = vmatmul.mubr.f32.gmra.mrb[0].mxu0 %v334
        %v922 = vpop.f32.mrb[0].mxu0
        %v923 = vadd.f32 0.0, %v922
        %v924 = vpop.f32.mrb[0].mxu0
        %v925 = vadd.f32 0.0, %v924
        %926 = vmatprep.mubr.f32.mxu0 0.0
        %927 = vmatmul.mubr.f32.gmra.mrb[0].mxu0 %v337
        %v928 = vpop.f32.mrb[0].mxu0
        %v929 = vadd.f32 0.0, %v928
        %v930 = vpop.f32.mrb[0].mxu0
        %v931 = vadd.f32 0.0, %v930
        %932 = vmatprep.mubr.f32.mxu0 0.0
        %933 = vmatmul.mubr.f32.gmra.mrb[0].mxu0 %v340
        %v934 = vpop.f32.mrb[0].mxu0
        %v935 = vadd.f32 0.0, %v934
        %v936 = vpop.f32.mrb[0].mxu0
        %v937 = vadd.f32 0.0, %v936
        %938 = vmatprep.mubr.f32.mxu0 0.0
        %939 = vmatmul.mubr.f32.gmra.mrb[0].mxu0 %v343
        %v940 = vpop.f32.mrb[0].mxu0
        %v941 = vadd.f32 0.0, %v940
        %v942 = vpop.f32.mrb[0].mxu0
        %v943 = vadd.f32 0.0, %v942
        %944 = vmatprep.mubr.f32.mxu0 0.0
        %945 = vmatmul.mubr.f32.gmra.mrb[0].mxu0 %v346
        %v946 = vpop.f32.mrb[0].mxu0
        %v947 = vadd.f32 0.0, %v946
        %v948 = vpop.f32.mrb[0].mxu0
        %v949 = vadd.f32 0.0, %v948
        %950 = vmatprep.mubr.f32.mxu0 0.0
        %951 = vmatmul.mubr.f32.gmra.mrb[0].mxu0 %v349
        %v952 = vpop.f32.mrb[0].mxu0
        %v953 = vadd.f32 0.0, %v952
        %v954 = vpop.f32.mrb[0].mxu0
        %v955 = vadd.f32 0.0, %v954
        %956 = vmatprep.mubr.f32.mxu0 0.0
        %957 = vmatmul.mubr.f32.gmra.mrb[0].mxu0 %v352
        %v958 = vpop.f32.mrb[0].mxu0
        %v959 = vadd.f32 0.0, %v958
        %v960 = vpop.f32.mrb[0].mxu0
        %v961 = vadd.f32 0.0, %v960
        %962 = vmatprep.mubr.f32.mxu0 0.0
        %963 = vmatmul.mubr.f32.gmra.mrb[0].mxu0 %v355
        %v964 = vpop.f32.mrb[0].mxu0
        %v965 = vadd.f32 0.0, %v964
        %v966 = vpop.f32.mrb[0].mxu0
        %v967 = vadd.f32 0.0, %v966
        %968 = vmatprep.mubr.f32.mxu0 0.0
        %969 = vmatmul.mubr.f32.gmra.mrb[0].mxu0 %v358
        %v970 = vpop.f32.mrb[0].mxu0
        %v971 = vadd.f32 0.0, %v970
        %v972 = vpop.f32.mrb[0].mxu0
        %v973 = vadd.f32 0.0, %v972
        %974 = vmatprep.mubr.f32.mxu0 0.0
        %975 = vmatmul.mubr.f32.gmra.mrb[0].mxu0 %v361
        %v976 = vpop.f32.mrb[0].mxu0
        %v977 = vadd.f32 0.0, %v976
        %v978 = vpop.f32.mrb[0].mxu0
        %v979 = vadd.f32 0.0, %v978
        %980 = vmatprep.mubr.f32.mxu0 0.0
        %981 = vmatmul.mubr.f32.gmra.mrb[0].mxu0 %v364
        %v982 = vpop.f32.mrb[0].mxu0
        %v983 = vadd.f32 0.0, %v982
        %v984 = vpop.f32.mrb[0].mxu0
        %v985 = vadd.f32 0.0, %v984
        %986 = vmatprep.mubr.f32.mxu0 0.0
        %987 = vmatmul.mubr.f32.gmra.mrb[0].mxu0 %v367
        %v988 = vpop.f32.mrb[0].mxu0
        %v989 = vadd.f32 0.0, %v988
        %v990 = vpop.f32.mrb[0].mxu0
        %v991 = vadd.f32 0.0, %v990
        %992 = vmatprep.mubr.f32.mxu0 0.0
        %993 = vmatmul.mubr.f32.gmra.mrb[0].mxu0 %v370
        %v994 = vpop.f32.mrb[0].mxu0
        %v995 = vadd.f32 0.0, %v994
        %v996 = vpop.f32.mrb[0].mxu0
        %v997 = vadd.f32 0.0, %v996
        %998 = vmatprep.mubr.f32.mxu0 0.0
        %999 = vmatmul.mubr.f32.gmra.mrb[0].mxu0 %v373
        %v1000 = vpop.f32.mrb[0].mxu0
        %v1001 = vadd.f32 0.0, %v1000
        %v1002 = vpop.f32.mrb[0].mxu0
        %v1003 = vadd.f32 0.0, %v1002
        %1004 = vmatprep.mubr.f32.mxu0 0.0
        %1005 = vmatmul.mubr.f32.gmra.mrb[0].mxu0 %v376
        %v1006 = vpop.f32.mrb[0].mxu0
        %v1007 = vadd.f32 0.0, %v1006
        %v1008 = vpop.f32.mrb[0].mxu0
        %v1009 = vadd.f32 0.0, %v1008
        %1010 = vmatprep.mubr.f32.mxu0 0.0
        %1011 = vmatmul.mubr.f32.gmra.mrb[0].mxu0 %v379
        %v1012 = vpop.f32.mrb[0].mxu0
        %v1013 = vadd.f32 0.0, %v1012
        %v1014 = vpop.f32.mrb[0].mxu0
        %v1015 = vadd.f32 0.0, %v1014
        %1016 = vmatprep.mubr.f32.mxu0 0.0
        %1017 = vmatmul.mubr.f32.gmra.mrb[0].mxu0 %v382
        %v1018 = vpop.f32.mrb[0].mxu0
        %v1019 = vadd.f32 0.0, %v1018
        %v1020 = vpop.f32.mrb[0].mxu0
        %v1021 = vadd.f32 0.0, %v1020
        %1022 = vmatprep.mubr.f32.mxu0 0.0
        %1023 = vmatmul.mubr.f32.gmra.mrb[0].mxu0 %v385
        %v1024 = vpop.f32.mrb[0].mxu0
        %v1025 = vadd.f32 0.0, %v1024
        %v1026 = vpop.f32.mrb[0].mxu0
        %v1027 = vadd.f32 0.0, %v1026
        %1028 = vmatprep.mubr.f32.mxu0 0.0
        %1029 = vmatmul.mubr.f32.gmra.mrb[0].mxu0 %v388
        %v1030 = vpop.f32.mrb[0].mxu0
        %v1031 = vadd.f32 0.0, %v1030
        %v1032 = vpop.f32.mrb[0].mxu0
        %v1033 = vadd.f32 0.0, %v1032
        %1034 = vdwg.mxu0
        %v1035 = vmin.f32 %v845, %v857
        %v1036 = vmin.f32 %v851, %v863
        %v1037 = vmin.f32 %v1035, %v869
        %v1038 = vmin.f32 %v1036, %v875
        %v1039 = vmin.f32 %v1037, %v881
        %v1040 = vmin.f32 %v1038, %v887
        %v1041 = vmin.f32 %v1039, %v893
        %v1042 = vmin.f32 %v1040, %v899
        %v1043 = vmin.f32 %v1041, %v905
        %v1044 = vmin.f32 %v1042, %v911
        %v1045 = vmin.f32 %v1043, %v917
        %v1046 = vmin.f32 %v1044, %v923
        %v1047 = vmin.f32 %v1045, %v929
        %v1048 = vmin.f32 %v1046, %v935
        %v1049 = vmin.f32 %v1047, %v941
        %v1050 = vmin.f32 %v1048, %v947
        %v1051 = vmin.f32 %v1049, %v953
        %v1052 = vmin.f32 %v1050, %v959
        %v1053 = vmin.f32 %v1051, %v965
        %v1054 = vmin.f32 %v1052, %v971
        %v1055 = vmin.f32 %v1053, %v977
        %v1056 = vmin.f32 %v1054, %v983
        %v1057 = vmin.f32 %v1055, %v989
        %v1058 = vmin.f32 %v1056, %v995
        %v1059 = vmin.f32 %v1057, %v1001
        %v1060 = vmin.f32 %v1058, %v1007
        %v1061 = vmin.f32 %v1059, %v1013
        %v1062 = vmin.f32 %v1060, %v1019
        %v1063 = vmin.f32 %v1061, %v1025
        %v1064 = vmin.f32 %v1062, %v1031
        %v1065 = vmin.f32 %v1063, %v1064
        %v1066 = vrot.slane %v1065, 4
        %v1067 = vmin.f32 %v1065, %v1066
        %v1068 = vrot.slane %v1067, 2
        %v1069 = vmin.f32 %v1067, %v1068
        %v1070 = vrot.slane %v1069, 1
        %v1071 = vmin.f32 %v1069, %v1070
        %v1072 = vmin.f32 %v847, %v859
        %v1073 = vmin.f32 %v853, %v865
        %v1074 = vmin.f32 %v1072, %v871
        %v1075 = vmin.f32 %v1073, %v877
        %v1076 = vmin.f32 %v1074, %v883
        %v1077 = vmin.f32 %v1075, %v889
        %v1078 = vmin.f32 %v1076, %v895
        %v1079 = vmin.f32 %v1077, %v901
        %v1080 = vmin.f32 %v1078, %v907
        %v1081 = vmin.f32 %v1079, %v913
        %v1082 = vmin.f32 %v1080, %v919
        %v1083 = vmin.f32 %v1081, %v925
        %v1084 = vmin.f32 %v1082, %v931
        %v1085 = vmin.f32 %v1083, %v937
        %v1086 = vmin.f32 %v1084, %v943
        %v1087 = vmin.f32 %v1085, %v949
        %v1088 = vmin.f32 %v1086, %v955
        %v1089 = vmin.f32 %v1087, %v961
        %v1090 = vmin.f32 %v1088, %v967
        %v1091 = vmin.f32 %v1089, %v973
        %v1092 = vmin.f32 %v1090, %v979
        %v1093 = vmin.f32 %v1091, %v985
        %v1094 = vmin.f32 %v1092, %v991
        %v1095 = vmin.f32 %v1093, %v997
        %v1096 = vmin.f32 %v1094, %v1003
        %v1097 = vmin.f32 %v1095, %v1009
        %v1098 = vmin.f32 %v1096, %v1015
        %v1099 = vmin.f32 %v1097, %v1021
        %v1100 = vmin.f32 %v1098, %v1027
        %v1101 = vmin.f32 %v1099, %v1033
        %v1102 = vmin.f32 %v1100, %v1101
        %v1103 = vrot.slane %v1102, 4
        %v1104 = vmin.f32 %v1102, %v1103
        %v1105 = vrot.slane %v1104, 2
        %v1106 = vmin.f32 %v1104, %v1105
        %v1107 = vrot.slane %v1106, 1
        %v1108 = vmin.f32 %v1106, %v1107
        %v1111 = vcombine.low %v1071, %v1108
        %v1113 = vunpack.c.l.s4 1966171168
        %v1114 = vunpack.c.0.s8 %v1113
        %v1115 = vlaneseq
        %v1116 = vshrl.u32 %v1115, 7
        %v1117 = vsub.s32 %v1114, %v1116
        %v1118 = vrot.slane %v1111, %v1117
        %v1120 = vunpack.c.l.s4 1966171168
        %v1121 = vunpack.c.0.s8 %v1120
        %v1122 = vlaneseq
        %v1123 = vshrl.u32 %v1122, 7
        %v1124 = vsub.s32 %v1121, %v1123
        %v1125 = vrot.slane %v1118, %v1124
        %1127 = vst.msk [vmem:[%s236 + $0x2] sm:$0x3] %vm742, %v1125
        %v1128 = vmin.f32 %v845, %v847
        %v1129 = vmin.f32 %v851, %v853
        %v1130 = vmin.f32 %v857, %v859
        %v1131 = vmin.f32 %v863, %v865
        %v1132 = vmin.f32 %v869, %v871
        %v1133 = vmin.f32 %v875, %v877
        %v1134 = vmin.f32 %v881, %v883
        %v1135 = vmin.f32 %v887, %v889
        %v1136 = vmin.f32 %v893, %v895
        %v1137 = vmin.f32 %v899, %v901
        %v1138 = vmin.f32 %v905, %v907
        %v1139 = vmin.f32 %v911, %v913
        %v1140 = vmin.f32 %v917, %v919
        %v1141 = vmin.f32 %v923, %v925
        %v1142 = vmin.f32 %v929, %v931
        %v1143 = vmin.f32 %v935, %v937
        %v1144 = vmin.f32 %v941, %v943
        %v1145 = vmin.f32 %v947, %v949
        %v1146 = vmin.f32 %v953, %v955
        %v1147 = vmin.f32 %v959, %v961
        %v1148 = vmin.f32 %v965, %v967
        %v1149 = vmin.f32 %v971, %v973
        %v1150 = vmin.f32 %v977, %v979
        %v1151 = vmin.f32 %v983, %v985
        %v1152 = vmin.f32 %v989, %v991
        %v1153 = vmin.f32 %v995, %v997
        %v1154 = vmin.f32 %v1001, %v1003
        %v1155 = vmin.f32 %v1007, %v1009
        %v1156 = vmin.f32 %v1013, %v1015
        %v1157 = vmin.f32 %v1019, %v1021
        %v1158 = vmin.f32 %v1025, %v1027
        %v1159 = vmin.f32 %v1031, %v1033
        %v1160 = vmin.f32 %v744, %v1128
        %v1161 = vmin.f32 %v745, %v1129
        %v1162 = vmin.f32 %v746, %v1130
        %v1163 = vmin.f32 %v747, %v1131
        %v1164 = vmin.f32 %v748, %v1132
        %v1165 = vmin.f32 %v749, %v1133
        %v1166 = vmin.f32 %v750, %v1134
        %v1167 = vmin.f32 %v751, %v1135
        %v1168 = vmin.f32 %v752, %v1136
        %v1169 = vmin.f32 %v753, %v1137
        %v1170 = vmin.f32 %v754, %v1138
        %v1171 = vmin.f32 %v755, %v1139
        %v1172 = vmin.f32 %v756, %v1140
        %v1173 = vmin.f32 %v757, %v1141
        %v1174 = vmin.f32 %v758, %v1142
        %v1175 = vmin.f32 %v759, %v1143
        %v1176 = vmin.f32 %v760, %v1144
        %v1177 = vmin.f32 %v761, %v1145
        %v1178 = vmin.f32 %v762, %v1146
        %v1179 = vmin.f32 %v763, %v1147
        %v1180 = vmin.f32 %v764, %v1148
        %v1181 = vmin.f32 %v765, %v1149
        %v1182 = vmin.f32 %v766, %v1150
        %v1183 = vmin.f32 %v767, %v1151
        %v1184 = vmin.f32 %v768, %v1152
        %v1185 = vmin.f32 %v769, %v1153
        %v1186 = vmin.f32 %v770, %v1154
        %v1187 = vmin.f32 %v771, %v1155
        %v1188 = vmin.f32 %v772, %v1156
        %v1189 = vmin.f32 %v773, %v1157
        %v1190 = vmin.f32 %v774, %v1158
        %v1191 = vmin.f32 %v775, %v1159
        %p1192 = scmp.eq.s32.totalorder %s28, 0
        // Predicated region
        $region29: #{tpu_custom_call.1} parent=27 // pred_check
          %p1193 = pneg %p1192
        $region30: #{tpu_custom_call.1} parent=27 // pred_check_branch
          %1195 = sbr.rel (%p1193) target = $region32
        $region31: #{tpu_custom_call.1} parent=27 // pred_region
          %1196 = vst [vmem:[#allocation2] sm:$0xff] %v1160
          %1197 = vst [vmem:[#allocation2 + $0x8] sm:$0xff] %v1161
          %1198 = vst [vmem:[#allocation2 + $0x10] sm:$0xff] %v1162
          %1199 = vst [vmem:[#allocation2 + $0x18] sm:$0xff] %v1163
          %1200 = vst [vmem:[#allocation2 + $0x20] sm:$0xff] %v1164
          %1201 = vst [vmem:[#allocation2 + $0x28] sm:$0xff] %v1165
          %1202 = vst [vmem:[#allocation2 + $0x30] sm:$0xff] %v1166
          %1203 = vst [vmem:[#allocation2 + $0x38] sm:$0xff] %v1167
          %1204 = vst [vmem:[#allocation2 + $0x40] sm:$0xff] %v1168
          %1205 = vst [vmem:[#allocation2 + $0x48] sm:$0xff] %v1169
          %1206 = vst [vmem:[#allocation2 + $0x50] sm:$0xff] %v1170
          %1207 = vst [vmem:[#allocation2 + $0x58] sm:$0xff] %v1171
          %1208 = vst [vmem:[#allocation2 + $0x60] sm:$0xff] %v1172
          %1209 = vst [vmem:[#allocation2 + $0x68] sm:$0xff] %v1173
          %1210 = vst [vmem:[#allocation2 + $0x70] sm:$0xff] %v1174
          %1211 = vst [vmem:[#allocation2 + $0x78] sm:$0xff] %v1175
          %1212 = vst [vmem:[#allocation2 + $0x80] sm:$0xff] %v1176
          %1213 = vst [vmem:[#allocation2 + $0x88] sm:$0xff] %v1177
          %1214 = vst [vmem:[#allocation2 + $0x90] sm:$0xff] %v1178
          %1215 = vst [vmem:[#allocation2 + $0x98] sm:$0xff] %v1179
          %1216 = vst [vmem:[#allocation2 + $0xa0] sm:$0xff] %v1180
          %1217 = vst [vmem:[#allocation2 + $0xa8] sm:$0xff] %v1181
          %1218 = vst [vmem:[#allocation2 + $0xb0] sm:$0xff] %v1182
          %1219 = vst [vmem:[#allocation2 + $0xb8] sm:$0xff] %v1183
          %1220 = vst [vmem:[#allocation2 + $0xc0] sm:$0xff] %v1184
          %1221 = vst [vmem:[#allocation2 + $0xc8] sm:$0xff] %v1185
          %1222 = vst [vmem:[#allocation2 + $0xd0] sm:$0xff] %v1186
          %1223 = vst [vmem:[#allocation2 + $0xd8] sm:$0xff] %v1187
          %1224 = vst [vmem:[#allocation2 + $0xe0] sm:$0xff] %v1188
          %1225 = vst [vmem:[#allocation2 + $0xe8] sm:$0xff] %v1189
          %1226 = vst [vmem:[#allocation2 + $0xf0] sm:$0xff] %v1190
          %1227 = vst [vmem:[#allocation2 + $0xf8] sm:$0xff] %v1191
        $region32: #{tpu_custom_call.1} parent=27 // pred_fallthru
          _
        %p1228 = scmp.gt.s32.totalorder %s28, 0
        // Predicated region
        $region33: #{tpu_custom_call.1} parent=27 // pred_check
          %p1229 = pneg %p1228
        $region34: #{tpu_custom_call.1} parent=27 // pred_check_branch
          %1231 = sbr.rel (%p1229) target = $region36
        $region35: #{tpu_custom_call.1} parent=27 // pred_region
          %v1232 = vld [vmem:[#allocation2] sm:$0xff]
          %v1233 = vld [vmem:[#allocation2 + $0x8] sm:$0xff]
          %v1234 = vld [vmem:[#allocation2 + $0x10] sm:$0xff]
          %v1235 = vld [vmem:[#allocation2 + $0x18] sm:$0xff]
          %v1236 = vld [vmem:[#allocation2 + $0x20] sm:$0xff]
          %v1237 = vld [vmem:[#allocation2 + $0x28] sm:$0xff]
          %v1238 = vld [vmem:[#allocation2 + $0x30] sm:$0xff]
          %v1239 = vld [vmem:[#allocation2 + $0x38] sm:$0xff]
          %v1240 = vld [vmem:[#allocation2 + $0x40] sm:$0xff]
          %v1241 = vld [vmem:[#allocation2 + $0x48] sm:$0xff]
          %v1242 = vld [vmem:[#allocation2 + $0x50] sm:$0xff]
          %v1243 = vld [vmem:[#allocation2 + $0x58] sm:$0xff]
          %v1244 = vld [vmem:[#allocation2 + $0x60] sm:$0xff]
          %v1245 = vld [vmem:[#allocation2 + $0x68] sm:$0xff]
          %v1246 = vld [vmem:[#allocation2 + $0x70] sm:$0xff]
          %v1247 = vld [vmem:[#allocation2 + $0x78] sm:$0xff]
          %v1248 = vld [vmem:[#allocation2 + $0x80] sm:$0xff]
          %v1249 = vld [vmem:[#allocation2 + $0x88] sm:$0xff]
          %v1250 = vld [vmem:[#allocation2 + $0x90] sm:$0xff]
          %v1251 = vld [vmem:[#allocation2 + $0x98] sm:$0xff]
          %v1252 = vld [vmem:[#allocation2 + $0xa0] sm:$0xff]
          %v1253 = vld [vmem:[#allocation2 + $0xa8] sm:$0xff]
          %v1254 = vld [vmem:[#allocation2 + $0xb0] sm:$0xff]
          %v1255 = vld [vmem:[#allocation2 + $0xb8] sm:$0xff]
          %v1256 = vld [vmem:[#allocation2 + $0xc0] sm:$0xff]
          %v1257 = vld [vmem:[#allocation2 + $0xc8] sm:$0xff]
          %v1258 = vld [vmem:[#allocation2 + $0xd0] sm:$0xff]
          %v1259 = vld [vmem:[#allocation2 + $0xd8] sm:$0xff]
          %v1260 = vld [vmem:[#allocation2 + $0xe0] sm:$0xff]
          %v1261 = vld [vmem:[#allocation2 + $0xe8] sm:$0xff]
          %v1262 = vld [vmem:[#allocation2 + $0xf0] sm:$0xff]
          %v1263 = vld [vmem:[#allocation2 + $0xf8] sm:$0xff]
          %v1264 = vmin.f32 %v1232, %v1160
          %v1265 = vmin.f32 %v1233, %v1161
          %v1266 = vmin.f32 %v1234, %v1162
          %v1267 = vmin.f32 %v1235, %v1163
          %v1268 = vmin.f32 %v1236, %v1164
          %v1269 = vmin.f32 %v1237, %v1165
          %v1270 = vmin.f32 %v1238, %v1166
          %v1271 = vmin.f32 %v1239, %v1167
          %v1272 = vmin.f32 %v1240, %v1168
          %v1273 = vmin.f32 %v1241, %v1169
          %v1274 = vmin.f32 %v1242, %v1170
          %v1275 = vmin.f32 %v1243, %v1171
          %v1276 = vmin.f32 %v1244, %v1172
          %v1277 = vmin.f32 %v1245, %v1173
          %v1278 = vmin.f32 %v1246, %v1174
          %v1279 = vmin.f32 %v1247, %v1175
          %v1280 = vmin.f32 %v1248, %v1176
          %v1281 = vmin.f32 %v1249, %v1177
          %v1282 = vmin.f32 %v1250, %v1178
          %v1283 = vmin.f32 %v1251, %v1179
          %v1284 = vmin.f32 %v1252, %v1180
          %v1285 = vmin.f32 %v1253, %v1181
          %v1286 = vmin.f32 %v1254, %v1182
          %v1287 = vmin.f32 %v1255, %v1183
          %v1288 = vmin.f32 %v1256, %v1184
          %v1289 = vmin.f32 %v1257, %v1185
          %v1290 = vmin.f32 %v1258, %v1186
          %v1291 = vmin.f32 %v1259, %v1187
          %v1292 = vmin.f32 %v1260, %v1188
          %v1293 = vmin.f32 %v1261, %v1189
          %v1294 = vmin.f32 %v1262, %v1190
          %v1295 = vmin.f32 %v1263, %v1191
          %1296 = vst [vmem:[#allocation2] sm:$0xff] %v1264
          %1297 = vst [vmem:[#allocation2 + $0x8] sm:$0xff] %v1265
          %1298 = vst [vmem:[#allocation2 + $0x10] sm:$0xff] %v1266
          %1299 = vst [vmem:[#allocation2 + $0x18] sm:$0xff] %v1267
          %1300 = vst [vmem:[#allocation2 + $0x20] sm:$0xff] %v1268
          %1301 = vst [vmem:[#allocation2 + $0x28] sm:$0xff] %v1269
          %1302 = vst [vmem:[#allocation2 + $0x30] sm:$0xff] %v1270
          %1303 = vst [vmem:[#allocation2 + $0x38] sm:$0xff] %v1271
          %1304 = vst [vmem:[#allocation2 + $0x40] sm:$0xff] %v1272
          %1305 = vst [vmem:[#allocation2 + $0x48] sm:$0xff] %v1273
          %1306 = vst [vmem:[#allocation2 + $0x50] sm:$0xff] %v1274
          %1307 = vst [vmem:[#allocation2 + $0x58] sm:$0xff] %v1275
          %1308 = vst [vmem:[#allocation2 + $0x60] sm:$0xff] %v1276
          %1309 = vst [vmem:[#allocation2 + $0x68] sm:$0xff] %v1277
          %1310 = vst [vmem:[#allocation2 + $0x70] sm:$0xff] %v1278
          %1311 = vst [vmem:[#allocation2 + $0x78] sm:$0xff] %v1279
          %1312 = vst [vmem:[#allocation2 + $0x80] sm:$0xff] %v1280
          %1313 = vst [vmem:[#allocation2 + $0x88] sm:$0xff] %v1281
          %1314 = vst [vmem:[#allocation2 + $0x90] sm:$0xff] %v1282
          %1315 = vst [vmem:[#allocation2 + $0x98] sm:$0xff] %v1283
          %1316 = vst [vmem:[#allocation2 + $0xa0] sm:$0xff] %v1284
          %1317 = vst [vmem:[#allocation2 + $0xa8] sm:$0xff] %v1285
          %1318 = vst [vmem:[#allocation2 + $0xb0] sm:$0xff] %v1286
          %1319 = vst [vmem:[#allocation2 + $0xb8] sm:$0xff] %v1287
          %1320 = vst [vmem:[#allocation2 + $0xc0] sm:$0xff] %v1288
          %1321 = vst [vmem:[#allocation2 + $0xc8] sm:$0xff] %v1289
          %1322 = vst [vmem:[#allocation2 + $0xd0] sm:$0xff] %v1290
          %1323 = vst [vmem:[#allocation2 + $0xd8] sm:$0xff] %v1291
          %1324 = vst [vmem:[#allocation2 + $0xe0] sm:$0xff] %v1292
          %1325 = vst [vmem:[#allocation2 + $0xe8] sm:$0xff] %v1293
          %1326 = vst [vmem:[#allocation2 + $0xf0] sm:$0xff] %v1294
          %1327 = vst [vmem:[#allocation2 + $0xf8] sm:$0xff] %v1295
        $region36: #{tpu_custom_call.1} parent=27 // pred_fallthru
          _
        // Predicated region
        $region37: #{tpu_custom_call.1} parent=27 // pred_check
          %p1328 = pneg %p1192
        $region38: #{tpu_custom_call.1} parent=27 // pred_check_branch
          %1330 = sbr.rel (%p1328) target = $region40
        $region39: #{tpu_custom_call.1} parent=27 // pred_region
          %v1331 = vld [vmem:[#allocation2] sm:$0xff]
          %v1332 = vld [vmem:[#allocation2 + $0x8] sm:$0xff]
          %v1333 = vld [vmem:[#allocation2 + $0x10] sm:$0xff]
          %v1334 = vld [vmem:[#allocation2 + $0x18] sm:$0xff]
          %v1335 = vld [vmem:[#allocation2 + $0x20] sm:$0xff]
          %v1336 = vld [vmem:[#allocation2 + $0x28] sm:$0xff]
          %v1337 = vld [vmem:[#allocation2 + $0x30] sm:$0xff]
          %v1338 = vld [vmem:[#allocation2 + $0x38] sm:$0xff]
          %v1339 = vld [vmem:[#allocation2 + $0x40] sm:$0xff]
          %v1340 = vld [vmem:[#allocation2 + $0x48] sm:$0xff]
          %v1341 = vld [vmem:[#allocation2 + $0x50] sm:$0xff]
          %v1342 = vld [vmem:[#allocation2 + $0x58] sm:$0xff]
          %v1343 = vld [vmem:[#allocation2 + $0x60] sm:$0xff]
          %v1344 = vld [vmem:[#allocation2 + $0x68] sm:$0xff]
          %v1345 = vld [vmem:[#allocation2 + $0x70] sm:$0xff]
          %v1346 = vld [vmem:[#allocation2 + $0x78] sm:$0xff]
          %v1347 = vld [vmem:[#allocation2 + $0x80] sm:$0xff]
          %v1348 = vld [vmem:[#allocation2 + $0x88] sm:$0xff]
          %v1349 = vld [vmem:[#allocation2 + $0x90] sm:$0xff]
          %v1350 = vld [vmem:[#allocation2 + $0x98] sm:$0xff]
          %v1351 = vld [vmem:[#allocation2 + $0xa0] sm:$0xff]
          %v1352 = vld [vmem:[#allocation2 + $0xa8] sm:$0xff]
          %v1353 = vld [vmem:[#allocation2 + $0xb0] sm:$0xff]
          %v1354 = vld [vmem:[#allocation2 + $0xb8] sm:$0xff]
          %v1355 = vld [vmem:[#allocation2 + $0xc0] sm:$0xff]
          %v1356 = vld [vmem:[#allocation2 + $0xc8] sm:$0xff]
          %v1357 = vld [vmem:[#allocation2 + $0xd0] sm:$0xff]
          %v1358 = vld [vmem:[#allocation2 + $0xd8] sm:$0xff]
          %v1359 = vld [vmem:[#allocation2 + $0xe0] sm:$0xff]
          %v1360 = vld [vmem:[#allocation2 + $0xe8] sm:$0xff]
          %v1361 = vld [vmem:[#allocation2 + $0xf0] sm:$0xff]
          %v1362 = vld [vmem:[#allocation2 + $0xf8] sm:$0xff]
          %1363 = vmin.xlane.f32.xlu0 %v1331
          %v1364 = vpop.xlane.xlu0 %1363
          %1365 = vmin.xlane.f32.xlu0 %v1332
          %v1366 = vpop.xlane.xlu0 %1365
          %1367 = vmin.xlane.f32.xlu0 %v1333
          %v1368 = vpop.xlane.xlu0 %1367
          %1369 = vmin.xlane.f32.xlu0 %v1334
          %v1370 = vpop.xlane.xlu0 %1369
          %1371 = vmin.xlane.f32.xlu0 %v1335
          %v1372 = vpop.xlane.xlu0 %1371
          %1373 = vmin.xlane.f32.xlu0 %v1336
          %v1374 = vpop.xlane.xlu0 %1373
          %1375 = vmin.xlane.f32.xlu0 %v1337
          %v1376 = vpop.xlane.xlu0 %1375
          %1377 = vmin.xlane.f32.xlu0 %v1338
          %v1378 = vpop.xlane.xlu0 %1377
          %1379 = vmin.xlane.f32.xlu0 %v1339
          %v1380 = vpop.xlane.xlu0 %1379
          %1381 = vmin.xlane.f32.xlu0 %v1340
          %v1382 = vpop.xlane.xlu0 %1381
          %1383 = vmin.xlane.f32.xlu0 %v1341
          %v1384 = vpop.xlane.xlu0 %1383
          %1385 = vmin.xlane.f32.xlu0 %v1342
          %v1386 = vpop.xlane.xlu0 %1385
          %1387 = vmin.xlane.f32.xlu0 %v1343
          %v1388 = vpop.xlane.xlu0 %1387
          %1389 = vmin.xlane.f32.xlu0 %v1344
          %v1390 = vpop.xlane.xlu0 %1389
          %1391 = vmin.xlane.f32.xlu0 %v1345
          %v1392 = vpop.xlane.xlu0 %1391
          %1393 = vmin.xlane.f32.xlu0 %v1346
          %v1394 = vpop.xlane.xlu0 %1393
          %1395 = vmin.xlane.f32.xlu0 %v1347
          %v1396 = vpop.xlane.xlu0 %1395
          %1397 = vmin.xlane.f32.xlu0 %v1348
          %v1398 = vpop.xlane.xlu0 %1397
          %1399 = vmin.xlane.f32.xlu0 %v1349
          %v1400 = vpop.xlane.xlu0 %1399
          %1401 = vmin.xlane.f32.xlu0 %v1350
          %v1402 = vpop.xlane.xlu0 %1401
          %1403 = vmin.xlane.f32.xlu0 %v1351
          %v1404 = vpop.xlane.xlu0 %1403
          %1405 = vmin.xlane.f32.xlu0 %v1352
          %v1406 = vpop.xlane.xlu0 %1405
          %1407 = vmin.xlane.f32.xlu0 %v1353
          %v1408 = vpop.xlane.xlu0 %1407
          %1409 = vmin.xlane.f32.xlu0 %v1354
          %v1410 = vpop.xlane.xlu0 %1409
          %1411 = vmin.xlane.f32.xlu0 %v1355
          %v1412 = vpop.xlane.xlu0 %1411
          %1413 = vmin.xlane.f32.xlu0 %v1356
          %v1414 = vpop.xlane.xlu0 %1413
          %1415 = vmin.xlane.f32.xlu0 %v1357
          %v1416 = vpop.xlane.xlu0 %1415
          %1417 = vmin.xlane.f32.xlu0 %v1358
          %v1418 = vpop.xlane.xlu0 %1417
          %1419 = vmin.xlane.f32.xlu0 %v1359
          %v1420 = vpop.xlane.xlu0 %1419
          %1421 = vmin.xlane.f32.xlu0 %v1360
          %v1422 = vpop.xlane.xlu0 %1421
          %1423 = vmin.xlane.f32.xlu0 %v1361
          %v1424 = vpop.xlane.xlu0 %1423
          %1425 = vmin.xlane.f32.xlu0 %v1362
          %v1426 = vpop.xlane.xlu0 %1425
          %v1427 = vmax.f32 %v1364, 0.0
          %v1428 = vmax.f32 %v1366, 0.0
          %v1429 = vmax.f32 %v1368, 0.0
          %v1430 = vmax.f32 %v1370, 0.0
          %v1431 = vmax.f32 %v1372, 0.0
          %v1432 = vmax.f32 %v1374, 0.0
          %v1433 = vmax.f32 %v1376, 0.0
          %v1434 = vmax.f32 %v1378, 0.0
          %v1435 = vmax.f32 %v1380, 0.0
          %v1436 = vmax.f32 %v1382, 0.0
          %v1437 = vmax.f32 %v1384, 0.0
          %v1438 = vmax.f32 %v1386, 0.0
          %v1439 = vmax.f32 %v1388, 0.0
          %v1440 = vmax.f32 %v1390, 0.0
          %v1441 = vmax.f32 %v1392, 0.0
          %v1442 = vmax.f32 %v1394, 0.0
          %v1443 = vmax.f32 %v1396, 0.0
          %v1444 = vmax.f32 %v1398, 0.0
          %v1445 = vmax.f32 %v1400, 0.0
          %v1446 = vmax.f32 %v1402, 0.0
          %v1447 = vmax.f32 %v1404, 0.0
          %v1448 = vmax.f32 %v1406, 0.0
          %v1449 = vmax.f32 %v1408, 0.0
          %v1450 = vmax.f32 %v1410, 0.0
          %v1451 = vmax.f32 %v1412, 0.0
          %v1452 = vmax.f32 %v1414, 0.0
          %v1453 = vmax.f32 %v1416, 0.0
          %v1454 = vmax.f32 %v1418, 0.0
          %v1455 = vmax.f32 %v1420, 0.0
          %v1456 = vmax.f32 %v1422, 0.0
          %v1457 = vmax.f32 %v1424, 0.0
          %v1458 = vmax.f32 %v1426, 0.0
          %v1491 = vlaneseq
          %v1492 = vshrl.u32 %v1491, 7
          %v1493 = vsub.s32 0, %v1492
          %v1494 = vrot.slane %v1427, %v1493
          %v1495 = vlaneseq
          %v1496 = vshrl.u32 %v1495, 7
          %v1497 = vsub.s32 1, %v1496
          %v1498 = vrot.slane %v1427, %v1497
          %v1499 = vlaneseq
          %v1500 = vshrl.u32 %v1499, 7
          %v1501 = vsub.s32 2, %v1500
          %v1502 = vrot.slane %v1427, %v1501
          %v1503 = vlaneseq
          %v1504 = vshrl.u32 %v1503, 7
          %v1505 = vsub.s32 3, %v1504
          %v1506 = vrot.slane %v1427, %v1505
          %v1507 = vlaneseq
          %v1508 = vshrl.u32 %v1507, 7
          %v1509 = vsub.s32 4, %v1508
          %v1510 = vrot.slane %v1427, %v1509
          %v1511 = vlaneseq
          %v1512 = vshrl.u32 %v1511, 7
          %v1513 = vsub.s32 5, %v1512
          %v1514 = vrot.slane %v1427, %v1513
          %v1515 = vlaneseq
          %v1516 = vshrl.u32 %v1515, 7
          %v1517 = vsub.s32 6, %v1516
          %v1518 = vrot.slane %v1427, %v1517
          %v1519 = vlaneseq
          %v1520 = vshrl.u32 %v1519, 7
          %v1521 = vsub.s32 7, %v1520
          %v1522 = vrot.slane %v1427, %v1521
          %v1523 = vlaneseq
          %v1524 = vshrl.u32 %v1523, 7
          %v1525 = vsub.s32 0, %v1524
          %v1526 = vrot.slane %v1428, %v1525
          %v1527 = vlaneseq
          %v1528 = vshrl.u32 %v1527, 7
          %v1529 = vsub.s32 1, %v1528
          %v1530 = vrot.slane %v1428, %v1529
          %v1531 = vlaneseq
          %v1532 = vshrl.u32 %v1531, 7
          %v1533 = vsub.s32 2, %v1532
          %v1534 = vrot.slane %v1428, %v1533
          %v1535 = vlaneseq
          %v1536 = vshrl.u32 %v1535, 7
          %v1537 = vsub.s32 3, %v1536
          %v1538 = vrot.slane %v1428, %v1537
          %v1539 = vlaneseq
          %v1540 = vshrl.u32 %v1539, 7
          %v1541 = vsub.s32 4, %v1540
          %v1542 = vrot.slane %v1428, %v1541
          %v1543 = vlaneseq
          %v1544 = vshrl.u32 %v1543, 7
          %v1545 = vsub.s32 5, %v1544
          %v1546 = vrot.slane %v1428, %v1545
          %v1547 = vlaneseq
          %v1548 = vshrl.u32 %v1547, 7
          %v1549 = vsub.s32 6, %v1548
          %v1550 = vrot.slane %v1428, %v1549
          %v1551 = vlaneseq
          %v1552 = vshrl.u32 %v1551, 7
          %v1553 = vsub.s32 7, %v1552
          %v1554 = vrot.slane %v1428, %v1553
          %v1555 = vlaneseq
          %v1556 = vshrl.u32 %v1555, 7
          %v1557 = vsub.s32 0, %v1556
          %v1558 = vrot.slane %v1429, %v1557
          %v1559 = vlaneseq
          %v1560 = vshrl.u32 %v1559, 7
          %v1561 = vsub.s32 1, %v1560
          %v1562 = vrot.slane %v1429, %v1561
          %v1563 = vlaneseq
          %v1564 = vshrl.u32 %v1563, 7
          %v1565 = vsub.s32 2, %v1564
          %v1566 = vrot.slane %v1429, %v1565
          %v1567 = vlaneseq
          %v1568 = vshrl.u32 %v1567, 7
          %v1569 = vsub.s32 3, %v1568
          %v1570 = vrot.slane %v1429, %v1569
          %v1571 = vlaneseq
          %v1572 = vshrl.u32 %v1571, 7
          %v1573 = vsub.s32 4, %v1572
          %v1574 = vrot.slane %v1429, %v1573
          %v1575 = vlaneseq
          %v1576 = vshrl.u32 %v1575, 7
          %v1577 = vsub.s32 5, %v1576
          %v1578 = vrot.slane %v1429, %v1577
          %v1579 = vlaneseq
          %v1580 = vshrl.u32 %v1579, 7
          %v1581 = vsub.s32 6, %v1580
          %v1582 = vrot.slane %v1429, %v1581
          %v1583 = vlaneseq
          %v1584 = vshrl.u32 %v1583, 7
          %v1585 = vsub.s32 7, %v1584
          %v1586 = vrot.slane %v1429, %v1585
          %v1587 = vlaneseq
          %v1588 = vshrl.u32 %v1587, 7
          %v1589 = vsub.s32 0, %v1588
          %v1590 = vrot.slane %v1430, %v1589
          %v1591 = vlaneseq
          %v1592 = vshrl.u32 %v1591, 7
          %v1593 = vsub.s32 1, %v1592
          %v1594 = vrot.slane %v1430, %v1593
          %v1595 = vlaneseq
          %v1596 = vshrl.u32 %v1595, 7
          %v1597 = vsub.s32 2, %v1596
          %v1598 = vrot.slane %v1430, %v1597
          %v1599 = vlaneseq
          %v1600 = vshrl.u32 %v1599, 7
          %v1601 = vsub.s32 3, %v1600
          %v1602 = vrot.slane %v1430, %v1601
          %v1603 = vlaneseq
          %v1604 = vshrl.u32 %v1603, 7
          %v1605 = vsub.s32 4, %v1604
          %v1606 = vrot.slane %v1430, %v1605
          %v1607 = vlaneseq
          %v1608 = vshrl.u32 %v1607, 7
          %v1609 = vsub.s32 5, %v1608
          %v1610 = vrot.slane %v1430, %v1609
          %v1611 = vlaneseq
          %v1612 = vshrl.u32 %v1611, 7
          %v1613 = vsub.s32 6, %v1612
          %v1614 = vrot.slane %v1430, %v1613
          %v1615 = vlaneseq
          %v1616 = vshrl.u32 %v1615, 7
          %v1617 = vsub.s32 7, %v1616
          %v1618 = vrot.slane %v1430, %v1617
          %v1619 = vlaneseq
          %v1620 = vshrl.u32 %v1619, 7
          %v1621 = vsub.s32 0, %v1620
          %v1622 = vrot.slane %v1431, %v1621
          %v1623 = vlaneseq
          %v1624 = vshrl.u32 %v1623, 7
          %v1625 = vsub.s32 1, %v1624
          %v1626 = vrot.slane %v1431, %v1625
          %v1627 = vlaneseq
          %v1628 = vshrl.u32 %v1627, 7
          %v1629 = vsub.s32 2, %v1628
          %v1630 = vrot.slane %v1431, %v1629
          %v1631 = vlaneseq
          %v1632 = vshrl.u32 %v1631, 7
          %v1633 = vsub.s32 3, %v1632
          %v1634 = vrot.slane %v1431, %v1633
          %v1635 = vlaneseq
          %v1636 = vshrl.u32 %v1635, 7
          %v1637 = vsub.s32 4, %v1636
          %v1638 = vrot.slane %v1431, %v1637
          %v1639 = vlaneseq
          %v1640 = vshrl.u32 %v1639, 7
          %v1641 = vsub.s32 5, %v1640
          %v1642 = vrot.slane %v1431, %v1641
          %v1643 = vlaneseq
          %v1644 = vshrl.u32 %v1643, 7
          %v1645 = vsub.s32 6, %v1644
          %v1646 = vrot.slane %v1431, %v1645
          %v1647 = vlaneseq
          %v1648 = vshrl.u32 %v1647, 7
          %v1649 = vsub.s32 7, %v1648
          %v1650 = vrot.slane %v1431, %v1649
          %v1651 = vlaneseq
          %v1652 = vshrl.u32 %v1651, 7
          %v1653 = vsub.s32 0, %v1652
          %v1654 = vrot.slane %v1432, %v1653
          %v1655 = vlaneseq
          %v1656 = vshrl.u32 %v1655, 7
          %v1657 = vsub.s32 1, %v1656
          %v1658 = vrot.slane %v1432, %v1657
          %v1659 = vlaneseq
          %v1660 = vshrl.u32 %v1659, 7
          %v1661 = vsub.s32 2, %v1660
          %v1662 = vrot.slane %v1432, %v1661
          %v1663 = vlaneseq
          %v1664 = vshrl.u32 %v1663, 7
          %v1665 = vsub.s32 3, %v1664
          %v1666 = vrot.slane %v1432, %v1665
          %v1667 = vlaneseq
          %v1668 = vshrl.u32 %v1667, 7
          %v1669 = vsub.s32 4, %v1668
          %v1670 = vrot.slane %v1432, %v1669
          %v1671 = vlaneseq
          %v1672 = vshrl.u32 %v1671, 7
          %v1673 = vsub.s32 5, %v1672
          %v1674 = vrot.slane %v1432, %v1673
          %v1675 = vlaneseq
          %v1676 = vshrl.u32 %v1675, 7
          %v1677 = vsub.s32 6, %v1676
          %v1678 = vrot.slane %v1432, %v1677
          %v1679 = vlaneseq
          %v1680 = vshrl.u32 %v1679, 7
          %v1681 = vsub.s32 7, %v1680
          %v1682 = vrot.slane %v1432, %v1681
          %v1683 = vlaneseq
          %v1684 = vshrl.u32 %v1683, 7
          %v1685 = vsub.s32 0, %v1684
          %v1686 = vrot.slane %v1433, %v1685
          %v1687 = vlaneseq
          %v1688 = vshrl.u32 %v1687, 7
          %v1689 = vsub.s32 1, %v1688
          %v1690 = vrot.slane %v1433, %v1689
          %v1691 = vlaneseq
          %v1692 = vshrl.u32 %v1691, 7
          %v1693 = vsub.s32 2, %v1692
          %v1694 = vrot.slane %v1433, %v1693
          %v1695 = vlaneseq
          %v1696 = vshrl.u32 %v1695, 7
          %v1697 = vsub.s32 3, %v1696
          %v1698 = vrot.slane %v1433, %v1697
          %v1699 = vlaneseq
          %v1700 = vshrl.u32 %v1699, 7
          %v1701 = vsub.s32 4, %v1700
          %v1702 = vrot.slane %v1433, %v1701
          %v1703 = vlaneseq
          %v1704 = vshrl.u32 %v1703, 7
          %v1705 = vsub.s32 5, %v1704
          %v1706 = vrot.slane %v1433, %v1705
          %v1707 = vlaneseq
          %v1708 = vshrl.u32 %v1707, 7
          %v1709 = vsub.s32 6, %v1708
          %v1710 = vrot.slane %v1433, %v1709
          %v1711 = vlaneseq
          %v1712 = vshrl.u32 %v1711, 7
          %v1713 = vsub.s32 7, %v1712
          %v1714 = vrot.slane %v1433, %v1713
          %v1715 = vlaneseq
          %v1716 = vshrl.u32 %v1715, 7
          %v1717 = vsub.s32 0, %v1716
          %v1718 = vrot.slane %v1434, %v1717
          %v1719 = vlaneseq
          %v1720 = vshrl.u32 %v1719, 7
          %v1721 = vsub.s32 1, %v1720
          %v1722 = vrot.slane %v1434, %v1721
          %v1723 = vlaneseq
          %v1724 = vshrl.u32 %v1723, 7
          %v1725 = vsub.s32 2, %v1724
          %v1726 = vrot.slane %v1434, %v1725
          %v1727 = vlaneseq
          %v1728 = vshrl.u32 %v1727, 7
          %v1729 = vsub.s32 3, %v1728
          %v1730 = vrot.slane %v1434, %v1729
          %v1731 = vlaneseq
          %v1732 = vshrl.u32 %v1731, 7
          %v1733 = vsub.s32 4, %v1732
          %v1734 = vrot.slane %v1434, %v1733
          %v1735 = vlaneseq
          %v1736 = vshrl.u32 %v1735, 7
          %v1737 = vsub.s32 5, %v1736
          %v1738 = vrot.slane %v1434, %v1737
          %v1739 = vlaneseq
          %v1740 = vshrl.u32 %v1739, 7
          %v1741 = vsub.s32 6, %v1740
          %v1742 = vrot.slane %v1434, %v1741
          %v1743 = vlaneseq
          %v1744 = vshrl.u32 %v1743, 7
          %v1745 = vsub.s32 7, %v1744
          %v1746 = vrot.slane %v1434, %v1745
          %v1747 = vlaneseq
          %v1748 = vshrl.u32 %v1747, 7
          %v1749 = vsub.s32 0, %v1748
          %v1750 = vrot.slane %v1435, %v1749
          %v1751 = vlaneseq
          %v1752 = vshrl.u32 %v1751, 7
          %v1753 = vsub.s32 1, %v1752
          %v1754 = vrot.slane %v1435, %v1753
          %v1755 = vlaneseq
          %v1756 = vshrl.u32 %v1755, 7
          %v1757 = vsub.s32 2, %v1756
          %v1758 = vrot.slane %v1435, %v1757
          %v1759 = vlaneseq
          %v1760 = vshrl.u32 %v1759, 7
          %v1761 = vsub.s32 3, %v1760
          %v1762 = vrot.slane %v1435, %v1761
          %v1763 = vlaneseq
          %v1764 = vshrl.u32 %v1763, 7
          %v1765 = vsub.s32 4, %v1764
          %v1766 = vrot.slane %v1435, %v1765
          %v1767 = vlaneseq
          %v1768 = vshrl.u32 %v1767, 7
          %v1769 = vsub.s32 5, %v1768
          %v1770 = vrot.slane %v1435, %v1769
          %v1771 = vlaneseq
          %v1772 = vshrl.u32 %v1771, 7
          %v1773 = vsub.s32 6, %v1772
          %v1774 = vrot.slane %v1435, %v1773
          %v1775 = vlaneseq
          %v1776 = vshrl.u32 %v1775, 7
          %v1777 = vsub.s32 7, %v1776
          %v1778 = vrot.slane %v1435, %v1777
          %v1779 = vlaneseq
          %v1780 = vshrl.u32 %v1779, 7
          %v1781 = vsub.s32 0, %v1780
          %v1782 = vrot.slane %v1436, %v1781
          %v1783 = vlaneseq
          %v1784 = vshrl.u32 %v1783, 7
          %v1785 = vsub.s32 1, %v1784
          %v1786 = vrot.slane %v1436, %v1785
          %v1787 = vlaneseq
          %v1788 = vshrl.u32 %v1787, 7
          %v1789 = vsub.s32 2, %v1788
          %v1790 = vrot.slane %v1436, %v1789
          %v1791 = vlaneseq
          %v1792 = vshrl.u32 %v1791, 7
          %v1793 = vsub.s32 3, %v1792
          %v1794 = vrot.slane %v1436, %v1793
          %v1795 = vlaneseq
          %v1796 = vshrl.u32 %v1795, 7
          %v1797 = vsub.s32 4, %v1796
          %v1798 = vrot.slane %v1436, %v1797
          %v1799 = vlaneseq
          %v1800 = vshrl.u32 %v1799, 7
          %v1801 = vsub.s32 5, %v1800
          %v1802 = vrot.slane %v1436, %v1801
          %v1803 = vlaneseq
          %v1804 = vshrl.u32 %v1803, 7
          %v1805 = vsub.s32 6, %v1804
          %v1806 = vrot.slane %v1436, %v1805
          %v1807 = vlaneseq
          %v1808 = vshrl.u32 %v1807, 7
          %v1809 = vsub.s32 7, %v1808
          %v1810 = vrot.slane %v1436, %v1809
          %v1811 = vlaneseq
          %v1812 = vshrl.u32 %v1811, 7
          %v1813 = vsub.s32 0, %v1812
          %v1814 = vrot.slane %v1437, %v1813
          %v1815 = vlaneseq
          %v1816 = vshrl.u32 %v1815, 7
          %v1817 = vsub.s32 1, %v1816
          %v1818 = vrot.slane %v1437, %v1817
          %v1819 = vlaneseq
          %v1820 = vshrl.u32 %v1819, 7
          %v1821 = vsub.s32 2, %v1820
          %v1822 = vrot.slane %v1437, %v1821
          %v1823 = vlaneseq
          %v1824 = vshrl.u32 %v1823, 7
          %v1825 = vsub.s32 3, %v1824
          %v1826 = vrot.slane %v1437, %v1825
          %v1827 = vlaneseq
          %v1828 = vshrl.u32 %v1827, 7
          %v1829 = vsub.s32 4, %v1828
          %v1830 = vrot.slane %v1437, %v1829
          %v1831 = vlaneseq
          %v1832 = vshrl.u32 %v1831, 7
          %v1833 = vsub.s32 5, %v1832
          %v1834 = vrot.slane %v1437, %v1833
          %v1835 = vlaneseq
          %v1836 = vshrl.u32 %v1835, 7
          %v1837 = vsub.s32 6, %v1836
          %v1838 = vrot.slane %v1437, %v1837
          %v1839 = vlaneseq
          %v1840 = vshrl.u32 %v1839, 7
          %v1841 = vsub.s32 7, %v1840
          %v1842 = vrot.slane %v1437, %v1841
          %v1843 = vlaneseq
          %v1844 = vshrl.u32 %v1843, 7
          %v1845 = vsub.s32 0, %v1844
          %v1846 = vrot.slane %v1438, %v1845
          %v1847 = vlaneseq
          %v1848 = vshrl.u32 %v1847, 7
          %v1849 = vsub.s32 1, %v1848
          %v1850 = vrot.slane %v1438, %v1849
          %v1851 = vlaneseq
          %v1852 = vshrl.u32 %v1851, 7
          %v1853 = vsub.s32 2, %v1852
          %v1854 = vrot.slane %v1438, %v1853
          %v1855 = vlaneseq
          %v1856 = vshrl.u32 %v1855, 7
          %v1857 = vsub.s32 3, %v1856
          %v1858 = vrot.slane %v1438, %v1857
          %v1859 = vlaneseq
          %v1860 = vshrl.u32 %v1859, 7
          %v1861 = vsub.s32 4, %v1860
          %v1862 = vrot.slane %v1438, %v1861
          %v1863 = vlaneseq
          %v1864 = vshrl.u32 %v1863, 7
          %v1865 = vsub.s32 5, %v1864
          %v1866 = vrot.slane %v1438, %v1865
          %v1867 = vlaneseq
          %v1868 = vshrl.u32 %v1867, 7
          %v1869 = vsub.s32 6, %v1868
          %v1870 = vrot.slane %v1438, %v1869
          %v1871 = vlaneseq
          %v1872 = vshrl.u32 %v1871, 7
          %v1873 = vsub.s32 7, %v1872
          %v1874 = vrot.slane %v1438, %v1873
          %v1875 = vlaneseq
          %v1876 = vshrl.u32 %v1875, 7
          %v1877 = vsub.s32 0, %v1876
          %v1878 = vrot.slane %v1439, %v1877
          %v1879 = vlaneseq
          %v1880 = vshrl.u32 %v1879, 7
          %v1881 = vsub.s32 1, %v1880
          %v1882 = vrot.slane %v1439, %v1881
          %v1883 = vlaneseq
          %v1884 = vshrl.u32 %v1883, 7
          %v1885 = vsub.s32 2, %v1884
          %v1886 = vrot.slane %v1439, %v1885
          %v1887 = vlaneseq
          %v1888 = vshrl.u32 %v1887, 7
          %v1889 = vsub.s32 3, %v1888
          %v1890 = vrot.slane %v1439, %v1889
          %v1891 = vlaneseq
          %v1892 = vshrl.u32 %v1891, 7
          %v1893 = vsub.s32 4, %v1892
          %v1894 = vrot.slane %v1439, %v1893
          %v1895 = vlaneseq
          %v1896 = vshrl.u32 %v1895, 7
          %v1897 = vsub.s32 5, %v1896
          %v1898 = vrot.slane %v1439, %v1897
          %v1899 = vlaneseq
          %v1900 = vshrl.u32 %v1899, 7
          %v1901 = vsub.s32 6, %v1900
          %v1902 = vrot.slane %v1439, %v1901
          %v1903 = vlaneseq
          %v1904 = vshrl.u32 %v1903, 7
          %v1905 = vsub.s32 7, %v1904
          %v1906 = vrot.slane %v1439, %v1905
          %v1907 = vlaneseq
          %v1908 = vshrl.u32 %v1907, 7
          %v1909 = vsub.s32 0, %v1908
          %v1910 = vrot.slane %v1440, %v1909
          %v1911 = vlaneseq
          %v1912 = vshrl.u32 %v1911, 7
          %v1913 = vsub.s32 1, %v1912
          %v1914 = vrot.slane %v1440, %v1913
          %v1915 = vlaneseq
          %v1916 = vshrl.u32 %v1915, 7
          %v1917 = vsub.s32 2, %v1916
          %v1918 = vrot.slane %v1440, %v1917
          %v1919 = vlaneseq
          %v1920 = vshrl.u32 %v1919, 7
          %v1921 = vsub.s32 3, %v1920
          %v1922 = vrot.slane %v1440, %v1921
          %v1923 = vlaneseq
          %v1924 = vshrl.u32 %v1923, 7
          %v1925 = vsub.s32 4, %v1924
          %v1926 = vrot.slane %v1440, %v1925
          %v1927 = vlaneseq
          %v1928 = vshrl.u32 %v1927, 7
          %v1929 = vsub.s32 5, %v1928
          %v1930 = vrot.slane %v1440, %v1929
          %v1931 = vlaneseq
          %v1932 = vshrl.u32 %v1931, 7
          %v1933 = vsub.s32 6, %v1932
          %v1934 = vrot.slane %v1440, %v1933
          %v1935 = vlaneseq
          %v1936 = vshrl.u32 %v1935, 7
          %v1937 = vsub.s32 7, %v1936
          %v1938 = vrot.slane %v1440, %v1937
          %v1939 = vlaneseq
          %v1940 = vshrl.u32 %v1939, 7
          %v1941 = vsub.s32 0, %v1940
          %v1942 = vrot.slane %v1441, %v1941
          %v1943 = vlaneseq
          %v1944 = vshrl.u32 %v1943, 7
          %v1945 = vsub.s32 1, %v1944
          %v1946 = vrot.slane %v1441, %v1945
          %v1947 = vlaneseq
          %v1948 = vshrl.u32 %v1947, 7
          %v1949 = vsub.s32 2, %v1948
          %v1950 = vrot.slane %v1441, %v1949
          %v1951 = vlaneseq
          %v1952 = vshrl.u32 %v1951, 7
          %v1953 = vsub.s32 3, %v1952
          %v1954 = vrot.slane %v1441, %v1953
          %v1955 = vlaneseq
          %v1956 = vshrl.u32 %v1955, 7
          %v1957 = vsub.s32 4, %v1956
          %v1958 = vrot.slane %v1441, %v1957
          %v1959 = vlaneseq
          %v1960 = vshrl.u32 %v1959, 7
          %v1961 = vsub.s32 5, %v1960
          %v1962 = vrot.slane %v1441, %v1961
          %v1963 = vlaneseq
          %v1964 = vshrl.u32 %v1963, 7
          %v1965 = vsub.s32 6, %v1964
          %v1966 = vrot.slane %v1441, %v1965
          %v1967 = vlaneseq
          %v1968 = vshrl.u32 %v1967, 7
          %v1969 = vsub.s32 7, %v1968
          %v1970 = vrot.slane %v1441, %v1969
          %v1971 = vlaneseq
          %v1972 = vshrl.u32 %v1971, 7
          %v1973 = vsub.s32 0, %v1972
          %v1974 = vrot.slane %v1442, %v1973
          %v1975 = vlaneseq
          %v1976 = vshrl.u32 %v1975, 7
          %v1977 = vsub.s32 1, %v1976
          %v1978 = vrot.slane %v1442, %v1977
          %v1979 = vlaneseq
          %v1980 = vshrl.u32 %v1979, 7
          %v1981 = vsub.s32 2, %v1980
          %v1982 = vrot.slane %v1442, %v1981
          %v1983 = vlaneseq
          %v1984 = vshrl.u32 %v1983, 7
          %v1985 = vsub.s32 3, %v1984
          %v1986 = vrot.slane %v1442, %v1985
          %v1987 = vlaneseq
          %v1988 = vshrl.u32 %v1987, 7
          %v1989 = vsub.s32 4, %v1988
          %v1990 = vrot.slane %v1442, %v1989
          %v1991 = vlaneseq
          %v1992 = vshrl.u32 %v1991, 7
          %v1993 = vsub.s32 5, %v1992
          %v1994 = vrot.slane %v1442, %v1993
          %v1995 = vlaneseq
          %v1996 = vshrl.u32 %v1995, 7
          %v1997 = vsub.s32 6, %v1996
          %v1998 = vrot.slane %v1442, %v1997
          %v1999 = vlaneseq
          %v2000 = vshrl.u32 %v1999, 7
          %v2001 = vsub.s32 7, %v2000
          %v2002 = vrot.slane %v1442, %v2001
          %v2003 = vlaneseq
          %v2004 = vshrl.u32 %v2003, 7
          %v2005 = vsub.s32 0, %v2004
          %v2006 = vrot.slane %v1443, %v2005
          %v2007 = vlaneseq
          %v2008 = vshrl.u32 %v2007, 7
          %v2009 = vsub.s32 1, %v2008
          %v2010 = vrot.slane %v1443, %v2009
          %v2011 = vlaneseq
          %v2012 = vshrl.u32 %v2011, 7
          %v2013 = vsub.s32 2, %v2012
          %v2014 = vrot.slane %v1443, %v2013
          %v2015 = vlaneseq
          %v2016 = vshrl.u32 %v2015, 7
          %v2017 = vsub.s32 3, %v2016
          %v2018 = vrot.slane %v1443, %v2017
          %v2019 = vlaneseq
          %v2020 = vshrl.u32 %v2019, 7
          %v2021 = vsub.s32 4, %v2020
          %v2022 = vrot.slane %v1443, %v2021
          %v2023 = vlaneseq
          %v2024 = vshrl.u32 %v2023, 7
          %v2025 = vsub.s32 5, %v2024
          %v2026 = vrot.slane %v1443, %v2025
          %v2027 = vlaneseq
          %v2028 = vshrl.u32 %v2027, 7
          %v2029 = vsub.s32 6, %v2028
          %v2030 = vrot.slane %v1443, %v2029
          %v2031 = vlaneseq
          %v2032 = vshrl.u32 %v2031, 7
          %v2033 = vsub.s32 7, %v2032
          %v2034 = vrot.slane %v1443, %v2033
          %v2035 = vlaneseq
          %v2036 = vshrl.u32 %v2035, 7
          %v2037 = vsub.s32 0, %v2036
          %v2038 = vrot.slane %v1444, %v2037
          %v2039 = vlaneseq
          %v2040 = vshrl.u32 %v2039, 7
          %v2041 = vsub.s32 1, %v2040
          %v2042 = vrot.slane %v1444, %v2041
          %v2043 = vlaneseq
          %v2044 = vshrl.u32 %v2043, 7
          %v2045 = vsub.s32 2, %v2044
          %v2046 = vrot.slane %v1444, %v2045
          %v2047 = vlaneseq
          %v2048 = vshrl.u32 %v2047, 7
          %v2049 = vsub.s32 3, %v2048
          %v2050 = vrot.slane %v1444, %v2049
          %v2051 = vlaneseq
          %v2052 = vshrl.u32 %v2051, 7
          %v2053 = vsub.s32 4, %v2052
          %v2054 = vrot.slane %v1444, %v2053
          %v2055 = vlaneseq
          %v2056 = vshrl.u32 %v2055, 7
          %v2057 = vsub.s32 5, %v2056
          %v2058 = vrot.slane %v1444, %v2057
          %v2059 = vlaneseq
          %v2060 = vshrl.u32 %v2059, 7
          %v2061 = vsub.s32 6, %v2060
          %v2062 = vrot.slane %v1444, %v2061
          %v2063 = vlaneseq
          %v2064 = vshrl.u32 %v2063, 7
          %v2065 = vsub.s32 7, %v2064
          %v2066 = vrot.slane %v1444, %v2065
          %v2067 = vlaneseq
          %v2068 = vshrl.u32 %v2067, 7
          %v2069 = vsub.s32 0, %v2068
          %v2070 = vrot.slane %v1445, %v2069
          %v2071 = vlaneseq
          %v2072 = vshrl.u32 %v2071, 7
          %v2073 = vsub.s32 1, %v2072
          %v2074 = vrot.slane %v1445, %v2073
          %v2075 = vlaneseq
          %v2076 = vshrl.u32 %v2075, 7
          %v2077 = vsub.s32 2, %v2076
          %v2078 = vrot.slane %v1445, %v2077
          %v2079 = vlaneseq
          %v2080 = vshrl.u32 %v2079, 7
          %v2081 = vsub.s32 3, %v2080
          %v2082 = vrot.slane %v1445, %v2081
          %v2083 = vlaneseq
          %v2084 = vshrl.u32 %v2083, 7
          %v2085 = vsub.s32 4, %v2084
          %v2086 = vrot.slane %v1445, %v2085
          %v2087 = vlaneseq
          %v2088 = vshrl.u32 %v2087, 7
          %v2089 = vsub.s32 5, %v2088
          %v2090 = vrot.slane %v1445, %v2089
          %v2091 = vlaneseq
          %v2092 = vshrl.u32 %v2091, 7
          %v2093 = vsub.s32 6, %v2092
          %v2094 = vrot.slane %v1445, %v2093
          %v2095 = vlaneseq
          %v2096 = vshrl.u32 %v2095, 7
          %v2097 = vsub.s32 7, %v2096
          %v2098 = vrot.slane %v1445, %v2097
          %v2099 = vlaneseq
          %v2100 = vshrl.u32 %v2099, 7
          %v2101 = vsub.s32 0, %v2100
          %v2102 = vrot.slane %v1446, %v2101
          %v2103 = vlaneseq
          %v2104 = vshrl.u32 %v2103, 7
          %v2105 = vsub.s32 1, %v2104
          %v2106 = vrot.slane %v1446, %v2105
          %v2107 = vlaneseq
          %v2108 = vshrl.u32 %v2107, 7
          %v2109 = vsub.s32 2, %v2108
          %v2110 = vrot.slane %v1446, %v2109
          %v2111 = vlaneseq
          %v2112 = vshrl.u32 %v2111, 7
          %v2113 = vsub.s32 3, %v2112
          %v2114 = vrot.slane %v1446, %v2113
          %v2115 = vlaneseq
          %v2116 = vshrl.u32 %v2115, 7
          %v2117 = vsub.s32 4, %v2116
          %v2118 = vrot.slane %v1446, %v2117
          %v2119 = vlaneseq
          %v2120 = vshrl.u32 %v2119, 7
          %v2121 = vsub.s32 5, %v2120
          %v2122 = vrot.slane %v1446, %v2121
          %v2123 = vlaneseq
          %v2124 = vshrl.u32 %v2123, 7
          %v2125 = vsub.s32 6, %v2124
          %v2126 = vrot.slane %v1446, %v2125
          %v2127 = vlaneseq
          %v2128 = vshrl.u32 %v2127, 7
          %v2129 = vsub.s32 7, %v2128
          %v2130 = vrot.slane %v1446, %v2129
          %v2131 = vlaneseq
          %v2132 = vshrl.u32 %v2131, 7
          %v2133 = vsub.s32 0, %v2132
          %v2134 = vrot.slane %v1447, %v2133
          %v2135 = vlaneseq
          %v2136 = vshrl.u32 %v2135, 7
          %v2137 = vsub.s32 1, %v2136
          %v2138 = vrot.slane %v1447, %v2137
          %v2139 = vlaneseq
          %v2140 = vshrl.u32 %v2139, 7
          %v2141 = vsub.s32 2, %v2140
          %v2142 = vrot.slane %v1447, %v2141
          %v2143 = vlaneseq
          %v2144 = vshrl.u32 %v2143, 7
          %v2145 = vsub.s32 3, %v2144
          %v2146 = vrot.slane %v1447, %v2145
          %v2147 = vlaneseq
          %v2148 = vshrl.u32 %v2147, 7
          %v2149 = vsub.s32 4, %v2148
          %v2150 = vrot.slane %v1447, %v2149
          %v2151 = vlaneseq
          %v2152 = vshrl.u32 %v2151, 7
          %v2153 = vsub.s32 5, %v2152
          %v2154 = vrot.slane %v1447, %v2153
          %v2155 = vlaneseq
          %v2156 = vshrl.u32 %v2155, 7
          %v2157 = vsub.s32 6, %v2156
          %v2158 = vrot.slane %v1447, %v2157
          %v2159 = vlaneseq
          %v2160 = vshrl.u32 %v2159, 7
          %v2161 = vsub.s32 7, %v2160
          %v2162 = vrot.slane %v1447, %v2161
          %v2163 = vlaneseq
          %v2164 = vshrl.u32 %v2163, 7
          %v2165 = vsub.s32 0, %v2164
          %v2166 = vrot.slane %v1448, %v2165
          %v2167 = vlaneseq
          %v2168 = vshrl.u32 %v2167, 7
          %v2169 = vsub.s32 1, %v2168
          %v2170 = vrot.slane %v1448, %v2169
          %v2171 = vlaneseq
          %v2172 = vshrl.u32 %v2171, 7
          %v2173 = vsub.s32 2, %v2172
          %v2174 = vrot.slane %v1448, %v2173
          %v2175 = vlaneseq
          %v2176 = vshrl.u32 %v2175, 7
          %v2177 = vsub.s32 3, %v2176
          %v2178 = vrot.slane %v1448, %v2177
          %v2179 = vlaneseq
          %v2180 = vshrl.u32 %v2179, 7
          %v2181 = vsub.s32 4, %v2180
          %v2182 = vrot.slane %v1448, %v2181
          %v2183 = vlaneseq
          %v2184 = vshrl.u32 %v2183, 7
          %v2185 = vsub.s32 5, %v2184
          %v2186 = vrot.slane %v1448, %v2185
          %v2187 = vlaneseq
          %v2188 = vshrl.u32 %v2187, 7
          %v2189 = vsub.s32 6, %v2188
          %v2190 = vrot.slane %v1448, %v2189
          %v2191 = vlaneseq
          %v2192 = vshrl.u32 %v2191, 7
          %v2193 = vsub.s32 7, %v2192
          %v2194 = vrot.slane %v1448, %v2193
          %v2195 = vlaneseq
          %v2196 = vshrl.u32 %v2195, 7
          %v2197 = vsub.s32 0, %v2196
          %v2198 = vrot.slane %v1449, %v2197
          %v2199 = vlaneseq
          %v2200 = vshrl.u32 %v2199, 7
          %v2201 = vsub.s32 1, %v2200
          %v2202 = vrot.slane %v1449, %v2201
          %v2203 = vlaneseq
          %v2204 = vshrl.u32 %v2203, 7
          %v2205 = vsub.s32 2, %v2204
          %v2206 = vrot.slane %v1449, %v2205
          %v2207 = vlaneseq
          %v2208 = vshrl.u32 %v2207, 7
          %v2209 = vsub.s32 3, %v2208
          %v2210 = vrot.slane %v1449, %v2209
          %v2211 = vlaneseq
          %v2212 = vshrl.u32 %v2211, 7
          %v2213 = vsub.s32 4, %v2212
          %v2214 = vrot.slane %v1449, %v2213
          %v2215 = vlaneseq
          %v2216 = vshrl.u32 %v2215, 7
          %v2217 = vsub.s32 5, %v2216
          %v2218 = vrot.slane %v1449, %v2217
          %v2219 = vlaneseq
          %v2220 = vshrl.u32 %v2219, 7
          %v2221 = vsub.s32 6, %v2220
          %v2222 = vrot.slane %v1449, %v2221
          %v2223 = vlaneseq
          %v2224 = vshrl.u32 %v2223, 7
          %v2225 = vsub.s32 7, %v2224
          %v2226 = vrot.slane %v1449, %v2225
          %v2227 = vlaneseq
          %v2228 = vshrl.u32 %v2227, 7
          %v2229 = vsub.s32 0, %v2228
          %v2230 = vrot.slane %v1450, %v2229
          %v2231 = vlaneseq
          %v2232 = vshrl.u32 %v2231, 7
          %v2233 = vsub.s32 1, %v2232
          %v2234 = vrot.slane %v1450, %v2233
          %v2235 = vlaneseq
          %v2236 = vshrl.u32 %v2235, 7
          %v2237 = vsub.s32 2, %v2236
          %v2238 = vrot.slane %v1450, %v2237
          %v2239 = vlaneseq
          %v2240 = vshrl.u32 %v2239, 7
          %v2241 = vsub.s32 3, %v2240
          %v2242 = vrot.slane %v1450, %v2241
          %v2243 = vlaneseq
          %v2244 = vshrl.u32 %v2243, 7
          %v2245 = vsub.s32 4, %v2244
          %v2246 = vrot.slane %v1450, %v2245
          %v2247 = vlaneseq
          %v2248 = vshrl.u32 %v2247, 7
          %v2249 = vsub.s32 5, %v2248
          %v2250 = vrot.slane %v1450, %v2249
          %v2251 = vlaneseq
          %v2252 = vshrl.u32 %v2251, 7
          %v2253 = vsub.s32 6, %v2252
          %v2254 = vrot.slane %v1450, %v2253
          %v2255 = vlaneseq
          %v2256 = vshrl.u32 %v2255, 7
          %v2257 = vsub.s32 7, %v2256
          %v2258 = vrot.slane %v1450, %v2257
          %v2259 = vlaneseq
          %v2260 = vshrl.u32 %v2259, 7
          %v2261 = vsub.s32 0, %v2260
          %v2262 = vrot.slane %v1451, %v2261
          %v2263 = vlaneseq
          %v2264 = vshrl.u32 %v2263, 7
          %v2265 = vsub.s32 1, %v2264
          %v2266 = vrot.slane %v1451, %v2265
          %v2267 = vlaneseq
          %v2268 = vshrl.u32 %v2267, 7
          %v2269 = vsub.s32 2, %v2268
          %v2270 = vrot.slane %v1451, %v2269
          %v2271 = vlaneseq
          %v2272 = vshrl.u32 %v2271, 7
          %v2273 = vsub.s32 3, %v2272
          %v2274 = vrot.slane %v1451, %v2273
          %v2275 = vlaneseq
          %v2276 = vshrl.u32 %v2275, 7
          %v2277 = vsub.s32 4, %v2276
          %v2278 = vrot.slane %v1451, %v2277
          %v2279 = vlaneseq
          %v2280 = vshrl.u32 %v2279, 7
          %v2281 = vsub.s32 5, %v2280
          %v2282 = vrot.slane %v1451, %v2281
          %v2283 = vlaneseq
          %v2284 = vshrl.u32 %v2283, 7
          %v2285 = vsub.s32 6, %v2284
          %v2286 = vrot.slane %v1451, %v2285
          %v2287 = vlaneseq
          %v2288 = vshrl.u32 %v2287, 7
          %v2289 = vsub.s32 7, %v2288
          %v2290 = vrot.slane %v1451, %v2289
          %v2291 = vlaneseq
          %v2292 = vshrl.u32 %v2291, 7
          %v2293 = vsub.s32 0, %v2292
          %v2294 = vrot.slane %v1452, %v2293
          %v2295 = vlaneseq
          %v2296 = vshrl.u32 %v2295, 7
          %v2297 = vsub.s32 1, %v2296
          %v2298 = vrot.slane %v1452, %v2297
          %v2299 = vlaneseq
          %v2300 = vshrl.u32 %v2299, 7
          %v2301 = vsub.s32 2, %v2300
          %v2302 = vrot.slane %v1452, %v2301
          %v2303 = vlaneseq
          %v2304 = vshrl.u32 %v2303, 7
          %v2305 = vsub.s32 3, %v2304
          %v2306 = vrot.slane %v1452, %v2305
          %v2307 = vlaneseq
          %v2308 = vshrl.u32 %v2307, 7
          %v2309 = vsub.s32 4, %v2308
          %v2310 = vrot.slane %v1452, %v2309
          %v2311 = vlaneseq
          %v2312 = vshrl.u32 %v2311, 7
          %v2313 = vsub.s32 5, %v2312
          %v2314 = vrot.slane %v1452, %v2313
          %v2315 = vlaneseq
          %v2316 = vshrl.u32 %v2315, 7
          %v2317 = vsub.s32 6, %v2316
          %v2318 = vrot.slane %v1452, %v2317
          %v2319 = vlaneseq
          %v2320 = vshrl.u32 %v2319, 7
          %v2321 = vsub.s32 7, %v2320
          %v2322 = vrot.slane %v1452, %v2321
          %v2323 = vlaneseq
          %v2324 = vshrl.u32 %v2323, 7
          %v2325 = vsub.s32 0, %v2324
          %v2326 = vrot.slane %v1453, %v2325
          %v2327 = vlaneseq
          %v2328 = vshrl.u32 %v2327, 7
          %v2329 = vsub.s32 1, %v2328
          %v2330 = vrot.slane %v1453, %v2329
          %v2331 = vlaneseq
          %v2332 = vshrl.u32 %v2331, 7
          %v2333 = vsub.s32 2, %v2332
          %v2334 = vrot.slane %v1453, %v2333
          %v2335 = vlaneseq
          %v2336 = vshrl.u32 %v2335, 7
          %v2337 = vsub.s32 3, %v2336
          %v2338 = vrot.slane %v1453, %v2337
          %v2339 = vlaneseq
          %v2340 = vshrl.u32 %v2339, 7
          %v2341 = vsub.s32 4, %v2340
          %v2342 = vrot.slane %v1453, %v2341
          %v2343 = vlaneseq
          %v2344 = vshrl.u32 %v2343, 7
          %v2345 = vsub.s32 5, %v2344
          %v2346 = vrot.slane %v1453, %v2345
          %v2347 = vlaneseq
          %v2348 = vshrl.u32 %v2347, 7
          %v2349 = vsub.s32 6, %v2348
          %v2350 = vrot.slane %v1453, %v2349
          %v2351 = vlaneseq
          %v2352 = vshrl.u32 %v2351, 7
          %v2353 = vsub.s32 7, %v2352
          %v2354 = vrot.slane %v1453, %v2353
          %v2355 = vlaneseq
          %v2356 = vshrl.u32 %v2355, 7
          %v2357 = vsub.s32 0, %v2356
          %v2358 = vrot.slane %v1454, %v2357
          %v2359 = vlaneseq
          %v2360 = vshrl.u32 %v2359, 7
          %v2361 = vsub.s32 1, %v2360
          %v2362 = vrot.slane %v1454, %v2361
          %v2363 = vlaneseq
          %v2364 = vshrl.u32 %v2363, 7
          %v2365 = vsub.s32 2, %v2364
          %v2366 = vrot.slane %v1454, %v2365
          %v2367 = vlaneseq
          %v2368 = vshrl.u32 %v2367, 7
          %v2369 = vsub.s32 3, %v2368
          %v2370 = vrot.slane %v1454, %v2369
          %v2371 = vlaneseq
          %v2372 = vshrl.u32 %v2371, 7
          %v2373 = vsub.s32 4, %v2372
          %v2374 = vrot.slane %v1454, %v2373
          %v2375 = vlaneseq
          %v2376 = vshrl.u32 %v2375, 7
          %v2377 = vsub.s32 5, %v2376
          %v2378 = vrot.slane %v1454, %v2377
          %v2379 = vlaneseq
          %v2380 = vshrl.u32 %v2379, 7
          %v2381 = vsub.s32 6, %v2380
          %v2382 = vrot.slane %v1454, %v2381
          %v2383 = vlaneseq
          %v2384 = vshrl.u32 %v2383, 7
          %v2385 = vsub.s32 7, %v2384
          %v2386 = vrot.slane %v1454, %v2385
          %v2387 = vlaneseq
          %v2388 = vshrl.u32 %v2387, 7
          %v2389 = vsub.s32 0, %v2388
          %v2390 = vrot.slane %v1455, %v2389
          %v2391 = vlaneseq
          %v2392 = vshrl.u32 %v2391, 7
          %v2393 = vsub.s32 1, %v2392
          %v2394 = vrot.slane %v1455, %v2393
          %v2395 = vlaneseq
          %v2396 = vshrl.u32 %v2395, 7
          %v2397 = vsub.s32 2, %v2396
          %v2398 = vrot.slane %v1455, %v2397
          %v2399 = vlaneseq
          %v2400 = vshrl.u32 %v2399, 7
          %v2401 = vsub.s32 3, %v2400
          %v2402 = vrot.slane %v1455, %v2401
          %v2403 = vlaneseq
          %v2404 = vshrl.u32 %v2403, 7
          %v2405 = vsub.s32 4, %v2404
          %v2406 = vrot.slane %v1455, %v2405
          %v2407 = vlaneseq
          %v2408 = vshrl.u32 %v2407, 7
          %v2409 = vsub.s32 5, %v2408
          %v2410 = vrot.slane %v1455, %v2409
          %v2411 = vlaneseq
          %v2412 = vshrl.u32 %v2411, 7
          %v2413 = vsub.s32 6, %v2412
          %v2414 = vrot.slane %v1455, %v2413
          %v2415 = vlaneseq
          %v2416 = vshrl.u32 %v2415, 7
          %v2417 = vsub.s32 7, %v2416
          %v2418 = vrot.slane %v1455, %v2417
          %v2419 = vlaneseq
          %v2420 = vshrl.u32 %v2419, 7
          %v2421 = vsub.s32 0, %v2420
          %v2422 = vrot.slane %v1456, %v2421
          %v2423 = vlaneseq
          %v2424 = vshrl.u32 %v2423, 7
          %v2425 = vsub.s32 1, %v2424
          %v2426 = vrot.slane %v1456, %v2425
          %v2427 = vlaneseq
          %v2428 = vshrl.u32 %v2427, 7
          %v2429 = vsub.s32 2, %v2428
          %v2430 = vrot.slane %v1456, %v2429
          %v2431 = vlaneseq
          %v2432 = vshrl.u32 %v2431, 7
          %v2433 = vsub.s32 3, %v2432
          %v2434 = vrot.slane %v1456, %v2433
          %v2435 = vlaneseq
          %v2436 = vshrl.u32 %v2435, 7
          %v2437 = vsub.s32 4, %v2436
          %v2438 = vrot.slane %v1456, %v2437
          %v2439 = vlaneseq
          %v2440 = vshrl.u32 %v2439, 7
          %v2441 = vsub.s32 5, %v2440
          %v2442 = vrot.slane %v1456, %v2441
          %v2443 = vlaneseq
          %v2444 = vshrl.u32 %v2443, 7
          %v2445 = vsub.s32 6, %v2444
          %v2446 = vrot.slane %v1456, %v2445
          %v2447 = vlaneseq
          %v2448 = vshrl.u32 %v2447, 7
          %v2449 = vsub.s32 7, %v2448
          %v2450 = vrot.slane %v1456, %v2449
          %v2451 = vlaneseq
          %v2452 = vshrl.u32 %v2451, 7
          %v2453 = vsub.s32 0, %v2452
          %v2454 = vrot.slane %v1457, %v2453
          %v2455 = vlaneseq
          %v2456 = vshrl.u32 %v2455, 7
          %v2457 = vsub.s32 1, %v2456
          %v2458 = vrot.slane %v1457, %v2457
          %v2459 = vlaneseq
          %v2460 = vshrl.u32 %v2459, 7
          %v2461 = vsub.s32 2, %v2460
          %v2462 = vrot.slane %v1457, %v2461
          %v2463 = vlaneseq
          %v2464 = vshrl.u32 %v2463, 7
          %v2465 = vsub.s32 3, %v2464
          %v2466 = vrot.slane %v1457, %v2465
          %v2467 = vlaneseq
          %v2468 = vshrl.u32 %v2467, 7
          %v2469 = vsub.s32 4, %v2468
          %v2470 = vrot.slane %v1457, %v2469
          %v2471 = vlaneseq
          %v2472 = vshrl.u32 %v2471, 7
          %v2473 = vsub.s32 5, %v2472
          %v2474 = vrot.slane %v1457, %v2473
          %v2475 = vlaneseq
          %v2476 = vshrl.u32 %v2475, 7
          %v2477 = vsub.s32 6, %v2476
          %v2478 = vrot.slane %v1457, %v2477
          %v2479 = vlaneseq
          %v2480 = vshrl.u32 %v2479, 7
          %v2481 = vsub.s32 7, %v2480
          %v2482 = vrot.slane %v1457, %v2481
          %v2483 = vlaneseq
          %v2484 = vshrl.u32 %v2483, 7
          %v2485 = vsub.s32 0, %v2484
          %v2486 = vrot.slane %v1458, %v2485
          %v2487 = vlaneseq
          %v2488 = vshrl.u32 %v2487, 7
          %v2489 = vsub.s32 1, %v2488
          %v2490 = vrot.slane %v1458, %v2489
          %v2491 = vlaneseq
          %v2492 = vshrl.u32 %v2491, 7
          %v2493 = vsub.s32 2, %v2492
          %v2494 = vrot.slane %v1458, %v2493
          %v2495 = vlaneseq
          %v2496 = vshrl.u32 %v2495, 7
          %v2497 = vsub.s32 3, %v2496
          %v2498 = vrot.slane %v1458, %v2497
          %v2499 = vlaneseq
          %v2500 = vshrl.u32 %v2499, 7
          %v2501 = vsub.s32 4, %v2500
          %v2502 = vrot.slane %v1458, %v2501
          %v2503 = vlaneseq
          %v2504 = vshrl.u32 %v2503, 7
          %v2505 = vsub.s32 5, %v2504
          %v2506 = vrot.slane %v1458, %v2505
          %v2507 = vlaneseq
          %v2508 = vshrl.u32 %v2507, 7
          %v2509 = vsub.s32 6, %v2508
          %v2510 = vrot.slane %v1458, %v2509
          %v2511 = vlaneseq
          %v2512 = vshrl.u32 %v2511, 7
          %v2513 = vsub.s32 7, %v2512
          %v2514 = vrot.slane %v1458, %v2513
          %v2515 = vcombine.low %v1494, %v1498
          %v2516 = vcombine.low %v1502, %v1506
          %v2517 = vcombine.low %v1510, %v1514
          %v2518 = vcombine.low %v1518, %v1522
          %v2520 = vunpack.c.l.s4 1966171168
          %v2521 = vunpack.c.0.s8 %v2520
          %v2522 = vlaneseq
          %v2523 = vshrl.u32 %v2522, 7
          %v2524 = vsub.s32 %v2521, %v2523
          %v2525 = vrot.slane %v2515, %v2524
          %v2527 = vunpack.c.l.s4 1966171168
          %v2528 = vunpack.c.0.s8 %v2527
          %v2529 = vlaneseq
          %v2530 = vshrl.u32 %v2529, 7
          %v2531 = vsub.s32 %v2528, %v2530
          %v2532 = vrot.slane %v2516, %v2531
          %v2534 = vunpack.c.l.s4 1966171168
          %v2535 = vunpack.c.0.s8 %v2534
          %v2536 = vlaneseq
          %v2537 = vshrl.u32 %v2536, 7
          %v2538 = vsub.s32 %v2535, %v2537
          %v2539 = vrot.slane %v2517, %v2538
          %v2541 = vunpack.c.l.s4 1966171168
          %v2542 = vunpack.c.0.s8 %v2541
          %v2543 = vlaneseq
          %v2544 = vshrl.u32 %v2543, 7
          %v2545 = vsub.s32 %v2542, %v2544
          %v2546 = vrot.slane %v2518, %v2545
          %v2547 = vcombine.low %v2525, %v2532
          %v2548 = vcombine.low %v2539, %v2546
          %v2550 = vunpack.c.l.s4 1966171168
          %v2551 = vunpack.c.0.s8 %v2550
          %v2552 = vlaneseq
          %v2553 = vshrl.u32 %v2552, 7
          %v2554 = vsub.s32 %v2551, %v2553
          %v2555 = vrot.slane %v2547, %v2554
          %v2557 = vunpack.c.l.s4 1966171168
          %v2558 = vunpack.c.0.s8 %v2557
          %v2559 = vlaneseq
          %v2560 = vshrl.u32 %v2559, 7
          %v2561 = vsub.s32 %v2558, %v2560
          %v2562 = vrot.slane %v2548, %v2561
          %v2563 = vcombine.low %v2555, %v2562
          %v2564 = vcombine.low %v1526, %v1530
          %v2565 = vcombine.low %v1534, %v1538
          %v2566 = vcombine.low %v1542, %v1546
          %v2567 = vcombine.low %v1550, %v1554
          %v2569 = vunpack.c.l.s4 1966171168
          %v2570 = vunpack.c.0.s8 %v2569
          %v2571 = vlaneseq
          %v2572 = vshrl.u32 %v2571, 7
          %v2573 = vsub.s32 %v2570, %v2572
          %v2574 = vrot.slane %v2564, %v2573
          %v2576 = vunpack.c.l.s4 1966171168
          %v2577 = vunpack.c.0.s8 %v2576
          %v2578 = vlaneseq
          %v2579 = vshrl.u32 %v2578, 7
          %v2580 = vsub.s32 %v2577, %v2579
          %v2581 = vrot.slane %v2565, %v2580
          %v2583 = vunpack.c.l.s4 1966171168
          %v2584 = vunpack.c.0.s8 %v2583
          %v2585 = vlaneseq
          %v2586 = vshrl.u32 %v2585, 7
          %v2587 = vsub.s32 %v2584, %v2586
          %v2588 = vrot.slane %v2566, %v2587
          %v2590 = vunpack.c.l.s4 1966171168
          %v2591 = vunpack.c.0.s8 %v2590
          %v2592 = vlaneseq
          %v2593 = vshrl.u32 %v2592, 7
          %v2594 = vsub.s32 %v2591, %v2593
          %v2595 = vrot.slane %v2567, %v2594
          %v2596 = vcombine.low %v2574, %v2581
          %v2597 = vcombine.low %v2588, %v2595
          %v2599 = vunpack.c.l.s4 1966171168
          %v2600 = vunpack.c.0.s8 %v2599
          %v2601 = vlaneseq
          %v2602 = vshrl.u32 %v2601, 7
          %v2603 = vsub.s32 %v2600, %v2602
          %v2604 = vrot.slane %v2596, %v2603
          %v2606 = vunpack.c.l.s4 1966171168
          %v2607 = vunpack.c.0.s8 %v2606
          %v2608 = vlaneseq
          %v2609 = vshrl.u32 %v2608, 7
          %v2610 = vsub.s32 %v2607, %v2609
          %v2611 = vrot.slane %v2597, %v2610
          %v2612 = vcombine.low %v2604, %v2611
          %v2613 = vcombine.low %v1558, %v1562
          %v2614 = vcombine.low %v1566, %v1570
          %v2615 = vcombine.low %v1574, %v1578
          %v2616 = vcombine.low %v1582, %v1586
          %v2618 = vunpack.c.l.s4 1966171168
          %v2619 = vunpack.c.0.s8 %v2618
          %v2620 = vlaneseq
          %v2621 = vshrl.u32 %v2620, 7
          %v2622 = vsub.s32 %v2619, %v2621
          %v2623 = vrot.slane %v2613, %v2622
          %v2625 = vunpack.c.l.s4 1966171168
          %v2626 = vunpack.c.0.s8 %v2625
          %v2627 = vlaneseq
          %v2628 = vshrl.u32 %v2627, 7
          %v2629 = vsub.s32 %v2626, %v2628
          %v2630 = vrot.slane %v2614, %v2629
          %v2632 = vunpack.c.l.s4 1966171168
          %v2633 = vunpack.c.0.s8 %v2632
          %v2634 = vlaneseq
          %v2635 = vshrl.u32 %v2634, 7
          %v2636 = vsub.s32 %v2633, %v2635
          %v2637 = vrot.slane %v2615, %v2636
          %v2639 = vunpack.c.l.s4 1966171168
          %v2640 = vunpack.c.0.s8 %v2639
          %v2641 = vlaneseq
          %v2642 = vshrl.u32 %v2641, 7
          %v2643 = vsub.s32 %v2640, %v2642
          %v2644 = vrot.slane %v2616, %v2643
          %v2645 = vcombine.low %v2623, %v2630
          %v2646 = vcombine.low %v2637, %v2644
          %v2648 = vunpack.c.l.s4 1966171168
          %v2649 = vunpack.c.0.s8 %v2648
          %v2650 = vlaneseq
          %v2651 = vshrl.u32 %v2650, 7
          %v2652 = vsub.s32 %v2649, %v2651
          %v2653 = vrot.slane %v2645, %v2652
          %v2655 = vunpack.c.l.s4 1966171168
          %v2656 = vunpack.c.0.s8 %v2655
          %v2657 = vlaneseq
          %v2658 = vshrl.u32 %v2657, 7
          %v2659 = vsub.s32 %v2656, %v2658
          %v2660 = vrot.slane %v2646, %v2659
          %v2661 = vcombine.low %v2653, %v2660
          %v2662 = vcombine.low %v1590, %v1594
          %v2663 = vcombine.low %v1598, %v1602
          %v2664 = vcombine.low %v1606, %v1610
          %v2665 = vcombine.low %v1614, %v1618
          %v2667 = vunpack.c.l.s4 1966171168
          %v2668 = vunpack.c.0.s8 %v2667
          %v2669 = vlaneseq
          %v2670 = vshrl.u32 %v2669, 7
          %v2671 = vsub.s32 %v2668, %v2670
          %v2672 = vrot.slane %v2662, %v2671
          %v2674 = vunpack.c.l.s4 1966171168
          %v2675 = vunpack.c.0.s8 %v2674
          %v2676 = vlaneseq
          %v2677 = vshrl.u32 %v2676, 7
          %v2678 = vsub.s32 %v2675, %v2677
          %v2679 = vrot.slane %v2663, %v2678
          %v2681 = vunpack.c.l.s4 1966171168
          %v2682 = vunpack.c.0.s8 %v2681
          %v2683 = vlaneseq
          %v2684 = vshrl.u32 %v2683, 7
          %v2685 = vsub.s32 %v2682, %v2684
          %v2686 = vrot.slane %v2664, %v2685
          %v2688 = vunpack.c.l.s4 1966171168
          %v2689 = vunpack.c.0.s8 %v2688
          %v2690 = vlaneseq
          %v2691 = vshrl.u32 %v2690, 7
          %v2692 = vsub.s32 %v2689, %v2691
          %v2693 = vrot.slane %v2665, %v2692
          %v2694 = vcombine.low %v2672, %v2679
          %v2695 = vcombine.low %v2686, %v2693
          %v2697 = vunpack.c.l.s4 1966171168
          %v2698 = vunpack.c.0.s8 %v2697
          %v2699 = vlaneseq
          %v2700 = vshrl.u32 %v2699, 7
          %v2701 = vsub.s32 %v2698, %v2700
          %v2702 = vrot.slane %v2694, %v2701
          %v2704 = vunpack.c.l.s4 1966171168
          %v2705 = vunpack.c.0.s8 %v2704
          %v2706 = vlaneseq
          %v2707 = vshrl.u32 %v2706, 7
          %v2708 = vsub.s32 %v2705, %v2707
          %v2709 = vrot.slane %v2695, %v2708
          %v2710 = vcombine.low %v2702, %v2709
          %v2711 = vcombine.low %v1622, %v1626
          %v2712 = vcombine.low %v1630, %v1634
          %v2713 = vcombine.low %v1638, %v1642
          %v2714 = vcombine.low %v1646, %v1650
          %v2716 = vunpack.c.l.s4 1966171168
          %v2717 = vunpack.c.0.s8 %v2716
          %v2718 = vlaneseq
          %v2719 = vshrl.u32 %v2718, 7
          %v2720 = vsub.s32 %v2717, %v2719
          %v2721 = vrot.slane %v2711, %v2720
          %v2723 = vunpack.c.l.s4 1966171168
          %v2724 = vunpack.c.0.s8 %v2723
          %v2725 = vlaneseq
          %v2726 = vshrl.u32 %v2725, 7
          %v2727 = vsub.s32 %v2724, %v2726
          %v2728 = vrot.slane %v2712, %v2727
          %v2730 = vunpack.c.l.s4 1966171168
          %v2731 = vunpack.c.0.s8 %v2730
          %v2732 = vlaneseq
          %v2733 = vshrl.u32 %v2732, 7
          %v2734 = vsub.s32 %v2731, %v2733
          %v2735 = vrot.slane %v2713, %v2734
          %v2737 = vunpack.c.l.s4 1966171168
          %v2738 = vunpack.c.0.s8 %v2737
          %v2739 = vlaneseq
          %v2740 = vshrl.u32 %v2739, 7
          %v2741 = vsub.s32 %v2738, %v2740
          %v2742 = vrot.slane %v2714, %v2741
          %v2743 = vcombine.low %v2721, %v2728
          %v2744 = vcombine.low %v2735, %v2742
          %v2746 = vunpack.c.l.s4 1966171168
          %v2747 = vunpack.c.0.s8 %v2746
          %v2748 = vlaneseq
          %v2749 = vshrl.u32 %v2748, 7
          %v2750 = vsub.s32 %v2747, %v2749
          %v2751 = vrot.slane %v2743, %v2750
          %v2753 = vunpack.c.l.s4 1966171168
          %v2754 = vunpack.c.0.s8 %v2753
          %v2755 = vlaneseq
          %v2756 = vshrl.u32 %v2755, 7
          %v2757 = vsub.s32 %v2754, %v2756
          %v2758 = vrot.slane %v2744, %v2757
          %v2759 = vcombine.low %v2751, %v2758
          %v2760 = vcombine.low %v1654, %v1658
          %v2761 = vcombine.low %v1662, %v1666
          %v2762 = vcombine.low %v1670, %v1674
          %v2763 = vcombine.low %v1678, %v1682
          %v2765 = vunpack.c.l.s4 1966171168
          %v2766 = vunpack.c.0.s8 %v2765
          %v2767 = vlaneseq
          %v2768 = vshrl.u32 %v2767, 7
          %v2769 = vsub.s32 %v2766, %v2768
          %v2770 = vrot.slane %v2760, %v2769
          %v2772 = vunpack.c.l.s4 1966171168
          %v2773 = vunpack.c.0.s8 %v2772
          %v2774 = vlaneseq
          %v2775 = vshrl.u32 %v2774, 7
          %v2776 = vsub.s32 %v2773, %v2775
          %v2777 = vrot.slane %v2761, %v2776
          %v2779 = vunpack.c.l.s4 1966171168
          %v2780 = vunpack.c.0.s8 %v2779
          %v2781 = vlaneseq
          %v2782 = vshrl.u32 %v2781, 7
          %v2783 = vsub.s32 %v2780, %v2782
          %v2784 = vrot.slane %v2762, %v2783
          %v2786 = vunpack.c.l.s4 1966171168
          %v2787 = vunpack.c.0.s8 %v2786
          %v2788 = vlaneseq
          %v2789 = vshrl.u32 %v2788, 7
          %v2790 = vsub.s32 %v2787, %v2789
          %v2791 = vrot.slane %v2763, %v2790
          %v2792 = vcombine.low %v2770, %v2777
          %v2793 = vcombine.low %v2784, %v2791
          %v2795 = vunpack.c.l.s4 1966171168
          %v2796 = vunpack.c.0.s8 %v2795
          %v2797 = vlaneseq
          %v2798 = vshrl.u32 %v2797, 7
          %v2799 = vsub.s32 %v2796, %v2798
          %v2800 = vrot.slane %v2792, %v2799
          %v2802 = vunpack.c.l.s4 1966171168
          %v2803 = vunpack.c.0.s8 %v2802
          %v2804 = vlaneseq
          %v2805 = vshrl.u32 %v2804, 7
          %v2806 = vsub.s32 %v2803, %v2805
          %v2807 = vrot.slane %v2793, %v2806
          %v2808 = vcombine.low %v2800, %v2807
          %v2809 = vcombine.low %v1686, %v1690
          %v2810 = vcombine.low %v1694, %v1698
          %v2811 = vcombine.low %v1702, %v1706
          %v2812 = vcombine.low %v1710, %v1714
          %v2814 = vunpack.c.l.s4 1966171168
          %v2815 = vunpack.c.0.s8 %v2814
          %v2816 = vlaneseq
          %v2817 = vshrl.u32 %v2816, 7
          %v2818 = vsub.s32 %v2815, %v2817
          %v2819 = vrot.slane %v2809, %v2818
          %v2821 = vunpack.c.l.s4 1966171168
          %v2822 = vunpack.c.0.s8 %v2821
          %v2823 = vlaneseq
          %v2824 = vshrl.u32 %v2823, 7
          %v2825 = vsub.s32 %v2822, %v2824
          %v2826 = vrot.slane %v2810, %v2825
          %v2828 = vunpack.c.l.s4 1966171168
          %v2829 = vunpack.c.0.s8 %v2828
          %v2830 = vlaneseq
          %v2831 = vshrl.u32 %v2830, 7
          %v2832 = vsub.s32 %v2829, %v2831
          %v2833 = vrot.slane %v2811, %v2832
          %v2835 = vunpack.c.l.s4 1966171168
          %v2836 = vunpack.c.0.s8 %v2835
          %v2837 = vlaneseq
          %v2838 = vshrl.u32 %v2837, 7
          %v2839 = vsub.s32 %v2836, %v2838
          %v2840 = vrot.slane %v2812, %v2839
          %v2841 = vcombine.low %v2819, %v2826
          %v2842 = vcombine.low %v2833, %v2840
          %v2844 = vunpack.c.l.s4 1966171168
          %v2845 = vunpack.c.0.s8 %v2844
          %v2846 = vlaneseq
          %v2847 = vshrl.u32 %v2846, 7
          %v2848 = vsub.s32 %v2845, %v2847
          %v2849 = vrot.slane %v2841, %v2848
          %v2851 = vunpack.c.l.s4 1966171168
          %v2852 = vunpack.c.0.s8 %v2851
          %v2853 = vlaneseq
          %v2854 = vshrl.u32 %v2853, 7
          %v2855 = vsub.s32 %v2852, %v2854
          %v2856 = vrot.slane %v2842, %v2855
          %v2857 = vcombine.low %v2849, %v2856
          %v2858 = vcombine.low %v1718, %v1722
          %v2859 = vcombine.low %v1726, %v1730
          %v2860 = vcombine.low %v1734, %v1738
          %v2861 = vcombine.low %v1742, %v1746
          %v2863 = vunpack.c.l.s4 1966171168
          %v2864 = vunpack.c.0.s8 %v2863
          %v2865 = vlaneseq
          %v2866 = vshrl.u32 %v2865, 7
          %v2867 = vsub.s32 %v2864, %v2866
          %v2868 = vrot.slane %v2858, %v2867
          %v2870 = vunpack.c.l.s4 1966171168
          %v2871 = vunpack.c.0.s8 %v2870
          %v2872 = vlaneseq
          %v2873 = vshrl.u32 %v2872, 7
          %v2874 = vsub.s32 %v2871, %v2873
          %v2875 = vrot.slane %v2859, %v2874
          %v2877 = vunpack.c.l.s4 1966171168
          %v2878 = vunpack.c.0.s8 %v2877
          %v2879 = vlaneseq
          %v2880 = vshrl.u32 %v2879, 7
          %v2881 = vsub.s32 %v2878, %v2880
          %v2882 = vrot.slane %v2860, %v2881
          %v2884 = vunpack.c.l.s4 1966171168
          %v2885 = vunpack.c.0.s8 %v2884
          %v2886 = vlaneseq
          %v2887 = vshrl.u32 %v2886, 7
          %v2888 = vsub.s32 %v2885, %v2887
          %v2889 = vrot.slane %v2861, %v2888
          %v2890 = vcombine.low %v2868, %v2875
          %v2891 = vcombine.low %v2882, %v2889
          %v2893 = vunpack.c.l.s4 1966171168
          %v2894 = vunpack.c.0.s8 %v2893
          %v2895 = vlaneseq
          %v2896 = vshrl.u32 %v2895, 7
          %v2897 = vsub.s32 %v2894, %v2896
          %v2898 = vrot.slane %v2890, %v2897
          %v2900 = vunpack.c.l.s4 1966171168
          %v2901 = vunpack.c.0.s8 %v2900
          %v2902 = vlaneseq
          %v2903 = vshrl.u32 %v2902, 7
          %v2904 = vsub.s32 %v2901, %v2903
          %v2905 = vrot.slane %v2891, %v2904
          %v2906 = vcombine.low %v2898, %v2905
          %v2907 = vcombine.low %v1750, %v1754
          %v2908 = vcombine.low %v1758, %v1762
          %v2909 = vcombine.low %v1766, %v1770
          %v2910 = vcombine.low %v1774, %v1778
          %v2912 = vunpack.c.l.s4 1966171168
          %v2913 = vunpack.c.0.s8 %v2912
          %v2914 = vlaneseq
          %v2915 = vshrl.u32 %v2914, 7
          %v2916 = vsub.s32 %v2913, %v2915
          %v2917 = vrot.slane %v2907, %v2916
          %v2919 = vunpack.c.l.s4 1966171168
          %v2920 = vunpack.c.0.s8 %v2919
          %v2921 = vlaneseq
          %v2922 = vshrl.u32 %v2921, 7
          %v2923 = vsub.s32 %v2920, %v2922
          %v2924 = vrot.slane %v2908, %v2923
          %v2926 = vunpack.c.l.s4 1966171168
          %v2927 = vunpack.c.0.s8 %v2926
          %v2928 = vlaneseq
          %v2929 = vshrl.u32 %v2928, 7
          %v2930 = vsub.s32 %v2927, %v2929
          %v2931 = vrot.slane %v2909, %v2930
          %v2933 = vunpack.c.l.s4 1966171168
          %v2934 = vunpack.c.0.s8 %v2933
          %v2935 = vlaneseq
          %v2936 = vshrl.u32 %v2935, 7
          %v2937 = vsub.s32 %v2934, %v2936
          %v2938 = vrot.slane %v2910, %v2937
          %v2939 = vcombine.low %v2917, %v2924
          %v2940 = vcombine.low %v2931, %v2938
          %v2942 = vunpack.c.l.s4 1966171168
          %v2943 = vunpack.c.0.s8 %v2942
          %v2944 = vlaneseq
          %v2945 = vshrl.u32 %v2944, 7
          %v2946 = vsub.s32 %v2943, %v2945
          %v2947 = vrot.slane %v2939, %v2946
          %v2949 = vunpack.c.l.s4 1966171168
          %v2950 = vunpack.c.0.s8 %v2949
          %v2951 = vlaneseq
          %v2952 = vshrl.u32 %v2951, 7
          %v2953 = vsub.s32 %v2950, %v2952
          %v2954 = vrot.slane %v2940, %v2953
          %v2955 = vcombine.low %v2947, %v2954
          %v2956 = vcombine.low %v1782, %v1786
          %v2957 = vcombine.low %v1790, %v1794
          %v2958 = vcombine.low %v1798, %v1802
          %v2959 = vcombine.low %v1806, %v1810
          %v2961 = vunpack.c.l.s4 1966171168
          %v2962 = vunpack.c.0.s8 %v2961
          %v2963 = vlaneseq
          %v2964 = vshrl.u32 %v2963, 7
          %v2965 = vsub.s32 %v2962, %v2964
          %v2966 = vrot.slane %v2956, %v2965
          %v2968 = vunpack.c.l.s4 1966171168
          %v2969 = vunpack.c.0.s8 %v2968
          %v2970 = vlaneseq
          %v2971 = vshrl.u32 %v2970, 7
          %v2972 = vsub.s32 %v2969, %v2971
          %v2973 = vrot.slane %v2957, %v2972
          %v2975 = vunpack.c.l.s4 1966171168
          %v2976 = vunpack.c.0.s8 %v2975
          %v2977 = vlaneseq
          %v2978 = vshrl.u32 %v2977, 7
          %v2979 = vsub.s32 %v2976, %v2978
          %v2980 = vrot.slane %v2958, %v2979
          %v2982 = vunpack.c.l.s4 1966171168
          %v2983 = vunpack.c.0.s8 %v2982
          %v2984 = vlaneseq
          %v2985 = vshrl.u32 %v2984, 7
          %v2986 = vsub.s32 %v2983, %v2985
          %v2987 = vrot.slane %v2959, %v2986
          %v2988 = vcombine.low %v2966, %v2973
          %v2989 = vcombine.low %v2980, %v2987
          %v2991 = vunpack.c.l.s4 1966171168
          %v2992 = vunpack.c.0.s8 %v2991
          %v2993 = vlaneseq
          %v2994 = vshrl.u32 %v2993, 7
          %v2995 = vsub.s32 %v2992, %v2994
          %v2996 = vrot.slane %v2988, %v2995
          %v2998 = vunpack.c.l.s4 1966171168
          %v2999 = vunpack.c.0.s8 %v2998
          %v3000 = vlaneseq
          %v3001 = vshrl.u32 %v3000, 7
          %v3002 = vsub.s32 %v2999, %v3001
          %v3003 = vrot.slane %v2989, %v3002
          %v3004 = vcombine.low %v2996, %v3003
          %v3005 = vcombine.low %v1814, %v1818
          %v3006 = vcombine.low %v1822, %v1826
          %v3007 = vcombine.low %v1830, %v1834
          %v3008 = vcombine.low %v1838, %v1842
          %v3010 = vunpack.c.l.s4 1966171168
          %v3011 = vunpack.c.0.s8 %v3010
          %v3012 = vlaneseq
          %v3013 = vshrl.u32 %v3012, 7
          %v3014 = vsub.s32 %v3011, %v3013
          %v3015 = vrot.slane %v3005, %v3014
          %v3017 = vunpack.c.l.s4 1966171168
          %v3018 = vunpack.c.0.s8 %v3017
          %v3019 = vlaneseq
          %v3020 = vshrl.u32 %v3019, 7
          %v3021 = vsub.s32 %v3018, %v3020
          %v3022 = vrot.slane %v3006, %v3021
          %v3024 = vunpack.c.l.s4 1966171168
          %v3025 = vunpack.c.0.s8 %v3024
          %v3026 = vlaneseq
          %v3027 = vshrl.u32 %v3026, 7
          %v3028 = vsub.s32 %v3025, %v3027
          %v3029 = vrot.slane %v3007, %v3028
          %v3031 = vunpack.c.l.s4 1966171168
          %v3032 = vunpack.c.0.s8 %v3031
          %v3033 = vlaneseq
          %v3034 = vshrl.u32 %v3033, 7
          %v3035 = vsub.s32 %v3032, %v3034
          %v3036 = vrot.slane %v3008, %v3035
          %v3037 = vcombine.low %v3015, %v3022
          %v3038 = vcombine.low %v3029, %v3036
          %v3040 = vunpack.c.l.s4 1966171168
          %v3041 = vunpack.c.0.s8 %v3040
          %v3042 = vlaneseq
          %v3043 = vshrl.u32 %v3042, 7
          %v3044 = vsub.s32 %v3041, %v3043
          %v3045 = vrot.slane %v3037, %v3044
          %v3047 = vunpack.c.l.s4 1966171168
          %v3048 = vunpack.c.0.s8 %v3047
          %v3049 = vlaneseq
          %v3050 = vshrl.u32 %v3049, 7
          %v3051 = vsub.s32 %v3048, %v3050
          %v3052 = vrot.slane %v3038, %v3051
          %v3053 = vcombine.low %v3045, %v3052
          %v3054 = vcombine.low %v1846, %v1850
          %v3055 = vcombine.low %v1854, %v1858
          %v3056 = vcombine.low %v1862, %v1866
          %v3057 = vcombine.low %v1870, %v1874
          %v3059 = vunpack.c.l.s4 1966171168
          %v3060 = vunpack.c.0.s8 %v3059
          %v3061 = vlaneseq
          %v3062 = vshrl.u32 %v3061, 7
          %v3063 = vsub.s32 %v3060, %v3062
          %v3064 = vrot.slane %v3054, %v3063
          %v3066 = vunpack.c.l.s4 1966171168
          %v3067 = vunpack.c.0.s8 %v3066
          %v3068 = vlaneseq
          %v3069 = vshrl.u32 %v3068, 7
          %v3070 = vsub.s32 %v3067, %v3069
          %v3071 = vrot.slane %v3055, %v3070
          %v3073 = vunpack.c.l.s4 1966171168
          %v3074 = vunpack.c.0.s8 %v3073
          %v3075 = vlaneseq
          %v3076 = vshrl.u32 %v3075, 7
          %v3077 = vsub.s32 %v3074, %v3076
          %v3078 = vrot.slane %v3056, %v3077
          %v3080 = vunpack.c.l.s4 1966171168
          %v3081 = vunpack.c.0.s8 %v3080
          %v3082 = vlaneseq
          %v3083 = vshrl.u32 %v3082, 7
          %v3084 = vsub.s32 %v3081, %v3083
          %v3085 = vrot.slane %v3057, %v3084
          %v3086 = vcombine.low %v3064, %v3071
          %v3087 = vcombine.low %v3078, %v3085
          %v3089 = vunpack.c.l.s4 1966171168
          %v3090 = vunpack.c.0.s8 %v3089
          %v3091 = vlaneseq
          %v3092 = vshrl.u32 %v3091, 7
          %v3093 = vsub.s32 %v3090, %v3092
          %v3094 = vrot.slane %v3086, %v3093
          %v3096 = vunpack.c.l.s4 1966171168
          %v3097 = vunpack.c.0.s8 %v3096
          %v3098 = vlaneseq
          %v3099 = vshrl.u32 %v3098, 7
          %v3100 = vsub.s32 %v3097, %v3099
          %v3101 = vrot.slane %v3087, %v3100
          %v3102 = vcombine.low %v3094, %v3101
          %v3103 = vcombine.low %v1878, %v1882
          %v3104 = vcombine.low %v1886, %v1890
          %v3105 = vcombine.low %v1894, %v1898
          %v3106 = vcombine.low %v1902, %v1906
          %v3108 = vunpack.c.l.s4 1966171168
          %v3109 = vunpack.c.0.s8 %v3108
          %v3110 = vlaneseq
          %v3111 = vshrl.u32 %v3110, 7
          %v3112 = vsub.s32 %v3109, %v3111
          %v3113 = vrot.slane %v3103, %v3112
          %v3115 = vunpack.c.l.s4 1966171168
          %v3116 = vunpack.c.0.s8 %v3115
          %v3117 = vlaneseq
          %v3118 = vshrl.u32 %v3117, 7
          %v3119 = vsub.s32 %v3116, %v3118
          %v3120 = vrot.slane %v3104, %v3119
          %v3122 = vunpack.c.l.s4 1966171168
          %v3123 = vunpack.c.0.s8 %v3122
          %v3124 = vlaneseq
          %v3125 = vshrl.u32 %v3124, 7
          %v3126 = vsub.s32 %v3123, %v3125
          %v3127 = vrot.slane %v3105, %v3126
          %v3129 = vunpack.c.l.s4 1966171168
          %v3130 = vunpack.c.0.s8 %v3129
          %v3131 = vlaneseq
          %v3132 = vshrl.u32 %v3131, 7
          %v3133 = vsub.s32 %v3130, %v3132
          %v3134 = vrot.slane %v3106, %v3133
          %v3135 = vcombine.low %v3113, %v3120
          %v3136 = vcombine.low %v3127, %v3134
          %v3138 = vunpack.c.l.s4 1966171168
          %v3139 = vunpack.c.0.s8 %v3138
          %v3140 = vlaneseq
          %v3141 = vshrl.u32 %v3140, 7
          %v3142 = vsub.s32 %v3139, %v3141
          %v3143 = vrot.slane %v3135, %v3142
          %v3145 = vunpack.c.l.s4 1966171168
          %v3146 = vunpack.c.0.s8 %v3145
          %v3147 = vlaneseq
          %v3148 = vshrl.u32 %v3147, 7
          %v3149 = vsub.s32 %v3146, %v3148
          %v3150 = vrot.slane %v3136, %v3149
          %v3151 = vcombine.low %v3143, %v3150
          %v3152 = vcombine.low %v1910, %v1914
          %v3153 = vcombine.low %v1918, %v1922
          %v3154 = vcombine.low %v1926, %v1930
          %v3155 = vcombine.low %v1934, %v1938
          %v3157 = vunpack.c.l.s4 1966171168
          %v3158 = vunpack.c.0.s8 %v3157
          %v3159 = vlaneseq
          %v3160 = vshrl.u32 %v3159, 7
          %v3161 = vsub.s32 %v3158, %v3160
          %v3162 = vrot.slane %v3152, %v3161
          %v3164 = vunpack.c.l.s4 1966171168
          %v3165 = vunpack.c.0.s8 %v3164
          %v3166 = vlaneseq
          %v3167 = vshrl.u32 %v3166, 7
          %v3168 = vsub.s32 %v3165, %v3167
          %v3169 = vrot.slane %v3153, %v3168
          %v3171 = vunpack.c.l.s4 1966171168
          %v3172 = vunpack.c.0.s8 %v3171
          %v3173 = vlaneseq
          %v3174 = vshrl.u32 %v3173, 7
          %v3175 = vsub.s32 %v3172, %v3174
          %v3176 = vrot.slane %v3154, %v3175
          %v3178 = vunpack.c.l.s4 1966171168
          %v3179 = vunpack.c.0.s8 %v3178
          %v3180 = vlaneseq
          %v3181 = vshrl.u32 %v3180, 7
          %v3182 = vsub.s32 %v3179, %v3181
          %v3183 = vrot.slane %v3155, %v3182
          %v3184 = vcombine.low %v3162, %v3169
          %v3185 = vcombine.low %v3176, %v3183
          %v3187 = vunpack.c.l.s4 1966171168
          %v3188 = vunpack.c.0.s8 %v3187
          %v3189 = vlaneseq
          %v3190 = vshrl.u32 %v3189, 7
          %v3191 = vsub.s32 %v3188, %v3190
          %v3192 = vrot.slane %v3184, %v3191
          %v3194 = vunpack.c.l.s4 1966171168
          %v3195 = vunpack.c.0.s8 %v3194
          %v3196 = vlaneseq
          %v3197 = vshrl.u32 %v3196, 7
          %v3198 = vsub.s32 %v3195, %v3197
          %v3199 = vrot.slane %v3185, %v3198
          %v3200 = vcombine.low %v3192, %v3199
          %v3201 = vcombine.low %v1942, %v1946
          %v3202 = vcombine.low %v1950, %v1954
          %v3203 = vcombine.low %v1958, %v1962
          %v3204 = vcombine.low %v1966, %v1970
          %v3206 = vunpack.c.l.s4 1966171168
          %v3207 = vunpack.c.0.s8 %v3206
          %v3208 = vlaneseq
          %v3209 = vshrl.u32 %v3208, 7
          %v3210 = vsub.s32 %v3207, %v3209
          %v3211 = vrot.slane %v3201, %v3210
          %v3213 = vunpack.c.l.s4 1966171168
          %v3214 = vunpack.c.0.s8 %v3213
          %v3215 = vlaneseq
          %v3216 = vshrl.u32 %v3215, 7
          %v3217 = vsub.s32 %v3214, %v3216
          %v3218 = vrot.slane %v3202, %v3217
          %v3220 = vunpack.c.l.s4 1966171168
          %v3221 = vunpack.c.0.s8 %v3220
          %v3222 = vlaneseq
          %v3223 = vshrl.u32 %v3222, 7
          %v3224 = vsub.s32 %v3221, %v3223
          %v3225 = vrot.slane %v3203, %v3224
          %v3227 = vunpack.c.l.s4 1966171168
          %v3228 = vunpack.c.0.s8 %v3227
          %v3229 = vlaneseq
          %v3230 = vshrl.u32 %v3229, 7
          %v3231 = vsub.s32 %v3228, %v3230
          %v3232 = vrot.slane %v3204, %v3231
          %v3233 = vcombine.low %v3211, %v3218
          %v3234 = vcombine.low %v3225, %v3232
          %v3236 = vunpack.c.l.s4 1966171168
          %v3237 = vunpack.c.0.s8 %v3236
          %v3238 = vlaneseq
          %v3239 = vshrl.u32 %v3238, 7
          %v3240 = vsub.s32 %v3237, %v3239
          %v3241 = vrot.slane %v3233, %v3240
          %v3243 = vunpack.c.l.s4 1966171168
          %v3244 = vunpack.c.0.s8 %v3243
          %v3245 = vlaneseq
          %v3246 = vshrl.u32 %v3245, 7
          %v3247 = vsub.s32 %v3244, %v3246
          %v3248 = vrot.slane %v3234, %v3247
          %v3249 = vcombine.low %v3241, %v3248
          %v3250 = vcombine.low %v1974, %v1978
          %v3251 = vcombine.low %v1982, %v1986
          %v3252 = vcombine.low %v1990, %v1994
          %v3253 = vcombine.low %v1998, %v2002
          %v3255 = vunpack.c.l.s4 1966171168
          %v3256 = vunpack.c.0.s8 %v3255
          %v3257 = vlaneseq
          %v3258 = vshrl.u32 %v3257, 7
          %v3259 = vsub.s32 %v3256, %v3258
          %v3260 = vrot.slane %v3250, %v3259
          %v3262 = vunpack.c.l.s4 1966171168
          %v3263 = vunpack.c.0.s8 %v3262
          %v3264 = vlaneseq
          %v3265 = vshrl.u32 %v3264, 7
          %v3266 = vsub.s32 %v3263, %v3265
          %v3267 = vrot.slane %v3251, %v3266
          %v3269 = vunpack.c.l.s4 1966171168
          %v3270 = vunpack.c.0.s8 %v3269
          %v3271 = vlaneseq
          %v3272 = vshrl.u32 %v3271, 7
          %v3273 = vsub.s32 %v3270, %v3272
          %v3274 = vrot.slane %v3252, %v3273
          %v3276 = vunpack.c.l.s4 1966171168
          %v3277 = vunpack.c.0.s8 %v3276
          %v3278 = vlaneseq
          %v3279 = vshrl.u32 %v3278, 7
          %v3280 = vsub.s32 %v3277, %v3279
          %v3281 = vrot.slane %v3253, %v3280
          %v3282 = vcombine.low %v3260, %v3267
          %v3283 = vcombine.low %v3274, %v3281
          %v3285 = vunpack.c.l.s4 1966171168
          %v3286 = vunpack.c.0.s8 %v3285
          %v3287 = vlaneseq
          %v3288 = vshrl.u32 %v3287, 7
          %v3289 = vsub.s32 %v3286, %v3288
          %v3290 = vrot.slane %v3282, %v3289
          %v3292 = vunpack.c.l.s4 1966171168
          %v3293 = vunpack.c.0.s8 %v3292
          %v3294 = vlaneseq
          %v3295 = vshrl.u32 %v3294, 7
          %v3296 = vsub.s32 %v3293, %v3295
          %v3297 = vrot.slane %v3283, %v3296
          %v3298 = vcombine.low %v3290, %v3297
          %v3299 = vcombine.low %v2006, %v2010
          %v3300 = vcombine.low %v2014, %v2018
          %v3301 = vcombine.low %v2022, %v2026
          %v3302 = vcombine.low %v2030, %v2034
          %v3304 = vunpack.c.l.s4 1966171168
          %v3305 = vunpack.c.0.s8 %v3304
          %v3306 = vlaneseq
          %v3307 = vshrl.u32 %v3306, 7
          %v3308 = vsub.s32 %v3305, %v3307
          %v3309 = vrot.slane %v3299, %v3308
          %v3311 = vunpack.c.l.s4 1966171168
          %v3312 = vunpack.c.0.s8 %v3311
          %v3313 = vlaneseq
          %v3314 = vshrl.u32 %v3313, 7
          %v3315 = vsub.s32 %v3312, %v3314
          %v3316 = vrot.slane %v3300, %v3315
          %v3318 = vunpack.c.l.s4 1966171168
          %v3319 = vunpack.c.0.s8 %v3318
          %v3320 = vlaneseq
          %v3321 = vshrl.u32 %v3320, 7
          %v3322 = vsub.s32 %v3319, %v3321
          %v3323 = vrot.slane %v3301, %v3322
          %v3325 = vunpack.c.l.s4 1966171168
          %v3326 = vunpack.c.0.s8 %v3325
          %v3327 = vlaneseq
          %v3328 = vshrl.u32 %v3327, 7
          %v3329 = vsub.s32 %v3326, %v3328
          %v3330 = vrot.slane %v3302, %v3329
          %v3331 = vcombine.low %v3309, %v3316
          %v3332 = vcombine.low %v3323, %v3330
          %v3334 = vunpack.c.l.s4 1966171168
          %v3335 = vunpack.c.0.s8 %v3334
          %v3336 = vlaneseq
          %v3337 = vshrl.u32 %v3336, 7
          %v3338 = vsub.s32 %v3335, %v3337
          %v3339 = vrot.slane %v3331, %v3338
          %v3341 = vunpack.c.l.s4 1966171168
          %v3342 = vunpack.c.0.s8 %v3341
          %v3343 = vlaneseq
          %v3344 = vshrl.u32 %v3343, 7
          %v3345 = vsub.s32 %v3342, %v3344
          %v3346 = vrot.slane %v3332, %v3345
          %v3347 = vcombine.low %v3339, %v3346
          %v3348 = vcombine.low %v2038, %v2042
          %v3349 = vcombine.low %v2046, %v2050
          %v3350 = vcombine.low %v2054, %v2058
          %v3351 = vcombine.low %v2062, %v2066
          %v3353 = vunpack.c.l.s4 1966171168
          %v3354 = vunpack.c.0.s8 %v3353
          %v3355 = vlaneseq
          %v3356 = vshrl.u32 %v3355, 7
          %v3357 = vsub.s32 %v3354, %v3356
          %v3358 = vrot.slane %v3348, %v3357
          %v3360 = vunpack.c.l.s4 1966171168
          %v3361 = vunpack.c.0.s8 %v3360
          %v3362 = vlaneseq
          %v3363 = vshrl.u32 %v3362, 7
          %v3364 = vsub.s32 %v3361, %v3363
          %v3365 = vrot.slane %v3349, %v3364
          %v3367 = vunpack.c.l.s4 1966171168
          %v3368 = vunpack.c.0.s8 %v3367
          %v3369 = vlaneseq
          %v3370 = vshrl.u32 %v3369, 7
          %v3371 = vsub.s32 %v3368, %v3370
          %v3372 = vrot.slane %v3350, %v3371
          %v3374 = vunpack.c.l.s4 1966171168
          %v3375 = vunpack.c.0.s8 %v3374
          %v3376 = vlaneseq
          %v3377 = vshrl.u32 %v3376, 7
          %v3378 = vsub.s32 %v3375, %v3377
          %v3379 = vrot.slane %v3351, %v3378
          %v3380 = vcombine.low %v3358, %v3365
          %v3381 = vcombine.low %v3372, %v3379
          %v3383 = vunpack.c.l.s4 1966171168
          %v3384 = vunpack.c.0.s8 %v3383
          %v3385 = vlaneseq
          %v3386 = vshrl.u32 %v3385, 7
          %v3387 = vsub.s32 %v3384, %v3386
          %v3388 = vrot.slane %v3380, %v3387
          %v3390 = vunpack.c.l.s4 1966171168
          %v3391 = vunpack.c.0.s8 %v3390
          %v3392 = vlaneseq
          %v3393 = vshrl.u32 %v3392, 7
          %v3394 = vsub.s32 %v3391, %v3393
          %v3395 = vrot.slane %v3381, %v3394
          %v3396 = vcombine.low %v3388, %v3395
          %v3397 = vcombine.low %v2070, %v2074
          %v3398 = vcombine.low %v2078, %v2082
          %v3399 = vcombine.low %v2086, %v2090
          %v3400 = vcombine.low %v2094, %v2098
          %v3402 = vunpack.c.l.s4 1966171168
          %v3403 = vunpack.c.0.s8 %v3402
          %v3404 = vlaneseq
          %v3405 = vshrl.u32 %v3404, 7
          %v3406 = vsub.s32 %v3403, %v3405
          %v3407 = vrot.slane %v3397, %v3406
          %v3409 = vunpack.c.l.s4 1966171168
          %v3410 = vunpack.c.0.s8 %v3409
          %v3411 = vlaneseq
          %v3412 = vshrl.u32 %v3411, 7
          %v3413 = vsub.s32 %v3410, %v3412
          %v3414 = vrot.slane %v3398, %v3413
          %v3416 = vunpack.c.l.s4 1966171168
          %v3417 = vunpack.c.0.s8 %v3416
          %v3418 = vlaneseq
          %v3419 = vshrl.u32 %v3418, 7
          %v3420 = vsub.s32 %v3417, %v3419
          %v3421 = vrot.slane %v3399, %v3420
          %v3423 = vunpack.c.l.s4 1966171168
          %v3424 = vunpack.c.0.s8 %v3423
          %v3425 = vlaneseq
          %v3426 = vshrl.u32 %v3425, 7
          %v3427 = vsub.s32 %v3424, %v3426
          %v3428 = vrot.slane %v3400, %v3427
          %v3429 = vcombine.low %v3407, %v3414
          %v3430 = vcombine.low %v3421, %v3428
          %v3432 = vunpack.c.l.s4 1966171168
          %v3433 = vunpack.c.0.s8 %v3432
          %v3434 = vlaneseq
          %v3435 = vshrl.u32 %v3434, 7
          %v3436 = vsub.s32 %v3433, %v3435
          %v3437 = vrot.slane %v3429, %v3436
          %v3439 = vunpack.c.l.s4 1966171168
          %v3440 = vunpack.c.0.s8 %v3439
          %v3441 = vlaneseq
          %v3442 = vshrl.u32 %v3441, 7
          %v3443 = vsub.s32 %v3440, %v3442
          %v3444 = vrot.slane %v3430, %v3443
          %v3445 = vcombine.low %v3437, %v3444
          %v3446 = vcombine.low %v2102, %v2106
          %v3447 = vcombine.low %v2110, %v2114
          %v3448 = vcombine.low %v2118, %v2122
          %v3449 = vcombine.low %v2126, %v2130
          %v3451 = vunpack.c.l.s4 1966171168
          %v3452 = vunpack.c.0.s8 %v3451
          %v3453 = vlaneseq
          %v3454 = vshrl.u32 %v3453, 7
          %v3455 = vsub.s32 %v3452, %v3454
          %v3456 = vrot.slane %v3446, %v3455
          %v3458 = vunpack.c.l.s4 1966171168
          %v3459 = vunpack.c.0.s8 %v3458
          %v3460 = vlaneseq
          %v3461 = vshrl.u32 %v3460, 7
          %v3462 = vsub.s32 %v3459, %v3461
          %v3463 = vrot.slane %v3447, %v3462
          %v3465 = vunpack.c.l.s4 1966171168
          %v3466 = vunpack.c.0.s8 %v3465
          %v3467 = vlaneseq
          %v3468 = vshrl.u32 %v3467, 7
          %v3469 = vsub.s32 %v3466, %v3468
          %v3470 = vrot.slane %v3448, %v3469
          %v3472 = vunpack.c.l.s4 1966171168
          %v3473 = vunpack.c.0.s8 %v3472
          %v3474 = vlaneseq
          %v3475 = vshrl.u32 %v3474, 7
          %v3476 = vsub.s32 %v3473, %v3475
          %v3477 = vrot.slane %v3449, %v3476
          %v3478 = vcombine.low %v3456, %v3463
          %v3479 = vcombine.low %v3470, %v3477
          %v3481 = vunpack.c.l.s4 1966171168
          %v3482 = vunpack.c.0.s8 %v3481
          %v3483 = vlaneseq
          %v3484 = vshrl.u32 %v3483, 7
          %v3485 = vsub.s32 %v3482, %v3484
          %v3486 = vrot.slane %v3478, %v3485
          %v3488 = vunpack.c.l.s4 1966171168
          %v3489 = vunpack.c.0.s8 %v3488
          %v3490 = vlaneseq
          %v3491 = vshrl.u32 %v3490, 7
          %v3492 = vsub.s32 %v3489, %v3491
          %v3493 = vrot.slane %v3479, %v3492
          %v3494 = vcombine.low %v3486, %v3493
          %v3495 = vcombine.low %v2134, %v2138
          %v3496 = vcombine.low %v2142, %v2146
          %v3497 = vcombine.low %v2150, %v2154
          %v3498 = vcombine.low %v2158, %v2162
          %v3500 = vunpack.c.l.s4 1966171168
          %v3501 = vunpack.c.0.s8 %v3500
          %v3502 = vlaneseq
          %v3503 = vshrl.u32 %v3502, 7
          %v3504 = vsub.s32 %v3501, %v3503
          %v3505 = vrot.slane %v3495, %v3504
          %v3507 = vunpack.c.l.s4 1966171168
          %v3508 = vunpack.c.0.s8 %v3507
          %v3509 = vlaneseq
          %v3510 = vshrl.u32 %v3509, 7
          %v3511 = vsub.s32 %v3508, %v3510
          %v3512 = vrot.slane %v3496, %v3511
          %v3514 = vunpack.c.l.s4 1966171168
          %v3515 = vunpack.c.0.s8 %v3514
          %v3516 = vlaneseq
          %v3517 = vshrl.u32 %v3516, 7
          %v3518 = vsub.s32 %v3515, %v3517
          %v3519 = vrot.slane %v3497, %v3518
          %v3521 = vunpack.c.l.s4 1966171168
          %v3522 = vunpack.c.0.s8 %v3521
          %v3523 = vlaneseq
          %v3524 = vshrl.u32 %v3523, 7
          %v3525 = vsub.s32 %v3522, %v3524
          %v3526 = vrot.slane %v3498, %v3525
          %v3527 = vcombine.low %v3505, %v3512
          %v3528 = vcombine.low %v3519, %v3526
          %v3530 = vunpack.c.l.s4 1966171168
          %v3531 = vunpack.c.0.s8 %v3530
          %v3532 = vlaneseq
          %v3533 = vshrl.u32 %v3532, 7
          %v3534 = vsub.s32 %v3531, %v3533
          %v3535 = vrot.slane %v3527, %v3534
          %v3537 = vunpack.c.l.s4 1966171168
          %v3538 = vunpack.c.0.s8 %v3537
          %v3539 = vlaneseq
          %v3540 = vshrl.u32 %v3539, 7
          %v3541 = vsub.s32 %v3538, %v3540
          %v3542 = vrot.slane %v3528, %v3541
          %v3543 = vcombine.low %v3535, %v3542
          %v3544 = vcombine.low %v2166, %v2170
          %v3545 = vcombine.low %v2174, %v2178
          %v3546 = vcombine.low %v2182, %v2186
          %v3547 = vcombine.low %v2190, %v2194
          %v3549 = vunpack.c.l.s4 1966171168
          %v3550 = vunpack.c.0.s8 %v3549
          %v3551 = vlaneseq
          %v3552 = vshrl.u32 %v3551, 7
          %v3553 = vsub.s32 %v3550, %v3552
          %v3554 = vrot.slane %v3544, %v3553
          %v3556 = vunpack.c.l.s4 1966171168
          %v3557 = vunpack.c.0.s8 %v3556
          %v3558 = vlaneseq
          %v3559 = vshrl.u32 %v3558, 7
          %v3560 = vsub.s32 %v3557, %v3559
          %v3561 = vrot.slane %v3545, %v3560
          %v3563 = vunpack.c.l.s4 1966171168
          %v3564 = vunpack.c.0.s8 %v3563
          %v3565 = vlaneseq
          %v3566 = vshrl.u32 %v3565, 7
          %v3567 = vsub.s32 %v3564, %v3566
          %v3568 = vrot.slane %v3546, %v3567
          %v3570 = vunpack.c.l.s4 1966171168
          %v3571 = vunpack.c.0.s8 %v3570
          %v3572 = vlaneseq
          %v3573 = vshrl.u32 %v3572, 7
          %v3574 = vsub.s32 %v3571, %v3573
          %v3575 = vrot.slane %v3547, %v3574
          %v3576 = vcombine.low %v3554, %v3561
          %v3577 = vcombine.low %v3568, %v3575
          %v3579 = vunpack.c.l.s4 1966171168
          %v3580 = vunpack.c.0.s8 %v3579
          %v3581 = vlaneseq
          %v3582 = vshrl.u32 %v3581, 7
          %v3583 = vsub.s32 %v3580, %v3582
          %v3584 = vrot.slane %v3576, %v3583
          %v3586 = vunpack.c.l.s4 1966171168
          %v3587 = vunpack.c.0.s8 %v3586
          %v3588 = vlaneseq
          %v3589 = vshrl.u32 %v3588, 7
          %v3590 = vsub.s32 %v3587, %v3589
          %v3591 = vrot.slane %v3577, %v3590
          %v3592 = vcombine.low %v3584, %v3591
          %v3593 = vcombine.low %v2198, %v2202
          %v3594 = vcombine.low %v2206, %v2210
          %v3595 = vcombine.low %v2214, %v2218
          %v3596 = vcombine.low %v2222, %v2226
          %v3598 = vunpack.c.l.s4 1966171168
          %v3599 = vunpack.c.0.s8 %v3598
          %v3600 = vlaneseq
          %v3601 = vshrl.u32 %v3600, 7
          %v3602 = vsub.s32 %v3599, %v3601
          %v3603 = vrot.slane %v3593, %v3602
          %v3605 = vunpack.c.l.s4 1966171168
          %v3606 = vunpack.c.0.s8 %v3605
          %v3607 = vlaneseq
          %v3608 = vshrl.u32 %v3607, 7
          %v3609 = vsub.s32 %v3606, %v3608
          %v3610 = vrot.slane %v3594, %v3609
          %v3612 = vunpack.c.l.s4 1966171168
          %v3613 = vunpack.c.0.s8 %v3612
          %v3614 = vlaneseq
          %v3615 = vshrl.u32 %v3614, 7
          %v3616 = vsub.s32 %v3613, %v3615
          %v3617 = vrot.slane %v3595, %v3616
          %v3619 = vunpack.c.l.s4 1966171168
          %v3620 = vunpack.c.0.s8 %v3619
          %v3621 = vlaneseq
          %v3622 = vshrl.u32 %v3621, 7
          %v3623 = vsub.s32 %v3620, %v3622
          %v3624 = vrot.slane %v3596, %v3623
          %v3625 = vcombine.low %v3603, %v3610
          %v3626 = vcombine.low %v3617, %v3624
          %v3628 = vunpack.c.l.s4 1966171168
          %v3629 = vunpack.c.0.s8 %v3628
          %v3630 = vlaneseq
          %v3631 = vshrl.u32 %v3630, 7
          %v3632 = vsub.s32 %v3629, %v3631
          %v3633 = vrot.slane %v3625, %v3632
          %v3635 = vunpack.c.l.s4 1966171168
          %v3636 = vunpack.c.0.s8 %v3635
          %v3637 = vlaneseq
          %v3638 = vshrl.u32 %v3637, 7
          %v3639 = vsub.s32 %v3636, %v3638
          %v3640 = vrot.slane %v3626, %v3639
          %v3641 = vcombine.low %v3633, %v3640
          %v3642 = vcombine.low %v2230, %v2234
          %v3643 = vcombine.low %v2238, %v2242
          %v3644 = vcombine.low %v2246, %v2250
          %v3645 = vcombine.low %v2254, %v2258
          %v3647 = vunpack.c.l.s4 1966171168
          %v3648 = vunpack.c.0.s8 %v3647
          %v3649 = vlaneseq
          %v3650 = vshrl.u32 %v3649, 7
          %v3651 = vsub.s32 %v3648, %v3650
          %v3652 = vrot.slane %v3642, %v3651
          %v3654 = vunpack.c.l.s4 1966171168
          %v3655 = vunpack.c.0.s8 %v3654
          %v3656 = vlaneseq
          %v3657 = vshrl.u32 %v3656, 7
          %v3658 = vsub.s32 %v3655, %v3657
          %v3659 = vrot.slane %v3643, %v3658
          %v3661 = vunpack.c.l.s4 1966171168
          %v3662 = vunpack.c.0.s8 %v3661
          %v3663 = vlaneseq
          %v3664 = vshrl.u32 %v3663, 7
          %v3665 = vsub.s32 %v3662, %v3664
          %v3666 = vrot.slane %v3644, %v3665
          %v3668 = vunpack.c.l.s4 1966171168
          %v3669 = vunpack.c.0.s8 %v3668
          %v3670 = vlaneseq
          %v3671 = vshrl.u32 %v3670, 7
          %v3672 = vsub.s32 %v3669, %v3671
          %v3673 = vrot.slane %v3645, %v3672
          %v3674 = vcombine.low %v3652, %v3659
          %v3675 = vcombine.low %v3666, %v3673
          %v3677 = vunpack.c.l.s4 1966171168
          %v3678 = vunpack.c.0.s8 %v3677
          %v3679 = vlaneseq
          %v3680 = vshrl.u32 %v3679, 7
          %v3681 = vsub.s32 %v3678, %v3680
          %v3682 = vrot.slane %v3674, %v3681
          %v3684 = vunpack.c.l.s4 1966171168
          %v3685 = vunpack.c.0.s8 %v3684
          %v3686 = vlaneseq
          %v3687 = vshrl.u32 %v3686, 7
          %v3688 = vsub.s32 %v3685, %v3687
          %v3689 = vrot.slane %v3675, %v3688
          %v3690 = vcombine.low %v3682, %v3689
          %v3691 = vcombine.low %v2262, %v2266
          %v3692 = vcombine.low %v2270, %v2274
          %v3693 = vcombine.low %v2278, %v2282
          %v3694 = vcombine.low %v2286, %v2290
          %v3696 = vunpack.c.l.s4 1966171168
          %v3697 = vunpack.c.0.s8 %v3696
          %v3698 = vlaneseq
          %v3699 = vshrl.u32 %v3698, 7
          %v3700 = vsub.s32 %v3697, %v3699
          %v3701 = vrot.slane %v3691, %v3700
          %v3703 = vunpack.c.l.s4 1966171168
          %v3704 = vunpack.c.0.s8 %v3703
          %v3705 = vlaneseq
          %v3706 = vshrl.u32 %v3705, 7
          %v3707 = vsub.s32 %v3704, %v3706
          %v3708 = vrot.slane %v3692, %v3707
          %v3710 = vunpack.c.l.s4 1966171168
          %v3711 = vunpack.c.0.s8 %v3710
          %v3712 = vlaneseq
          %v3713 = vshrl.u32 %v3712, 7
          %v3714 = vsub.s32 %v3711, %v3713
          %v3715 = vrot.slane %v3693, %v3714
          %v3717 = vunpack.c.l.s4 1966171168
          %v3718 = vunpack.c.0.s8 %v3717
          %v3719 = vlaneseq
          %v3720 = vshrl.u32 %v3719, 7
          %v3721 = vsub.s32 %v3718, %v3720
          %v3722 = vrot.slane %v3694, %v3721
          %v3723 = vcombine.low %v3701, %v3708
          %v3724 = vcombine.low %v3715, %v3722
          %v3726 = vunpack.c.l.s4 1966171168
          %v3727 = vunpack.c.0.s8 %v3726
          %v3728 = vlaneseq
          %v3729 = vshrl.u32 %v3728, 7
          %v3730 = vsub.s32 %v3727, %v3729
          %v3731 = vrot.slane %v3723, %v3730
          %v3733 = vunpack.c.l.s4 1966171168
          %v3734 = vunpack.c.0.s8 %v3733
          %v3735 = vlaneseq
          %v3736 = vshrl.u32 %v3735, 7
          %v3737 = vsub.s32 %v3734, %v3736
          %v3738 = vrot.slane %v3724, %v3737
          %v3739 = vcombine.low %v3731, %v3738
          %v3740 = vcombine.low %v2294, %v2298
          %v3741 = vcombine.low %v2302, %v2306
          %v3742 = vcombine.low %v2310, %v2314
          %v3743 = vcombine.low %v2318, %v2322
          %v3745 = vunpack.c.l.s4 1966171168
          %v3746 = vunpack.c.0.s8 %v3745
          %v3747 = vlaneseq
          %v3748 = vshrl.u32 %v3747, 7
          %v3749 = vsub.s32 %v3746, %v3748
          %v3750 = vrot.slane %v3740, %v3749
          %v3752 = vunpack.c.l.s4 1966171168
          %v3753 = vunpack.c.0.s8 %v3752
          %v3754 = vlaneseq
          %v3755 = vshrl.u32 %v3754, 7
          %v3756 = vsub.s32 %v3753, %v3755
          %v3757 = vrot.slane %v3741, %v3756
          %v3759 = vunpack.c.l.s4 1966171168
          %v3760 = vunpack.c.0.s8 %v3759
          %v3761 = vlaneseq
          %v3762 = vshrl.u32 %v3761, 7
          %v3763 = vsub.s32 %v3760, %v3762
          %v3764 = vrot.slane %v3742, %v3763
          %v3766 = vunpack.c.l.s4 1966171168
          %v3767 = vunpack.c.0.s8 %v3766
          %v3768 = vlaneseq
          %v3769 = vshrl.u32 %v3768, 7
          %v3770 = vsub.s32 %v3767, %v3769
          %v3771 = vrot.slane %v3743, %v3770
          %v3772 = vcombine.low %v3750, %v3757
          %v3773 = vcombine.low %v3764, %v3771
          %v3775 = vunpack.c.l.s4 1966171168
          %v3776 = vunpack.c.0.s8 %v3775
          %v3777 = vlaneseq
          %v3778 = vshrl.u32 %v3777, 7
          %v3779 = vsub.s32 %v3776, %v3778
          %v3780 = vrot.slane %v3772, %v3779
          %v3782 = vunpack.c.l.s4 1966171168
          %v3783 = vunpack.c.0.s8 %v3782
          %v3784 = vlaneseq
          %v3785 = vshrl.u32 %v3784, 7
          %v3786 = vsub.s32 %v3783, %v3785
          %v3787 = vrot.slane %v3773, %v3786
          %v3788 = vcombine.low %v3780, %v3787
          %v3789 = vcombine.low %v2326, %v2330
          %v3790 = vcombine.low %v2334, %v2338
          %v3791 = vcombine.low %v2342, %v2346
          %v3792 = vcombine.low %v2350, %v2354
          %v3794 = vunpack.c.l.s4 1966171168
          %v3795 = vunpack.c.0.s8 %v3794
          %v3796 = vlaneseq
          %v3797 = vshrl.u32 %v3796, 7
          %v3798 = vsub.s32 %v3795, %v3797
          %v3799 = vrot.slane %v3789, %v3798
          %v3801 = vunpack.c.l.s4 1966171168
          %v3802 = vunpack.c.0.s8 %v3801
          %v3803 = vlaneseq
          %v3804 = vshrl.u32 %v3803, 7
          %v3805 = vsub.s32 %v3802, %v3804
          %v3806 = vrot.slane %v3790, %v3805
          %v3808 = vunpack.c.l.s4 1966171168
          %v3809 = vunpack.c.0.s8 %v3808
          %v3810 = vlaneseq
          %v3811 = vshrl.u32 %v3810, 7
          %v3812 = vsub.s32 %v3809, %v3811
          %v3813 = vrot.slane %v3791, %v3812
          %v3815 = vunpack.c.l.s4 1966171168
          %v3816 = vunpack.c.0.s8 %v3815
          %v3817 = vlaneseq
          %v3818 = vshrl.u32 %v3817, 7
          %v3819 = vsub.s32 %v3816, %v3818
          %v3820 = vrot.slane %v3792, %v3819
          %v3821 = vcombine.low %v3799, %v3806
          %v3822 = vcombine.low %v3813, %v3820
          %v3824 = vunpack.c.l.s4 1966171168
          %v3825 = vunpack.c.0.s8 %v3824
          %v3826 = vlaneseq
          %v3827 = vshrl.u32 %v3826, 7
          %v3828 = vsub.s32 %v3825, %v3827
          %v3829 = vrot.slane %v3821, %v3828
          %v3831 = vunpack.c.l.s4 1966171168
          %v3832 = vunpack.c.0.s8 %v3831
          %v3833 = vlaneseq
          %v3834 = vshrl.u32 %v3833, 7
          %v3835 = vsub.s32 %v3832, %v3834
          %v3836 = vrot.slane %v3822, %v3835
          %v3837 = vcombine.low %v3829, %v3836
          %v3838 = vcombine.low %v2358, %v2362
          %v3839 = vcombine.low %v2366, %v2370
          %v3840 = vcombine.low %v2374, %v2378
          %v3841 = vcombine.low %v2382, %v2386
          %v3843 = vunpack.c.l.s4 1966171168
          %v3844 = vunpack.c.0.s8 %v3843
          %v3845 = vlaneseq
          %v3846 = vshrl.u32 %v3845, 7
          %v3847 = vsub.s32 %v3844, %v3846
          %v3848 = vrot.slane %v3838, %v3847
          %v3850 = vunpack.c.l.s4 1966171168
          %v3851 = vunpack.c.0.s8 %v3850
          %v3852 = vlaneseq
          %v3853 = vshrl.u32 %v3852, 7
          %v3854 = vsub.s32 %v3851, %v3853
          %v3855 = vrot.slane %v3839, %v3854
          %v3857 = vunpack.c.l.s4 1966171168
          %v3858 = vunpack.c.0.s8 %v3857
          %v3859 = vlaneseq
          %v3860 = vshrl.u32 %v3859, 7
          %v3861 = vsub.s32 %v3858, %v3860
          %v3862 = vrot.slane %v3840, %v3861
          %v3864 = vunpack.c.l.s4 1966171168
          %v3865 = vunpack.c.0.s8 %v3864
          %v3866 = vlaneseq
          %v3867 = vshrl.u32 %v3866, 7
          %v3868 = vsub.s32 %v3865, %v3867
          %v3869 = vrot.slane %v3841, %v3868
          %v3870 = vcombine.low %v3848, %v3855
          %v3871 = vcombine.low %v3862, %v3869
          %v3873 = vunpack.c.l.s4 1966171168
          %v3874 = vunpack.c.0.s8 %v3873
          %v3875 = vlaneseq
          %v3876 = vshrl.u32 %v3875, 7
          %v3877 = vsub.s32 %v3874, %v3876
          %v3878 = vrot.slane %v3870, %v3877
          %v3880 = vunpack.c.l.s4 1966171168
          %v3881 = vunpack.c.0.s8 %v3880
          %v3882 = vlaneseq
          %v3883 = vshrl.u32 %v3882, 7
          %v3884 = vsub.s32 %v3881, %v3883
          %v3885 = vrot.slane %v3871, %v3884
          %v3886 = vcombine.low %v3878, %v3885
          %v3887 = vcombine.low %v2390, %v2394
          %v3888 = vcombine.low %v2398, %v2402
          %v3889 = vcombine.low %v2406, %v2410
          %v3890 = vcombine.low %v2414, %v2418
          %v3892 = vunpack.c.l.s4 1966171168
          %v3893 = vunpack.c.0.s8 %v3892
          %v3894 = vlaneseq
          %v3895 = vshrl.u32 %v3894, 7
          %v3896 = vsub.s32 %v3893, %v3895
          %v3897 = vrot.slane %v3887, %v3896
          %v3899 = vunpack.c.l.s4 1966171168
          %v3900 = vunpack.c.0.s8 %v3899
          %v3901 = vlaneseq
          %v3902 = vshrl.u32 %v3901, 7
          %v3903 = vsub.s32 %v3900, %v3902
          %v3904 = vrot.slane %v3888, %v3903
          %v3906 = vunpack.c.l.s4 1966171168
          %v3907 = vunpack.c.0.s8 %v3906
          %v3908 = vlaneseq
          %v3909 = vshrl.u32 %v3908, 7
          %v3910 = vsub.s32 %v3907, %v3909
          %v3911 = vrot.slane %v3889, %v3910
          %v3913 = vunpack.c.l.s4 1966171168
          %v3914 = vunpack.c.0.s8 %v3913
          %v3915 = vlaneseq
          %v3916 = vshrl.u32 %v3915, 7
          %v3917 = vsub.s32 %v3914, %v3916
          %v3918 = vrot.slane %v3890, %v3917
          %v3919 = vcombine.low %v3897, %v3904
          %v3920 = vcombine.low %v3911, %v3918
          %v3922 = vunpack.c.l.s4 1966171168
          %v3923 = vunpack.c.0.s8 %v3922
          %v3924 = vlaneseq
          %v3925 = vshrl.u32 %v3924, 7
          %v3926 = vsub.s32 %v3923, %v3925
          %v3927 = vrot.slane %v3919, %v3926
          %v3929 = vunpack.c.l.s4 1966171168
          %v3930 = vunpack.c.0.s8 %v3929
          %v3931 = vlaneseq
          %v3932 = vshrl.u32 %v3931, 7
          %v3933 = vsub.s32 %v3930, %v3932
          %v3934 = vrot.slane %v3920, %v3933
          %v3935 = vcombine.low %v3927, %v3934
          %v3936 = vcombine.low %v2422, %v2426
          %v3937 = vcombine.low %v2430, %v2434
          %v3938 = vcombine.low %v2438, %v2442
          %v3939 = vcombine.low %v2446, %v2450
          %v3941 = vunpack.c.l.s4 1966171168
          %v3942 = vunpack.c.0.s8 %v3941
          %v3943 = vlaneseq
          %v3944 = vshrl.u32 %v3943, 7
          %v3945 = vsub.s32 %v3942, %v3944
          %v3946 = vrot.slane %v3936, %v3945
          %v3948 = vunpack.c.l.s4 1966171168
          %v3949 = vunpack.c.0.s8 %v3948
          %v3950 = vlaneseq
          %v3951 = vshrl.u32 %v3950, 7
          %v3952 = vsub.s32 %v3949, %v3951
          %v3953 = vrot.slane %v3937, %v3952
          %v3955 = vunpack.c.l.s4 1966171168
          %v3956 = vunpack.c.0.s8 %v3955
          %v3957 = vlaneseq
          %v3958 = vshrl.u32 %v3957, 7
          %v3959 = vsub.s32 %v3956, %v3958
          %v3960 = vrot.slane %v3938, %v3959
          %v3962 = vunpack.c.l.s4 1966171168
          %v3963 = vunpack.c.0.s8 %v3962
          %v3964 = vlaneseq
          %v3965 = vshrl.u32 %v3964, 7
          %v3966 = vsub.s32 %v3963, %v3965
          %v3967 = vrot.slane %v3939, %v3966
          %v3968 = vcombine.low %v3946, %v3953
          %v3969 = vcombine.low %v3960, %v3967
          %v3971 = vunpack.c.l.s4 1966171168
          %v3972 = vunpack.c.0.s8 %v3971
          %v3973 = vlaneseq
          %v3974 = vshrl.u32 %v3973, 7
          %v3975 = vsub.s32 %v3972, %v3974
          %v3976 = vrot.slane %v3968, %v3975
          %v3978 = vunpack.c.l.s4 1966171168
          %v3979 = vunpack.c.0.s8 %v3978
          %v3980 = vlaneseq
          %v3981 = vshrl.u32 %v3980, 7
          %v3982 = vsub.s32 %v3979, %v3981
          %v3983 = vrot.slane %v3969, %v3982
          %v3984 = vcombine.low %v3976, %v3983
          %v3985 = vcombine.low %v2454, %v2458
          %v3986 = vcombine.low %v2462, %v2466
          %v3987 = vcombine.low %v2470, %v2474
          %v3988 = vcombine.low %v2478, %v2482
          %v3990 = vunpack.c.l.s4 1966171168
          %v3991 = vunpack.c.0.s8 %v3990
          %v3992 = vlaneseq
          %v3993 = vshrl.u32 %v3992, 7
          %v3994 = vsub.s32 %v3991, %v3993
          %v3995 = vrot.slane %v3985, %v3994
          %v3997 = vunpack.c.l.s4 1966171168
          %v3998 = vunpack.c.0.s8 %v3997
          %v3999 = vlaneseq
          %v4000 = vshrl.u32 %v3999, 7
          %v4001 = vsub.s32 %v3998, %v4000
          %v4002 = vrot.slane %v3986, %v4001
          %v4004 = vunpack.c.l.s4 1966171168
          %v4005 = vunpack.c.0.s8 %v4004
          %v4006 = vlaneseq
          %v4007 = vshrl.u32 %v4006, 7
          %v4008 = vsub.s32 %v4005, %v4007
          %v4009 = vrot.slane %v3987, %v4008
          %v4011 = vunpack.c.l.s4 1966171168
          %v4012 = vunpack.c.0.s8 %v4011
          %v4013 = vlaneseq
          %v4014 = vshrl.u32 %v4013, 7
          %v4015 = vsub.s32 %v4012, %v4014
          %v4016 = vrot.slane %v3988, %v4015
          %v4017 = vcombine.low %v3995, %v4002
          %v4018 = vcombine.low %v4009, %v4016
          %v4020 = vunpack.c.l.s4 1966171168
          %v4021 = vunpack.c.0.s8 %v4020
          %v4022 = vlaneseq
          %v4023 = vshrl.u32 %v4022, 7
          %v4024 = vsub.s32 %v4021, %v4023
          %v4025 = vrot.slane %v4017, %v4024
          %v4027 = vunpack.c.l.s4 1966171168
          %v4028 = vunpack.c.0.s8 %v4027
          %v4029 = vlaneseq
          %v4030 = vshrl.u32 %v4029, 7
          %v4031 = vsub.s32 %v4028, %v4030
          %v4032 = vrot.slane %v4018, %v4031
          %v4033 = vcombine.low %v4025, %v4032
          %v4034 = vcombine.low %v2486, %v2490
          %v4035 = vcombine.low %v2494, %v2498
          %v4036 = vcombine.low %v2502, %v2506
          %v4037 = vcombine.low %v2510, %v2514
          %v4039 = vunpack.c.l.s4 1966171168
          %v4040 = vunpack.c.0.s8 %v4039
          %v4041 = vlaneseq
          %v4042 = vshrl.u32 %v4041, 7
          %v4043 = vsub.s32 %v4040, %v4042
          %v4044 = vrot.slane %v4034, %v4043
          %v4046 = vunpack.c.l.s4 1966171168
          %v4047 = vunpack.c.0.s8 %v4046
          %v4048 = vlaneseq
          %v4049 = vshrl.u32 %v4048, 7
          %v4050 = vsub.s32 %v4047, %v4049
          %v4051 = vrot.slane %v4035, %v4050
          %v4053 = vunpack.c.l.s4 1966171168
          %v4054 = vunpack.c.0.s8 %v4053
          %v4055 = vlaneseq
          %v4056 = vshrl.u32 %v4055, 7
          %v4057 = vsub.s32 %v4054, %v4056
          %v4058 = vrot.slane %v4036, %v4057
          %v4060 = vunpack.c.l.s4 1966171168
          %v4061 = vunpack.c.0.s8 %v4060
          %v4062 = vlaneseq
          %v4063 = vshrl.u32 %v4062, 7
          %v4064 = vsub.s32 %v4061, %v4063
          %v4065 = vrot.slane %v4037, %v4064
          %v4066 = vcombine.low %v4044, %v4051
          %v4067 = vcombine.low %v4058, %v4065
          %v4069 = vunpack.c.l.s4 1966171168
          %v4070 = vunpack.c.0.s8 %v4069
          %v4071 = vlaneseq
          %v4072 = vshrl.u32 %v4071, 7
          %v4073 = vsub.s32 %v4070, %v4072
          %v4074 = vrot.slane %v4066, %v4073
          %v4076 = vunpack.c.l.s4 1966171168
          %v4077 = vunpack.c.0.s8 %v4076
          %v4078 = vlaneseq
          %v4079 = vshrl.u32 %v4078, 7
          %v4080 = vsub.s32 %v4077, %v4079
          %v4081 = vrot.slane %v4067, %v4080
          %v4082 = vcombine.low %v4074, %v4081
          %4083 = vset.pattern.permute.xlu0 0
          %4084 = vperm.xlu0 %4083, %v2563
          %v4085 = vpop.permute.xlu0 %4084
          %4086 = vset.pattern.permute.xlu0 0
          %4087 = vperm.xlu0 %4086, %v2612
          %v4088 = vpop.permute.xlu0 %4087
          %4089 = vset.pattern.permute.xlu0 0
          %4090 = vperm.xlu0 %4089, %v2661
          %v4091 = vpop.permute.xlu0 %4090
          %4092 = vset.pattern.permute.xlu0 0
          %4093 = vperm.xlu0 %4092, %v2710
          %v4094 = vpop.permute.xlu0 %4093
          %4095 = vset.pattern.permute.xlu0 0
          %4096 = vperm.xlu0 %4095, %v2759
          %v4097 = vpop.permute.xlu0 %4096
          %4098 = vset.pattern.permute.xlu0 0
          %4099 = vperm.xlu0 %4098, %v2808
          %v4100 = vpop.permute.xlu0 %4099
          %4101 = vset.pattern.permute.xlu0 0
          %4102 = vperm.xlu0 %4101, %v2857
          %v4103 = vpop.permute.xlu0 %4102
          %4104 = vset.pattern.permute.xlu0 0
          %4105 = vperm.xlu0 %4104, %v2906
          %v4106 = vpop.permute.xlu0 %4105
          %4107 = vset.pattern.permute.xlu0 0
          %4108 = vperm.xlu0 %4107, %v2955
          %v4109 = vpop.permute.xlu0 %4108
          %4110 = vset.pattern.permute.xlu0 0
          %4111 = vperm.xlu0 %4110, %v3004
          %v4112 = vpop.permute.xlu0 %4111
          %4113 = vset.pattern.permute.xlu0 0
          %4114 = vperm.xlu0 %4113, %v3053
          %v4115 = vpop.permute.xlu0 %4114
          %4116 = vset.pattern.permute.xlu0 0
          %4117 = vperm.xlu0 %4116, %v3102
          %v4118 = vpop.permute.xlu0 %4117
          %4119 = vset.pattern.permute.xlu0 0
          %4120 = vperm.xlu0 %4119, %v3151
          %v4121 = vpop.permute.xlu0 %4120
          %4122 = vset.pattern.permute.xlu0 0
          %4123 = vperm.xlu0 %4122, %v3200
          %v4124 = vpop.permute.xlu0 %4123
          %4125 = vset.pattern.permute.xlu0 0
          %4126 = vperm.xlu0 %4125, %v3249
          %v4127 = vpop.permute.xlu0 %4126
          %4128 = vset.pattern.permute.xlu0 0
          %4129 = vperm.xlu0 %4128, %v3298
          %v4130 = vpop.permute.xlu0 %4129
          %4131 = vset.pattern.permute.xlu0 0
          %4132 = vperm.xlu0 %4131, %v3347
          %v4133 = vpop.permute.xlu0 %4132
          %4134 = vset.pattern.permute.xlu0 0
          %4135 = vperm.xlu0 %4134, %v3396
          %v4136 = vpop.permute.xlu0 %4135
          %4137 = vset.pattern.permute.xlu0 0
          %4138 = vperm.xlu0 %4137, %v3445
          %v4139 = vpop.permute.xlu0 %4138
          %4140 = vset.pattern.permute.xlu0 0
          %4141 = vperm.xlu0 %4140, %v3494
          %v4142 = vpop.permute.xlu0 %4141
          %4143 = vset.pattern.permute.xlu0 0
          %4144 = vperm.xlu0 %4143, %v3543
          %v4145 = vpop.permute.xlu0 %4144
          %4146 = vset.pattern.permute.xlu0 0
          %4147 = vperm.xlu0 %4146, %v3592
          %v4148 = vpop.permute.xlu0 %4147
          %4149 = vset.pattern.permute.xlu0 0
          %4150 = vperm.xlu0 %4149, %v3641
          %v4151 = vpop.permute.xlu0 %4150
          %4152 = vset.pattern.permute.xlu0 0
          %4153 = vperm.xlu0 %4152, %v3690
          %v4154 = vpop.permute.xlu0 %4153
          %4155 = vset.pattern.permute.xlu0 0
          %4156 = vperm.xlu0 %4155, %v3739
          %v4157 = vpop.permute.xlu0 %4156
          %4158 = vset.pattern.permute.xlu0 0
          %4159 = vperm.xlu0 %4158, %v3788
          %v4160 = vpop.permute.xlu0 %4159
          %4161 = vset.pattern.permute.xlu0 0
          %4162 = vperm.xlu0 %4161, %v3837
          %v4163 = vpop.permute.xlu0 %4162
          %4164 = vset.pattern.permute.xlu0 0
          %4165 = vperm.xlu0 %4164, %v3886
          %v4166 = vpop.permute.xlu0 %4165
          %4167 = vset.pattern.permute.xlu0 0
          %4168 = vperm.xlu0 %4167, %v3935
          %v4169 = vpop.permute.xlu0 %4168
          %4170 = vset.pattern.permute.xlu0 0
          %4171 = vperm.xlu0 %4170, %v3984
          %v4172 = vpop.permute.xlu0 %4171
          %4173 = vset.pattern.permute.xlu0 0
          %4174 = vperm.xlu0 %4173, %v4033
          %v4175 = vpop.permute.xlu0 %4174
          %4176 = vset.pattern.permute.xlu0 0
          %4177 = vperm.xlu0 %4176, %v4082
          %v4178 = vpop.permute.xlu0 %4177
          %v4179 = vlaneseq
          %v4180 = vand.u32 %v4179, 127
          %v4181 = vlaneseq
          %v4182 = vshrl.u32 %v4181, 7
          %v4183 = vsub.s32 %v4180, %v4182
          %v4184 = vrot.slane %v4085, %v4183
          %v4185 = vadd.s32 %v4180, 4294967288
          %v4186 = vlaneseq
          %v4187 = vshrl.u32 %v4186, 7
          %v4188 = vsub.s32 %v4185, %v4187
          %v4189 = vrot.slane %v4088, %v4188
          %vm4190 = vcmask 130112
          %v4191 = vsel %vm4190, %v4189, %v4184
          %v4192 = vadd.s32 %v4180, 4294967280
          %v4193 = vlaneseq
          %v4194 = vshrl.u32 %v4193, 7
          %v4195 = vsub.s32 %v4192, %v4194
          %v4196 = vrot.slane %v4091, %v4195
          %vm4197 = vcmask 195712
          %v4198 = vsel %vm4197, %v4196, %v4191
          %v4199 = vadd.s32 %v4180, 4294967272
          %v4200 = vlaneseq
          %v4201 = vshrl.u32 %v4200, 7
          %v4202 = vsub.s32 %v4199, %v4201
          %v4203 = vrot.slane %v4094, %v4202
          %vm4204 = vcmask 261312
          %v4205 = vsel %vm4204, %v4203, %v4198
          %v4206 = vadd.s32 %v4180, 4294967264
          %v4207 = vlaneseq
          %v4208 = vshrl.u32 %v4207, 7
          %v4209 = vsub.s32 %v4206, %v4208
          %v4210 = vrot.slane %v4097, %v4209
          %vm4211 = vcmask 326912
          %v4212 = vsel %vm4211, %v4210, %v4205
          %v4213 = vadd.s32 %v4180, 4294967256
          %v4214 = vlaneseq
          %v4215 = vshrl.u32 %v4214, 7
          %v4216 = vsub.s32 %v4213, %v4215
          %v4217 = vrot.slane %v4100, %v4216
          %vm4218 = vcmask 392512
          %v4219 = vsel %vm4218, %v4217, %v4212
          %v4220 = vadd.s32 %v4180, 4294967248
          %v4221 = vlaneseq
          %v4222 = vshrl.u32 %v4221, 7
          %v4223 = vsub.s32 %v4220, %v4222
          %v4224 = vrot.slane %v4103, %v4223
          %vm4225 = vcmask 458112
          %v4226 = vsel %vm4225, %v4224, %v4219
          %v4227 = vadd.s32 %v4180, 4294967240
          %v4228 = vlaneseq
          %v4229 = vshrl.u32 %v4228, 7
          %v4230 = vsub.s32 %v4227, %v4229
          %v4231 = vrot.slane %v4106, %v4230
          %vm4232 = vcmask 523712
          %v4233 = vsel %vm4232, %v4231, %v4226
          %v4234 = vadd.s32 %v4180, 4294967232
          %v4235 = vlaneseq
          %v4236 = vshrl.u32 %v4235, 7
          %v4237 = vsub.s32 %v4234, %v4236
          %v4238 = vrot.slane %v4109, %v4237
          %vm4239 = vcmask 589312
          %v4240 = vsel %vm4239, %v4238, %v4233
          %v4241 = vadd.s32 %v4180, 4294967224
          %v4242 = vlaneseq
          %v4243 = vshrl.u32 %v4242, 7
          %v4244 = vsub.s32 %v4241, %v4243
          %v4245 = vrot.slane %v4112, %v4244
          %vm4246 = vcmask 654912
          %v4247 = vsel %vm4246, %v4245, %v4240
          %v4248 = vadd.s32 %v4180, 4294967216
          %v4249 = vlaneseq
          %v4250 = vshrl.u32 %v4249, 7
          %v4251 = vsub.s32 %v4248, %v4250
          %v4252 = vrot.slane %v4115, %v4251
          %vm4253 = vcmask 720512
          %v4254 = vsel %vm4253, %v4252, %v4247
          %v4255 = vadd.s32 %v4180, 4294967208
          %v4256 = vlaneseq
          %v4257 = vshrl.u32 %v4256, 7
          %v4258 = vsub.s32 %v4255, %v4257
          %v4259 = vrot.slane %v4118, %v4258
          %vm4260 = vcmask 786112
          %v4261 = vsel %vm4260, %v4259, %v4254
          %v4262 = vadd.s32 %v4180, 4294967200
          %v4263 = vlaneseq
          %v4264 = vshrl.u32 %v4263, 7
          %v4265 = vsub.s32 %v4262, %v4264
          %v4266 = vrot.slane %v4121, %v4265
          %vm4267 = vcmask 851712
          %v4268 = vsel %vm4267, %v4266, %v4261
          %v4269 = vadd.s32 %v4180, 4294967192
          %v4270 = vlaneseq
          %v4271 = vshrl.u32 %v4270, 7
          %v4272 = vsub.s32 %v4269, %v4271
          %v4273 = vrot.slane %v4124, %v4272
          %vm4274 = vcmask 917312
          %v4275 = vsel %vm4274, %v4273, %v4268
          %v4276 = vadd.s32 %v4180, 4294967184
          %v4277 = vlaneseq
          %v4278 = vshrl.u32 %v4277, 7
          %v4279 = vsub.s32 %v4276, %v4278
          %v4280 = vrot.slane %v4127, %v4279
          %vm4281 = vcmask 982912
          %v4282 = vsel %vm4281, %v4280, %v4275
          %v4283 = vadd.s32 %v4180, 4294967176
          %v4284 = vlaneseq
          %v4285 = vshrl.u32 %v4284, 7
          %v4286 = vsub.s32 %v4283, %v4285
          %v4287 = vrot.slane %v4130, %v4286
          %vm4288 = vcmask 1048512
          %v4289 = vsel %vm4288, %v4287, %v4282
          %v4290 = vlaneseq
          %v4291 = vshrl.u32 %v4290, 7
          %v4292 = vsub.s32 %v4180, %v4291
          %v4293 = vrot.slane %v4133, %v4292
          %v4294 = vlaneseq
          %v4295 = vshrl.u32 %v4294, 7
          %v4296 = vsub.s32 %v4185, %v4295
          %v4297 = vrot.slane %v4136, %v4296
          %v4298 = vsel %vm4190, %v4297, %v4293
          %v4299 = vlaneseq
          %v4300 = vshrl.u32 %v4299, 7
          %v4301 = vsub.s32 %v4192, %v4300
          %v4302 = vrot.slane %v4139, %v4301
          %v4303 = vsel %vm4197, %v4302, %v4298
          %v4304 = vlaneseq
          %v4305 = vshrl.u32 %v4304, 7
          %v4306 = vsub.s32 %v4199, %v4305
          %v4307 = vrot.slane %v4142, %v4306
          %v4308 = vsel %vm4204, %v4307, %v4303
          %v4309 = vlaneseq
          %v4310 = vshrl.u32 %v4309, 7
          %v4311 = vsub.s32 %v4206, %v4310
          %v4312 = vrot.slane %v4145, %v4311
          %v4313 = vsel %vm4211, %v4312, %v4308
          %v4314 = vlaneseq
          %v4315 = vshrl.u32 %v4314, 7
          %v4316 = vsub.s32 %v4213, %v4315
          %v4317 = vrot.slane %v4148, %v4316
          %v4318 = vsel %vm4218, %v4317, %v4313
          %v4319 = vlaneseq
          %v4320 = vshrl.u32 %v4319, 7
          %v4321 = vsub.s32 %v4220, %v4320
          %v4322 = vrot.slane %v4151, %v4321
          %v4323 = vsel %vm4225, %v4322, %v4318
          %v4324 = vlaneseq
          %v4325 = vshrl.u32 %v4324, 7
          %v4326 = vsub.s32 %v4227, %v4325
          %v4327 = vrot.slane %v4154, %v4326
          %v4328 = vsel %vm4232, %v4327, %v4323
          %v4329 = vlaneseq
          %v4330 = vshrl.u32 %v4329, 7
          %v4331 = vsub.s32 %v4234, %v4330
          %v4332 = vrot.slane %v4157, %v4331
          %v4333 = vsel %vm4239, %v4332, %v4328
          %v4334 = vlaneseq
          %v4335 = vshrl.u32 %v4334, 7
          %v4336 = vsub.s32 %v4241, %v4335
          %v4337 = vrot.slane %v4160, %v4336
          %v4338 = vsel %vm4246, %v4337, %v4333
          %v4339 = vlaneseq
          %v4340 = vshrl.u32 %v4339, 7
          %v4341 = vsub.s32 %v4248, %v4340
          %v4342 = vrot.slane %v4163, %v4341
          %v4343 = vsel %vm4253, %v4342, %v4338
          %v4344 = vlaneseq
          %v4345 = vshrl.u32 %v4344, 7
          %v4346 = vsub.s32 %v4255, %v4345
          %v4347 = vrot.slane %v4166, %v4346
          %v4348 = vsel %vm4260, %v4347, %v4343
          %v4349 = vlaneseq
          %v4350 = vshrl.u32 %v4349, 7
          %v4351 = vsub.s32 %v4262, %v4350
          %v4352 = vrot.slane %v4169, %v4351
          %v4353 = vsel %vm4267, %v4352, %v4348
          %v4354 = vlaneseq
          %v4355 = vshrl.u32 %v4354, 7
          %v4356 = vsub.s32 %v4269, %v4355
          %v4357 = vrot.slane %v4172, %v4356
          %v4358 = vsel %vm4274, %v4357, %v4353
          %v4359 = vlaneseq
          %v4360 = vshrl.u32 %v4359, 7
          %v4361 = vsub.s32 %v4276, %v4360
          %v4362 = vrot.slane %v4175, %v4361
          %v4363 = vsel %vm4281, %v4362, %v4358
          %v4364 = vlaneseq
          %v4365 = vshrl.u32 %v4364, 7
          %v4366 = vsub.s32 %v4283, %v4365
          %v4367 = vrot.slane %v4178, %v4366
          %v4368 = vsel %vm4288, %v4367, %v4363
          %v4369 = vcombine.low %v4289, %v4368
          %v4371 = vunpack.c.l.s4 1966171168
          %v4372 = vunpack.c.0.s8 %v4371
          %v4373 = vlaneseq
          %v4374 = vshrl.u32 %v4373, 7
          %v4375 = vsub.s32 %v4372, %v4374
          %v4376 = vrot.slane %v4369, %v4375
          %v4378 = vunpack.c.l.s4 1966171168
          %v4379 = vunpack.c.0.s8 %v4378
          %v4380 = vlaneseq
          %v4381 = vshrl.u32 %v4380, 7
          %v4382 = vsub.s32 %v4379, %v4381
          %v4383 = vrot.slane %v4376, %v4382
          %4385 = vst.msk [vmem:[%s229] sm:$0x3] %vm742, %v4383
        $region40: #{tpu_custom_call.1} parent=27 // pred_fallthru
          _
        %s4386 = sand.u32 %s106, 1
        %s4387 = scalar_lea.sflag [#allocation4], %s4386
        %s4388 = sand.u32 %s106, 1
        %s4389 = smul.addr %s4388, 2
        %s4390 = scalar_lea.vmem [#allocation3], %s4389
        %s4391 = sand.u32 %s136, 1
        %s4392 = scalar_lea.sflag [#allocation6], %s4391
        %s4393 = sand.u32 %s136, 1
        %s4394 = smul.addr %s4393, 4
        %s4395 = scalar_lea.vmem [#allocation5], %s4394
        // Predicated region
        $region41: #{tpu_custom_call.1} parent=27 // pred_check
          %p4396 = pneg %p116
        $region42: #{tpu_custom_call.1} parent=27 // pred_check_branch
          %4398 = sbr.rel (%p4396) target = $region44
        $region43: #{tpu_custom_call.1} parent=27 // pred_region
          %s4399 = smul.u32 2, %s27
          %s4401 = ssub.s32 32, 32
          %4402 = vsyncadd %s4387, %s4401
          %s4403 = smul.addr %s26, 2
          %s4404 = sadd.s32 %s4399, %s4403
          %s4405 = smul.addr %s4404, 16
          %s4406 = scalar_lea.hbm %s2, %s4405
          %s4408 = sshll.u32 %s4390, 4
          %s4409 = int_to_ptr.vmem [resolvable:$true] %s4408
          %4411 = dma.vmem_to_hbm [thread:$0]  %s4409, 32, %s4406, %s4387
        $region44: #{tpu_custom_call.1} parent=27 // pred_fallthru
          _
        // Predicated region
        $region45: #{tpu_custom_call.1} parent=27 // pred_check
          %p4412 = pneg %p146
        $region46: #{tpu_custom_call.1} parent=27 // pred_check_branch
          %4414 = sbr.rel (%p4412) target = $region48
        $region47: #{tpu_custom_call.1} parent=27 // pred_region
          %s4415 = smul.u32 4, %s28
          %s4417 = ssub.s32 64, 64
          %4418 = vsyncadd %s4392, %s4417
          %s4419 = smul.addr %s27, 4
          %s4420 = sadd.s32 %s4415, %s4419
          %s4421 = smul.addr %s26, 4
          %s4422 = sadd.s32 %s4420, %s4421
          %s4423 = smul.addr %s4422, 16
          %s4424 = scalar_lea.hbm %s3, %s4423
          %s4426 = sshll.u32 %s4395, 4
          %s4427 = int_to_ptr.vmem [resolvable:$true] %s4426
          %4429 = dma.vmem_to_hbm [thread:$0]  %s4427, 64, %s4424, %s4392
        $region48: #{tpu_custom_call.1} parent=27 // pred_fallthru
          _
      $region28: #{tpu_custom_call.1} parent=5 // pred_fallthru
        _
      %p4430 = scmp.le.s32.totalorder 2, %s16
      // Predicated region
      $region49: #{tpu_custom_call.1} parent=5 // pred_check
        %p4431 = pneg %p4430
      $region50: #{tpu_custom_call.1} parent=5 // pred_check_branch
        %4433 = sbr.rel (%p4431) target = $region52
      $region51: #{tpu_custom_call.1} parent=5 // pred_region
        %s4434 = ssub.s32 %s16, 2
        // Predicated region
        $region53: #{tpu_custom_call.1} parent=51 // pred_check
          %p4435 = pneg %p122
        $region54: #{tpu_custom_call.1} parent=51 // pred_check_branch
          %4437 = sbr.rel (%p4435) target = $region56
        $region55: #{tpu_custom_call.1} parent=51 // pred_region
          %s4438 = sand.u32 %s107, 1
          %s4439 = scalar_lea.sflag [#allocation4], %s4438
          %s4440 = sand.u32 %s107, 1
          %s4441 = smul.addr %s4440, 2
          %s4442 = scalar_lea.vmem [#allocation3], %s4441
          %4443 = dma.done %s4439, 32
        $region56: #{tpu_custom_call.1} parent=51 // pred_fallthru
          _
        // Predicated region
        $region57: #{tpu_custom_call.1} parent=51 // pred_check
          %p4444 = pneg %p152
        $region58: #{tpu_custom_call.1} parent=51 // pred_check_branch
          %4446 = sbr.rel (%p4444) target = $region60
        $region59: #{tpu_custom_call.1} parent=51 // pred_region
          %s4447 = sand.u32 %s137, 1
          %s4448 = scalar_lea.sflag [#allocation6], %s4447
          %s4449 = sand.u32 %s137, 1
          %s4450 = smul.addr %s4449, 4
          %s4451 = scalar_lea.vmem [#allocation5], %s4450
          %4452 = dma.done %s4448, 64
        $region60: #{tpu_custom_call.1} parent=51 // pred_fallthru
          _
      $region52: #{tpu_custom_call.1} parent=5 // pred_fallthru
        _
    $region6: #{tpu_custom_call.1} parent=1 // loop_footer
      %s20 = sadd.s32 1, %s16
    $region7: #{tpu_custom_call.1} parent=1 // loop_footer_branch
      %15 = sbr.rel target = $region3
    $region8: #{tpu_custom_call.1} parent=1 // loop_exit
      _
    %4453 = vsyncpa [#allocation4], 1
    %s4454 = scalar_lea.sflag [#allocation4], 1
    %4455 = vsyncpa %s4454, 1
    %4456 = vsyncpa [#allocation6], 1
    %s4457 = scalar_lea.sflag [#allocation6], 1
    %4458 = vsyncpa %s4457, 1

</llo_original>
